<compile_context>
chip_gen: v6e
topology: v6e:2x2x1
jax: 0.10.0
libtpu: 0.0.40
codegen_flags: <defaults>
</compile_context>

<pallas_src>
import functools

import jax
import jax.numpy as jnp
from jax.experimental import pallas as pl
from jax.experimental.pallas import tpu as pltpu


# ----------------------------------------------------------------------------
# Fused kernel: 3 LSTM layers + linear head + log_softmax, single invocation.
# Gate order follows PyTorch nn.LSTM: i, f, g, o.
# ----------------------------------------------------------------------------
def _dlstm3_kernel(
    # inputs
    x_ref,                                      # (S*B, F) time-major, flattened
    w1x_ref, w1h_ref, b1_ref,                   # layer 1: (F,4H), (H,4H), (1,4H)
    w2x_ref, w2y_ref, w2h_ref, b2_ref,          # layer 2 (split W_ih: x / y1 part)
    w3x_ref, w3y_ref, w3h_ref, b3_ref,          # layer 3 (split W_ih: x / y2 part)
    wo1_ref, wo2_ref, wo3_ref, bo_ref,          # head split over [y1,y2,y3], (1,F)
    h01_ref, c01_ref, h02_ref, c02_ref, h03_ref, c03_ref,   # (B,H) each
    # outputs
    out_ref,                                    # (S*B, F) log_softmax output
    h1T_ref, c1T_ref, h2T_ref, c2T_ref, h3T_ref, c3T_ref,   # (B,H) each
    # scratch
    y1_sc, y2_sc, y3_sc,                        # (S*B, H) f32 VMEM slabs
    *, seq_len, batch, hidden, mxu_dtype):
  S, B, H = seq_len, batch, hidden

  def mm(a, b):
    # Optionally cast MXU inputs (e.g. bf16 on v6e/v7x); accumulate in f32 and
    # keep all elementwise gate math in f32 (v5e VPU/EUP have no bf16).
    return jnp.dot(a.astype(mxu_dtype), b.astype(mxu_dtype),
                   preferred_element_type=jnp.float32)

  def run_layer(gx, whh, h0, c0, y_sc):
    """Serial LSTM recurrence. gx = precomputed input-path gates + bias."""
    h = h0
    c = c0
    # Fully unrolled (S small & static): only h@W_hh and gate elementwise math
    # sit on the serial critical path; weights/bias already hoisted.
    for t in range(S):
      r0 = t * B
      gates = gx[r0:r0 + B, :] + mm(h, whh)              # (B, 4H)
      i_g = jax.nn.sigmoid(gates[:, 0 * H:1 * H])
      f_g = jax.nn.sigmoid(gates[:, 1 * H:2 * H])
      g_g = jnp.tanh(gates[:, 2 * H:3 * H])
      o_g = jax.nn.sigmoid(gates[:, 3 * H:4 * H])
      c = f_g * c + i_g * g_g
      h = o_g * jnp.tanh(c)
      y_sc[r0:r0 + B, :] = h                             # buffer step output
    return h, c

  x2d = x_ref[...]                                       # (S*B, F)

  # ---- layer 1: whole input path precomputed in one batched matmul ---------
  gx1 = mm(x2d, w1x_ref[...]) + b1_ref[...]
  h1, c1 = run_layer(gx1, w1h_ref[...],
                     h01_ref[...].astype(jnp.float32),
                     c01_ref[...].astype(jnp.float32), y1_sc)
  y1 = y1_sc[...]                                        # (S*B, H)

  # ---- layer 2: skip connection via split W_ih (no concat materialized) ----
  gx2 = mm(x2d, w2x_ref[...]) + mm(y1, w2y_ref[...]) + b2_ref[...]
  h2, c2 = run_layer(gx2, w2h_ref[...],
                     h02_ref[...].astype(jnp.float32),
                     c02_ref[...].astype(jnp.float32), y2_sc)
  y2 = y2_sc[...]

  # ---- layer 3 --------------------------------------------------------------
  gx3 = mm(x2d, w3x_ref[...]) + mm(y2, w3y_ref[...]) + b3_ref[...]
  h3, c3 = run_layer(gx3, w3h_ref[...],
                     h03_ref[...].astype(jnp.float32),
                     c03_ref[...].astype(jnp.float32), y3_sc)
  y3 = y3_sc[...]

  # ---- fused head: Linear(3H -> F) as 3 split matmuls + log_softmax --------
  logits = (mm(y1, wo1_ref[...]) + mm(y2, wo2_ref[...]) + mm(y3, wo3_ref[...])
            + bo_ref[...])                               # (S*B, F)
  m = jnp.max(logits, axis=-1, keepdims=True)
  s = logits - m
  lse = jnp.log(jnp.sum(jnp.exp(s), axis=-1, keepdims=True))
  out_ref[...] = (s - lse).astype(out_ref.dtype)

  # ---- final states written exactly once ------------------------------------
  h1T_ref[...] = h1.astype(h1T_ref.dtype)
  c1T_ref[...] = c1.astype(c1T_ref.dtype)
  h2T_ref[...] = h2.astype(h2T_ref.dtype)
  c2T_ref[...] = c2.astype(c2T_ref.dtype)
  h3T_ref[...] = h3.astype(h3T_ref.dtype)
  c3T_ref[...] = c3.astype(c3T_ref.dtype)


# ----------------------------------------------------------------------------
# Parameter init (PyTorch-style layout & U(-1/sqrt(fan), 1/sqrt(fan)) init)
# ----------------------------------------------------------------------------
def init_params(key, feature_size, hidden_size):
  H = hidden_size

  def lstm_params(k, in_size):
    bound = 1.0 / jnp.sqrt(jnp.float32(H))
    k0, k1, k2, k3 = jax.random.split(k, 4)
    return dict(
        w_ih=jax.random.uniform(k0, (4 * H, in_size), jnp.float32, -bound, bound),
        w_hh=jax.random.uniform(k1, (4 * H, H), jnp.float32, -bound, bound),
        b_ih=jax.random.uniform(k2, (4 * H,), jnp.float32, -bound, bound),
        b_hh=jax.random.uniform(k3, (4 * H,), jnp.float32, -bound, bound))

  k1, k2, k3, k4 = jax.random.split(key, 4)
  params = {
      'h1': lstm_params(k1, feature_size),
      'h2': lstm_params(k2, feature_size + H),
      'h3': lstm_params(k3, feature_size + H),
  }
  bnd = 1.0 / jnp.sqrt(jnp.float32(3 * H))
  kw, kb = jax.random.split(k4)
  params['h2o_w'] = jax.random.uniform(kw, (feature_size, 3 * H),
                                       jnp.float32, -bnd, bnd)   # (out, in)
  params['h2o_b'] = jax.random.uniform(kb, (feature_size,), jnp.float32, -bnd, bnd)
  return params


def _prepare_kernel_params(params, F, H):
  """Transpose / split PyTorch-layout weights into the kernel layout."""
  def layer(p, split):
    w_ih_t = p['w_ih'].T                        # (in, 4H)
    w_hh_t = p['w_hh'].T                        # (H, 4H)
    b = (p['b_ih'] + p['b_hh'])[None, :]        # (1, 4H)
    if split:
      return [w_ih_t[:F], w_ih_t[F:], w_hh_t, b]   # x-part, y-part
    return [w_ih_t, w_hh_t, b]

  flat = []
  flat += layer(params['h1'], split=False)
  flat += layer(params['h2'], split=True)
  flat += layer(params['h3'], split=True)
  w_o_t = params['h2o_w'].T                     # (3H, F)
  flat += [w_o_t[:H], w_o_t[H:2 * H], w_o_t[2 * H:], params['h2o_b'][None, :]]
  return flat


# ----------------------------------------------------------------------------
# Forward pass matching DLSTM3.forward
# ----------------------------------------------------------------------------
def dlstm3_forward(params, inputs, hiddens, *, mxu_dtype=jnp.float32):
  """inputs: (batch, seq, feature); hiddens: [(h, c)]*3, each (1, batch, hidden)."""
  B, S, F = inputs.shape
  H = params['h1']['w_hh'].shape[1]
  dtype = inputs.dtype

  kparams = _prepare_kernel_params(params, F, H)
  # Time-major flattened activations (row index = t*B + b); only 512B moved.
  x2d = jnp.transpose(inputs, (1, 0, 2)).reshape(S * B, F)
  state_args = []
  for (h, c) in hiddens:
    state_args += [h[0], c[0]]                  # (B, H) each

  kernel = functools.partial(_dlstm3_kernel, seq_len=S, batch=B, hidden=H,
                             mxu_dtype=mxu_dtype)
  vmem = pl.BlockSpec(memory_space=pltpu.MemorySpace.VMEM)
  n_in = 1 + len(kparams) + len(state_args)
  out_shape = (jax.ShapeDtypeStruct((S * B, F), dtype),) + tuple(
      jax.ShapeDtypeStruct((B, H), dtype) for _ in range(6))

  outs = pl.pallas_call(
      kernel,
      out_shape=out_shape,
      in_specs=[vmem] * n_in,
      out_specs=(vmem,) * len(out_shape),
      scratch_shapes=[pltpu.VMEM((S * B, H), jnp.float32) for _ in range(3)],
  )(x2d, *kparams, *state_args)

  out2d, h1T, c1T, h2T, c2T, h3T, c3T = outs
  out = out2d.reshape(S, B, F).transpose(1, 0, 2)          # back to batch-first
  new_hiddens = [(h1T[None], c1T[None]),
                 (h2T[None], c2T[None]),
                 (h3T[None], c3T[None])]
  return out, new_hiddens


# ----------------------------------------------------------------------------
# Pure-JAX reference (numerical sanity check)
# ----------------------------------------------------------------------------
def reference_forward(params, inputs, hiddens):
  x_tm = jnp.transpose(inputs, (1, 0, 2))

  def lstm_ref(x_tm, p, h0, c0):
    H = h0.shape[-1]
    w_ih_t, w_hh_t = p['w_ih'].T, p['w_hh'].T
    b = p['b_ih'] + p['b_hh']

    def step(carry, x):
      h, c = carry
      gates = x @ w_ih_t + h @ w_hh_t + b
      i = jax.nn.sigmoid(gates[:, :H])
      f = jax.nn.sigmoid(gates[:, H:2 * H])
      g = jnp.tanh(gates[:, 2 * H:3 * H])
      o = jax.nn.sigmoid(gates[:, 3 * H:])
      c = f * c + i * g
      h = o * jnp.tanh(c)
      return (h, c), h

    (hT, cT), ys = jax.lax.scan(step, (h0, c0), x_tm)
    return ys, hT, cT

  y1, h1T, c1T = lstm_ref(x_tm, params['h1'], hiddens[0][0][0], hiddens[0][1][0])
  y2, h2T, c2T = lstm_ref(jnp.concatenate([x_tm, y1], -1), params['h2'],
                          hiddens[1][0][0], hiddens[1][1][0])
  y3, h3T, c3T = lstm_ref(jnp.concatenate([x_tm, y2], -1), params['h3'],
                          hiddens[2][0][0], hiddens[2][1][0])
  logits = jnp.concatenate([y1, y2, y3], -1) @ params['h2o_w'].T + params['h2o_b']
  out = jnp.transpose(jax.nn.log_softmax(logits, axis=-1), (1, 0, 2))
  states = [(h1T[None], c1T[None]), (h2T[None], c2T[None]), (h3T[None], c3T[None])]
  return out, states


if __name__ == "__main__":
  B, S, F, H = 2, 8, 8, 32
  key = jax.random.PRNGKey(0)
  pkey, xkey, hkey = jax.random.split(key, 3)

  params = init_params(pkey, F, H)
  x = jax.random.normal(xkey, (B, S, F), jnp.float32)
  hkeys = jax.random.split(hkey, 6)
  hiddens = [(jax.random.normal(hkeys[2 * i], (1, B, H), jnp.float32),
              jax.random.normal(hkeys[2 * i + 1], (1, B, H), jnp.float32))
             for i in range(3)]

  fwd = jax.jit(dlstm3_forward)
  out, new_hiddens = fwd(params, x, hiddens)
  jax.block_until_ready(out)

  ref_out, ref_states = reference_forward(params, x, hiddens)
  assert out.shape == (B, S, F)
  assert jnp.allclose(out, ref_out, atol=5e-3, rtol=5e-3), "output mismatch"
  for (h, c), (rh, rc) in zip(new_hiddens, ref_states):
    assert jnp.allclose(h, rh, atol=5e-3, rtol=5e-3), "h_T mismatch"
    assert jnp.allclose(c, rc, atol=5e-3, rtol=5e-3), "c_T mismatch"
  print("KERNEL_OK")
</pallas_src>

<mosaic_0001>
module attributes {stable_mosaic.version = 11 : i64} {
  func.func @_dlstm3_kernel(%arg0: memref<16x8xf32, #tpu.memory_space<vmem>>, %arg1: memref<8x128xf32, #tpu.memory_space<vmem>>, %arg2: memref<32x128xf32, #tpu.memory_space<vmem>>, %arg3: memref<1x128xf32, #tpu.memory_space<vmem>>, %arg4: memref<8x128xf32, #tpu.memory_space<vmem>>, %arg5: memref<32x128xf32, #tpu.memory_space<vmem>>, %arg6: memref<32x128xf32, #tpu.memory_space<vmem>>, %arg7: memref<1x128xf32, #tpu.memory_space<vmem>>, %arg8: memref<8x128xf32, #tpu.memory_space<vmem>>, %arg9: memref<32x128xf32, #tpu.memory_space<vmem>>, %arg10: memref<32x128xf32, #tpu.memory_space<vmem>>, %arg11: memref<1x128xf32, #tpu.memory_space<vmem>>, %arg12: memref<32x8xf32, #tpu.memory_space<vmem>>, %arg13: memref<32x8xf32, #tpu.memory_space<vmem>>, %arg14: memref<32x8xf32, #tpu.memory_space<vmem>>, %arg15: memref<1x8xf32, #tpu.memory_space<vmem>>, %arg16: memref<2x32xf32, #tpu.memory_space<vmem>>, %arg17: memref<2x32xf32, #tpu.memory_space<vmem>>, %arg18: memref<2x32xf32, #tpu.memory_space<vmem>>, %arg19: memref<2x32xf32, #tpu.memory_space<vmem>>, %arg20: memref<2x32xf32, #tpu.memory_space<vmem>>, %arg21: memref<2x32xf32, #tpu.memory_space<vmem>>, %arg22: memref<16x8xf32, #tpu.memory_space<vmem>>, %arg23: memref<2x32xf32, #tpu.memory_space<vmem>>, %arg24: memref<2x32xf32, #tpu.memory_space<vmem>>, %arg25: memref<2x32xf32, #tpu.memory_space<vmem>>, %arg26: memref<2x32xf32, #tpu.memory_space<vmem>>, %arg27: memref<2x32xf32, #tpu.memory_space<vmem>>, %arg28: memref<2x32xf32, #tpu.memory_space<vmem>>, %arg29: memref<16x32xf32, #tpu.memory_space<vmem>>, %arg30: memref<16x32xf32, #tpu.memory_space<vmem>>, %arg31: memref<16x32xf32, #tpu.memory_space<vmem>>) attributes {dimension_semantics = [], scalar_prefetch = 0 : i64, scratch_operands = 3 : i64, tpu.core_type = #tpu.core_type<tc>} {
    %c0 = arith.constant 0 : index
    %c0_0 = arith.constant 0 : index
    %0 = vector.load %arg0[%c0, %c0_0] : memref<16x8xf32, #tpu.memory_space<vmem>>, vector<16x8xf32>
    %c0_1 = arith.constant 0 : index
    %c0_2 = arith.constant 0 : index
    %1 = vector.load %arg1[%c0_1, %c0_2] : memref<8x128xf32, #tpu.memory_space<vmem>>, vector<8x128xf32>
    %cst = arith.constant dense<0.000000e+00> : vector<16x128xf32>
    %2 = tpu.matmul %0, %1, %cst {dimension_numbers = #tpu.dot_dimension_numbers<[1], [0], [0], [1], [0, 0, 1, 1], [], []>} : vector<16x8xf32>, vector<8x128xf32>, vector<16x128xf32> -> vector<16x128xf32>
    %c0_3 = arith.constant 0 : index
    %c0_4 = arith.constant 0 : index
    %3 = vector.load %arg3[%c0_3, %c0_4] : memref<1x128xf32, #tpu.memory_space<vmem>>, vector<1x128xf32>
    %4 = vector.broadcast %3 : vector<1x128xf32> to vector<16x128xf32>
    %5 = arith.addf %2, %4 : vector<16x128xf32>
    %c0_5 = arith.constant 0 : index
    %c0_6 = arith.constant 0 : index
    %6 = vector.load %arg2[%c0_5, %c0_6] : memref<32x128xf32, #tpu.memory_space<vmem>>, vector<32x128xf32>
    %c0_7 = arith.constant 0 : index
    %c0_8 = arith.constant 0 : index
    %7 = vector.load %arg16[%c0_7, %c0_8] : memref<2x32xf32, #tpu.memory_space<vmem>>, vector<2x32xf32>
    %c0_9 = arith.constant 0 : index
    %c0_10 = arith.constant 0 : index
    %8 = vector.load %arg17[%c0_9, %c0_10] : memref<2x32xf32, #tpu.memory_space<vmem>>, vector<2x32xf32>
    %9 = vector.extract_strided_slice %5 {offsets = [0, 0], sizes = [2, 128], strides = [1, 1]} : vector<16x128xf32> to vector<2x128xf32>
    %cst_11 = arith.constant dense<0.000000e+00> : vector<2x128xf32>
    %10 = tpu.matmul %7, %6, %cst_11 {dimension_numbers = #tpu.dot_dimension_numbers<[1], [0], [0], [1], [0, 0, 1, 1], [], []>} : vector<2x32xf32>, vector<32x128xf32>, vector<2x128xf32> -> vector<2x128xf32>
    %11 = arith.addf %9, %10 : vector<2x128xf32>
    %12 = vector.extract_strided_slice %11 {offsets = [0, 0], sizes = [2, 32], strides = [1, 1]} : vector<2x128xf32> to vector<2x32xf32>
    %13 = arith.negf %12 : vector<2x32xf32>
    %14 = math.exp %13 : vector<2x32xf32>
    %cst_12 = arith.constant 1.000000e+00 : f32
    %15 = vector.broadcast %cst_12 : f32 to vector<2x32xf32>
    %16 = arith.addf %15, %14 : vector<2x32xf32>
    %17 = arith.divf %15, %16 : vector<2x32xf32>
    %18 = vector.extract_strided_slice %11 {offsets = [0, 32], sizes = [2, 32], strides = [1, 1]} : vector<2x128xf32> to vector<2x32xf32>
    %19 = arith.negf %18 : vector<2x32xf32>
    %20 = math.exp %19 : vector<2x32xf32>
    %cst_13 = arith.constant 1.000000e+00 : f32
    %21 = vector.broadcast %cst_13 : f32 to vector<2x32xf32>
    %22 = arith.addf %21, %20 : vector<2x32xf32>
    %23 = arith.divf %21, %22 : vector<2x32xf32>
    %24 = vector.extract_strided_slice %11 {offsets = [0, 64], sizes = [2, 32], strides = [1, 1]} : vector<2x128xf32> to vector<2x32xf32>
    %25 = math.tanh %24 : vector<2x32xf32>
    %26 = vector.extract_strided_slice %11 {offsets = [0, 96], sizes = [2, 32], strides = [1, 1]} : vector<2x128xf32> to vector<2x32xf32>
    %27 = arith.negf %26 : vector<2x32xf32>
    %28 = math.exp %27 : vector<2x32xf32>
    %cst_14 = arith.constant 1.000000e+00 : f32
    %29 = vector.broadcast %cst_14 : f32 to vector<2x32xf32>
    %30 = arith.addf %29, %28 : vector<2x32xf32>
    %31 = arith.divf %29, %30 : vector<2x32xf32>
    %32 = arith.mulf %23, %8 : vector<2x32xf32>
    %33 = arith.mulf %17, %25 : vector<2x32xf32>
    %34 = arith.addf %32, %33 : vector<2x32xf32>
    %35 = math.tanh %34 : vector<2x32xf32>
    %36 = arith.mulf %31, %35 : vector<2x32xf32>
    %c0_15 = arith.constant 0 : index
    %c0_16 = arith.constant 0 : index
    %37 = vector.load %arg29[%c0_15, %c0_16] : memref<16x32xf32, #tpu.memory_space<vmem>>, vector<2x32xf32>
    tpu.vector_store %arg29[%c0_15, %c0_16], %36 {strides = array<i32>} : memref<16x32xf32, #tpu.memory_space<vmem>>, vector<2x32xf32>,
    %38 = vector.extract_strided_slice %5 {offsets = [2, 0], sizes = [2, 128], strides = [1, 1]} : vector<16x128xf32> to vector<2x128xf32>
    %cst_17 = arith.constant dense<0.000000e+00> : vector<2x128xf32>
    %39 = tpu.matmul %36, %6, %cst_17 {dimension_numbers = #tpu.dot_dimension_numbers<[1], [0], [0], [1], [0, 0, 1, 1], [], []>} : vector<2x32xf32>, vector<32x128xf32>, vector<2x128xf32> -> vector<2x128xf32>
    %40 = arith.addf %38, %39 : vector<2x128xf32>
    %41 = vector.extract_strided_slice %40 {offsets = [0, 0], sizes = [2, 32], strides = [1, 1]} : vector<2x128xf32> to vector<2x32xf32>
    %42 = arith.negf %41 : vector<2x32xf32>
    %43 = math.exp %42 : vector<2x32xf32>
    %cst_18 = arith.constant 1.000000e+00 : f32
    %44 = vector.broadcast %cst_18 : f32 to vector<2x32xf32>
    %45 = arith.addf %44, %43 : vector<2x32xf32>
    %46 = arith.divf %44, %45 : vector<2x32xf32>
    %47 = vector.extract_strided_slice %40 {offsets = [0, 32], sizes = [2, 32], strides = [1, 1]} : vector<2x128xf32> to vector<2x32xf32>
    %48 = arith.negf %47 : vector<2x32xf32>
    %49 = math.exp %48 : vector<2x32xf32>
    %cst_19 = arith.constant 1.000000e+00 : f32
    %50 = vector.broadcast %cst_19 : f32 to vector<2x32xf32>
    %51 = arith.addf %50, %49 : vector<2x32xf32>
    %52 = arith.divf %50, %51 : vector<2x32xf32>
    %53 = vector.extract_strided_slice %40 {offsets = [0, 64], sizes = [2, 32], strides = [1, 1]} : vector<2x128xf32> to vector<2x32xf32>
    %54 = math.tanh %53 : vector<2x32xf32>
    %55 = vector.extract_strided_slice %40 {offsets = [0, 96], sizes = [2, 32], strides = [1, 1]} : vector<2x128xf32> to vector<2x32xf32>
    %56 = arith.negf %55 : vector<2x32xf32>
    %57 = math.exp %56 : vector<2x32xf32>
    %cst_20 = arith.constant 1.000000e+00 : f32
    %58 = vector.broadcast %cst_20 : f32 to vector<2x32xf32>
    %59 = arith.addf %58, %57 : vector<2x32xf32>
    %60 = arith.divf %58, %59 : vector<2x32xf32>
    %61 = arith.mulf %52, %34 : vector<2x32xf32>
    %62 = arith.mulf %46, %54 : vector<2x32xf32>
    %63 = arith.addf %61, %62 : vector<2x32xf32>
    %64 = math.tanh %63 : vector<2x32xf32>
    %65 = arith.mulf %60, %64 : vector<2x32xf32>
    %c2 = arith.constant 2 : index
    %c0_21 = arith.constant 0 : index
    %66 = vector.load %arg29[%c2, %c0_21] : memref<16x32xf32, #tpu.memory_space<vmem>>, vector<2x32xf32>
    tpu.vector_store %arg29[%c2, %c0_21], %65 {strides = array<i32>} : memref<16x32xf32, #tpu.memory_space<vmem>>, vector<2x32xf32>,
    %67 = vector.extract_strided_slice %5 {offsets = [4, 0], sizes = [2, 128], strides = [1, 1]} : vector<16x128xf32> to vector<2x128xf32>
    %cst_22 = arith.constant dense<0.000000e+00> : vector<2x128xf32>
    %68 = tpu.matmul %65, %6, %cst_22 {dimension_numbers = #tpu.dot_dimension_numbers<[1], [0], [0], [1], [0, 0, 1, 1], [], []>} : vector<2x32xf32>, vector<32x128xf32>, vector<2x128xf32> -> vector<2x128xf32>
    %69 = arith.addf %67, %68 : vector<2x128xf32>
    %70 = vector.extract_strided_slice %69 {offsets = [0, 0], sizes = [2, 32], strides = [1, 1]} : vector<2x128xf32> to vector<2x32xf32>
    %71 = arith.negf %70 : vector<2x32xf32>
    %72 = math.exp %71 : vector<2x32xf32>
    %cst_23 = arith.constant 1.000000e+00 : f32
    %73 = vector.broadcast %cst_23 : f32 to vector<2x32xf32>
    %74 = arith.addf %73, %72 : vector<2x32xf32>
    %75 = arith.divf %73, %74 : vector<2x32xf32>
    %76 = vector.extract_strided_slice %69 {offsets = [0, 32], sizes = [2, 32], strides = [1, 1]} : vector<2x128xf32> to vector<2x32xf32>
    %77 = arith.negf %76 : vector<2x32xf32>
    %78 = math.exp %77 : vector<2x32xf32>
    %cst_24 = arith.constant 1.000000e+00 : f32
    %79 = vector.broadcast %cst_24 : f32 to vector<2x32xf32>
    %80 = arith.addf %79, %78 : vector<2x32xf32>
    %81 = arith.divf %79, %80 : vector<2x32xf32>
    %82 = vector.extract_strided_slice %69 {offsets = [0, 64], sizes = [2, 32], strides = [1, 1]} : vector<2x128xf32> to vector<2x32xf32>
    %83 = math.tanh %82 : vector<2x32xf32>
    %84 = vector.extract_strided_slice %69 {offsets = [0, 96], sizes = [2, 32], strides = [1, 1]} : vector<2x128xf32> to vector<2x32xf32>
    %85 = arith.negf %84 : vector<2x32xf32>
    %86 = math.exp %85 : vector<2x32xf32>
    %cst_25 = arith.constant 1.000000e+00 : f32
    %87 = vector.broadcast %cst_25 : f32 to vector<2x32xf32>
    %88 = arith.addf %87, %86 : vector<2x32xf32>
    %89 = arith.divf %87, %88 : vector<2x32xf32>
    %90 = arith.mulf %81, %63 : vector<2x32xf32>
    %91 = arith.mulf %75, %83 : vector<2x32xf32>
    %92 = arith.addf %90, %91 : vector<2x32xf32>
    %93 = math.tanh %92 : vector<2x32xf32>
    %94 = arith.mulf %89, %93 : vector<2x32xf32>
    %c4 = arith.constant 4 : index
    %c0_26 = arith.constant 0 : index
    %95 = vector.load %arg29[%c4, %c0_26] : memref<16x32xf32, #tpu.memory_space<vmem>>, vector<2x32xf32>
    tpu.vector_store %arg29[%c4, %c0_26], %94 {strides = array<i32>} : memref<16x32xf32, #tpu.memory_space<vmem>>, vector<2x32xf32>,
    %96 = vector.extract_strided_slice %5 {offsets = [6, 0], sizes = [2, 128], strides = [1, 1]} : vector<16x128xf32> to vector<2x128xf32>
    %cst_27 = arith.constant dense<0.000000e+00> : vector<2x128xf32>
    %97 = tpu.matmul %94, %6, %cst_27 {dimension_numbers = #tpu.dot_dimension_numbers<[1], [0], [0], [1], [0, 0, 1, 1], [], []>} : vector<2x32xf32>, vector<32x128xf32>, vector<2x128xf32> -> vector<2x128xf32>
    %98 = arith.addf %96, %97 : vector<2x128xf32>
    %99 = vector.extract_strided_slice %98 {offsets = [0, 0], sizes = [2, 32], strides = [1, 1]} : vector<2x128xf32> to vector<2x32xf32>
    %100 = arith.negf %99 : vector<2x32xf32>
    %101 = math.exp %100 : vector<2x32xf32>
    %cst_28 = arith.constant 1.000000e+00 : f32
    %102 = vector.broadcast %cst_28 : f32 to vector<2x32xf32>
    %103 = arith.addf %102, %101 : vector<2x32xf32>
    %104 = arith.divf %102, %103 : vector<2x32xf32>
    %105 = vector.extract_strided_slice %98 {offsets = [0, 32], sizes = [2, 32], strides = [1, 1]} : vector<2x128xf32> to vector<2x32xf32>
    %106 = arith.negf %105 : vector<2x32xf32>
    %107 = math.exp %106 : vector<2x32xf32>
    %cst_29 = arith.constant 1.000000e+00 : f32
    %108 = vector.broadcast %cst_29 : f32 to vector<2x32xf32>
    %109 = arith.addf %108, %107 : vector<2x32xf32>
    %110 = arith.divf %108, %109 : vector<2x32xf32>
    %111 = vector.extract_strided_slice %98 {offsets = [0, 64], sizes = [2, 32], strides = [1, 1]} : vector<2x128xf32> to vector<2x32xf32>
    %112 = math.tanh %111 : vector<2x32xf32>
    %113 = vector.extract_strided_slice %98 {offsets = [0, 96], sizes = [2, 32], strides = [1, 1]} : vector<2x128xf32> to vector<2x32xf32>
    %114 = arith.negf %113 : vector<2x32xf32>
    %115 = math.exp %114 : vector<2x32xf32>
    %cst_30 = arith.constant 1.000000e+00 : f32
    %116 = vector.broadcast %cst_30 : f32 to vector<2x32xf32>
    %117 = arith.addf %116, %115 : vector<2x32xf32>
    %118 = arith.divf %116, %117 : vector<2x32xf32>
    %119 = arith.mulf %110, %92 : vector<2x32xf32>
    %120 = arith.mulf %104, %112 : vector<2x32xf32>
    %121 = arith.addf %119, %120 : vector<2x32xf32>
    %122 = math.tanh %121 : vector<2x32xf32>
    %123 = arith.mulf %118, %122 : vector<2x32xf32>
    %c6 = arith.constant 6 : index
    %c0_31 = arith.constant 0 : index
    %124 = vector.load %arg29[%c6, %c0_31] : memref<16x32xf32, #tpu.memory_space<vmem>>, vector<2x32xf32>
    tpu.vector_store %arg29[%c6, %c0_31], %123 {strides = array<i32>} : memref<16x32xf32, #tpu.memory_space<vmem>>, vector<2x32xf32>,
    %125 = vector.extract_strided_slice %5 {offsets = [8, 0], sizes = [2, 128], strides = [1, 1]} : vector<16x128xf32> to vector<2x128xf32>
    %cst_32 = arith.constant dense<0.000000e+00> : vector<2x128xf32>
    %126 = tpu.matmul %123, %6, %cst_32 {dimension_numbers = #tpu.dot_dimension_numbers<[1], [0], [0], [1], [0, 0, 1, 1], [], []>} : vector<2x32xf32>, vector<32x128xf32>, vector<2x128xf32> -> vector<2x128xf32>
    %127 = arith.addf %125, %126 : vector<2x128xf32>
    %128 = vector.extract_strided_slice %127 {offsets = [0, 0], sizes = [2, 32], strides = [1, 1]} : vector<2x128xf32> to vector<2x32xf32>
    %129 = arith.negf %128 : vector<2x32xf32>
    %130 = math.exp %129 : vector<2x32xf32>
    %cst_33 = arith.constant 1.000000e+00 : f32
    %131 = vector.broadcast %cst_33 : f32 to vector<2x32xf32>
    %132 = arith.addf %131, %130 : vector<2x32xf32>
    %133 = arith.divf %131, %132 : vector<2x32xf32>
    %134 = vector.extract_strided_slice %127 {offsets = [0, 32], sizes = [2, 32], strides = [1, 1]} : vector<2x128xf32> to vector<2x32xf32>
    %135 = arith.negf %134 : vector<2x32xf32>
    %136 = math.exp %135 : vector<2x32xf32>
    %cst_34 = arith.constant 1.000000e+00 : f32
    %137 = vector.broadcast %cst_34 : f32 to vector<2x32xf32>
    %138 = arith.addf %137, %136 : vector<2x32xf32>
    %139 = arith.divf %137, %138 : vector<2x32xf32>
    %140 = vector.extract_strided_slice %127 {offsets = [0, 64], sizes = [2, 32], strides = [1, 1]} : vector<2x128xf32> to vector<2x32xf32>
    %141 = math.tanh %140 : vector<2x32xf32>
    %142 = vector.extract_strided_slice %127 {offsets = [0, 96], sizes = [2, 32], strides = [1, 1]} : vector<2x128xf32> to vector<2x32xf32>
    %143 = arith.negf %142 : vector<2x32xf32>
    %144 = math.exp %143 : vector<2x32xf32>
    %cst_35 = arith.constant 1.000000e+00 : f32
    %145 = vector.broadcast %cst_35 : f32 to vector<2x32xf32>
    %146 = arith.addf %145, %144 : vector<2x32xf32>
    %147 = arith.divf %145, %146 : vector<2x32xf32>
    %148 = arith.mulf %139, %121 : vector<2x32xf32>
    %149 = arith.mulf %133, %141 : vector<2x32xf32>
    %150 = arith.addf %148, %149 : vector<2x32xf32>
    %151 = math.tanh %150 : vector<2x32xf32>
    %152 = arith.mulf %147, %151 : vector<2x32xf32>
    %c8 = arith.constant 8 : index
    %c0_36 = arith.constant 0 : index
    %153 = vector.load %arg29[%c8, %c0_36] : memref<16x32xf32, #tpu.memory_space<vmem>>, vector<2x32xf32>
    tpu.vector_store %arg29[%c8, %c0_36], %152 {strides = array<i32>} : memref<16x32xf32, #tpu.memory_space<vmem>>, vector<2x32xf32>,
    %154 = vector.extract_strided_slice %5 {offsets = [10, 0], sizes = [2, 128], strides = [1, 1]} : vector<16x128xf32> to vector<2x128xf32>
    %cst_37 = arith.constant dense<0.000000e+00> : vector<2x128xf32>
    %155 = tpu.matmul %152, %6, %cst_37 {dimension_numbers = #tpu.dot_dimension_numbers<[1], [0], [0], [1], [0, 0, 1, 1], [], []>} : vector<2x32xf32>, vector<32x128xf32>, vector<2x128xf32> -> vector<2x128xf32>
    %156 = arith.addf %154, %155 : vector<2x128xf32>
    %157 = vector.extract_strided_slice %156 {offsets = [0, 0], sizes = [2, 32], strides = [1, 1]} : vector<2x128xf32> to vector<2x32xf32>
    %158 = arith.negf %157 : vector<2x32xf32>
    %159 = math.exp %158 : vector<2x32xf32>
    %cst_38 = arith.constant 1.000000e+00 : f32
    %160 = vector.broadcast %cst_38 : f32 to vector<2x32xf32>
    %161 = arith.addf %160, %159 : vector<2x32xf32>
    %162 = arith.divf %160, %161 : vector<2x32xf32>
    %163 = vector.extract_strided_slice %156 {offsets = [0, 32], sizes = [2, 32], strides = [1, 1]} : vector<2x128xf32> to vector<2x32xf32>
    %164 = arith.negf %163 : vector<2x32xf32>
    %165 = math.exp %164 : vector<2x32xf32>
    %cst_39 = arith.constant 1.000000e+00 : f32
    %166 = vector.broadcast %cst_39 : f32 to vector<2x32xf32>
    %167 = arith.addf %166, %165 : vector<2x32xf32>
    %168 = arith.divf %166, %167 : vector<2x32xf32>
    %169 = vector.extract_strided_slice %156 {offsets = [0, 64], sizes = [2, 32], strides = [1, 1]} : vector<2x128xf32> to vector<2x32xf32>
    %170 = math.tanh %169 : vector<2x32xf32>
    %171 = vector.extract_strided_slice %156 {offsets = [0, 96], sizes = [2, 32], strides = [1, 1]} : vector<2x128xf32> to vector<2x32xf32>
    %172 = arith.negf %171 : vector<2x32xf32>
    %173 = math.exp %172 : vector<2x32xf32>
    %cst_40 = arith.constant 1.000000e+00 : f32
    %174 = vector.broadcast %cst_40 : f32 to vector<2x32xf32>
    %175 = arith.addf %174, %173 : vector<2x32xf32>
    %176 = arith.divf %174, %175 : vector<2x32xf32>
    %177 = arith.mulf %168, %150 : vector<2x32xf32>
    %178 = arith.mulf %162, %170 : vector<2x32xf32>
    %179 = arith.addf %177, %178 : vector<2x32xf32>
    %180 = math.tanh %179 : vector<2x32xf32>
    %181 = arith.mulf %176, %180 : vector<2x32xf32>
    %c10 = arith.constant 10 : index
    %c0_41 = arith.constant 0 : index
    %182 = vector.load %arg29[%c10, %c0_41] : memref<16x32xf32, #tpu.memory_space<vmem>>, vector<2x32xf32>
    tpu.vector_store %arg29[%c10, %c0_41], %181 {strides = array<i32>} : memref<16x32xf32, #tpu.memory_space<vmem>>, vector<2x32xf32>,
    %183 = vector.extract_strided_slice %5 {offsets = [12, 0], sizes = [2, 128], strides = [1, 1]} : vector<16x128xf32> to vector<2x128xf32>
    %cst_42 = arith.constant dense<0.000000e+00> : vector<2x128xf32>
    %184 = tpu.matmul %181, %6, %cst_42 {dimension_numbers = #tpu.dot_dimension_numbers<[1], [0], [0], [1], [0, 0, 1, 1], [], []>} : vector<2x32xf32>, vector<32x128xf32>, vector<2x128xf32> -> vector<2x128xf32>
    %185 = arith.addf %183, %184 : vector<2x128xf32>
    %186 = vector.extract_strided_slice %185 {offsets = [0, 0], sizes = [2, 32], strides = [1, 1]} : vector<2x128xf32> to vector<2x32xf32>
    %187 = arith.negf %186 : vector<2x32xf32>
    %188 = math.exp %187 : vector<2x32xf32>
    %cst_43 = arith.constant 1.000000e+00 : f32
    %189 = vector.broadcast %cst_43 : f32 to vector<2x32xf32>
    %190 = arith.addf %189, %188 : vector<2x32xf32>
    %191 = arith.divf %189, %190 : vector<2x32xf32>
    %192 = vector.extract_strided_slice %185 {offsets = [0, 32], sizes = [2, 32], strides = [1, 1]} : vector<2x128xf32> to vector<2x32xf32>
    %193 = arith.negf %192 : vector<2x32xf32>
    %194 = math.exp %193 : vector<2x32xf32>
    %cst_44 = arith.constant 1.000000e+00 : f32
    %195 = vector.broadcast %cst_44 : f32 to vector<2x32xf32>
    %196 = arith.addf %195, %194 : vector<2x32xf32>
    %197 = arith.divf %195, %196 : vector<2x32xf32>
    %198 = vector.extract_strided_slice %185 {offsets = [0, 64], sizes = [2, 32], strides = [1, 1]} : vector<2x128xf32> to vector<2x32xf32>
    %199 = math.tanh %198 : vector<2x32xf32>
    %200 = vector.extract_strided_slice %185 {offsets = [0, 96], sizes = [2, 32], strides = [1, 1]} : vector<2x128xf32> to vector<2x32xf32>
    %201 = arith.negf %200 : vector<2x32xf32>
    %202 = math.exp %201 : vector<2x32xf32>
    %cst_45 = arith.constant 1.000000e+00 : f32
    %203 = vector.broadcast %cst_45 : f32 to vector<2x32xf32>
    %204 = arith.addf %203, %202 : vector<2x32xf32>
    %205 = arith.divf %203, %204 : vector<2x32xf32>
    %206 = arith.mulf %197, %179 : vector<2x32xf32>
    %207 = arith.mulf %191, %199 : vector<2x32xf32>
    %208 = arith.addf %206, %207 : vector<2x32xf32>
    %209 = math.tanh %208 : vector<2x32xf32>
    %210 = arith.mulf %205, %209 : vector<2x32xf32>
    %c12 = arith.constant 12 : index
    %c0_46 = arith.constant 0 : index
    %211 = vector.load %arg29[%c12, %c0_46] : memref<16x32xf32, #tpu.memory_space<vmem>>, vector<2x32xf32>
    tpu.vector_store %arg29[%c12, %c0_46], %210 {strides = array<i32>} : memref<16x32xf32, #tpu.memory_space<vmem>>, vector<2x32xf32>,
    %212 = vector.extract_strided_slice %5 {offsets = [14, 0], sizes = [2, 128], strides = [1, 1]} : vector<16x128xf32> to vector<2x128xf32>
    %cst_47 = arith.constant dense<0.000000e+00> : vector<2x128xf32>
    %213 = tpu.matmul %210, %6, %cst_47 {dimension_numbers = #tpu.dot_dimension_numbers<[1], [0], [0], [1], [0, 0, 1, 1], [], []>} : vector<2x32xf32>, vector<32x128xf32>, vector<2x128xf32> -> vector<2x128xf32>
    %214 = arith.addf %212, %213 : vector<2x128xf32>
    %215 = vector.extract_strided_slice %214 {offsets = [0, 0], sizes = [2, 32], strides = [1, 1]} : vector<2x128xf32> to vector<2x32xf32>
    %216 = arith.negf %215 : vector<2x32xf32>
    %217 = math.exp %216 : vector<2x32xf32>
    %cst_48 = arith.constant 1.000000e+00 : f32
    %218 = vector.broadcast %cst_48 : f32 to vector<2x32xf32>
    %219 = arith.addf %218, %217 : vector<2x32xf32>
    %220 = arith.divf %218, %219 : vector<2x32xf32>
    %221 = vector.extract_strided_slice %214 {offsets = [0, 32], sizes = [2, 32], strides = [1, 1]} : vector<2x128xf32> to vector<2x32xf32>
    %222 = arith.negf %221 : vector<2x32xf32>
    %223 = math.exp %222 : vector<2x32xf32>
    %cst_49 = arith.constant 1.000000e+00 : f32
    %224 = vector.broadcast %cst_49 : f32 to vector<2x32xf32>
    %225 = arith.addf %224, %223 : vector<2x32xf32>
    %226 = arith.divf %224, %225 : vector<2x32xf32>
    %227 = vector.extract_strided_slice %214 {offsets = [0, 64], sizes = [2, 32], strides = [1, 1]} : vector<2x128xf32> to vector<2x32xf32>
    %228 = math.tanh %227 : vector<2x32xf32>
    %229 = vector.extract_strided_slice %214 {offsets = [0, 96], sizes = [2, 32], strides = [1, 1]} : vector<2x128xf32> to vector<2x32xf32>
    %230 = arith.negf %229 : vector<2x32xf32>
    %231 = math.exp %230 : vector<2x32xf32>
    %cst_50 = arith.constant 1.000000e+00 : f32
    %232 = vector.broadcast %cst_50 : f32 to vector<2x32xf32>
    %233 = arith.addf %232, %231 : vector<2x32xf32>
    %234 = arith.divf %232, %233 : vector<2x32xf32>
    %235 = arith.mulf %226, %208 : vector<2x32xf32>
    %236 = arith.mulf %220, %228 : vector<2x32xf32>
    %237 = arith.addf %235, %236 : vector<2x32xf32>
    %238 = math.tanh %237 : vector<2x32xf32>
    %239 = arith.mulf %234, %238 : vector<2x32xf32>
    %c14 = arith.constant 14 : index
    %c0_51 = arith.constant 0 : index
    %240 = vector.load %arg29[%c14, %c0_51] : memref<16x32xf32, #tpu.memory_space<vmem>>, vector<2x32xf32>
    tpu.vector_store %arg29[%c14, %c0_51], %239 {strides = array<i32>} : memref<16x32xf32, #tpu.memory_space<vmem>>, vector<2x32xf32>,
    %c0_52 = arith.constant 0 : index
    %c0_53 = arith.constant 0 : index
    %241 = vector.load %arg29[%c0_52, %c0_53] : memref<16x32xf32, #tpu.memory_space<vmem>>, vector<16x32xf32>
    %c0_54 = arith.constant 0 : index
    %c0_55 = arith.constant 0 : index
    %242 = vector.load %arg4[%c0_54, %c0_55] : memref<8x128xf32, #tpu.memory_space<vmem>>, vector<8x128xf32>
    %cst_56 = arith.constant dense<0.000000e+00> : vector<16x128xf32>
    %243 = tpu.matmul %0, %242, %cst_56 {dimension_numbers = #tpu.dot_dimension_numbers<[1], [0], [0], [1], [0, 0, 1, 1], [], []>} : vector<16x8xf32>, vector<8x128xf32>, vector<16x128xf32> -> vector<16x128xf32>
    %c0_57 = arith.constant 0 : index
    %c0_58 = arith.constant 0 : index
    %244 = vector.load %arg5[%c0_57, %c0_58] : memref<32x128xf32, #tpu.memory_space<vmem>>, vector<32x128xf32>
    %cst_59 = arith.constant dense<0.000000e+00> : vector<16x128xf32>
    %245 = tpu.matmul %241, %244, %cst_59 {dimension_numbers = #tpu.dot_dimension_numbers<[1], [0], [0], [1], [0, 0, 1, 1], [], []>} : vector<16x32xf32>, vector<32x128xf32>, vector<16x128xf32> -> vector<16x128xf32>
    %246 = arith.addf %243, %245 : vector<16x128xf32>
    %c0_60 = arith.constant 0 : index
    %c0_61 = arith.constant 0 : index
    %247 = vector.load %arg7[%c0_60, %c0_61] : memref<1x128xf32, #tpu.memory_space<vmem>>, vector<1x128xf32>
    %248 = vector.broadcast %247 : vector<1x128xf32> to vector<16x128xf32>
    %249 = arith.addf %246, %248 : vector<16x128xf32>
    %c0_62 = arith.constant 0 : index
    %c0_63 = arith.constant 0 : index
    %250 = vector.load %arg6[%c0_62, %c0_63] : memref<32x128xf32, #tpu.memory_space<vmem>>, vector<32x128xf32>
    %c0_64 = arith.constant 0 : index
    %c0_65 = arith.constant 0 : index
    %251 = vector.load %arg18[%c0_64, %c0_65] : memref<2x32xf32, #tpu.memory_space<vmem>>, vector<2x32xf32>
    %c0_66 = arith.constant 0 : index
    %c0_67 = arith.constant 0 : index
    %252 = vector.load %arg19[%c0_66, %c0_67] : memref<2x32xf32, #tpu.memory_space<vmem>>, vector<2x32xf32>
    %253 = vector.extract_strided_slice %249 {offsets = [0, 0], sizes = [2, 128], strides = [1, 1]} : vector<16x128xf32> to vector<2x128xf32>
    %cst_68 = arith.constant dense<0.000000e+00> : vector<2x128xf32>
    %254 = tpu.matmul %251, %250, %cst_68 {dimension_numbers = #tpu.dot_dimension_numbers<[1], [0], [0], [1], [0, 0, 1, 1], [], []>} : vector<2x32xf32>, vector<32x128xf32>, vector<2x128xf32> -> vector<2x128xf32>
    %255 = arith.addf %253, %254 : vector<2x128xf32>
    %256 = vector.extract_strided_slice %255 {offsets = [0, 0], sizes = [2, 32], strides = [1, 1]} : vector<2x128xf32> to vector<2x32xf32>
    %257 = arith.negf %256 : vector<2x32xf32>
    %258 = math.exp %257 : vector<2x32xf32>
    %cst_69 = arith.constant 1.000000e+00 : f32
    %259 = vector.broadcast %cst_69 : f32 to vector<2x32xf32>
    %260 = arith.addf %259, %258 : vector<2x32xf32>
    %261 = arith.divf %259, %260 : vector<2x32xf32>
    %262 = vector.extract_strided_slice %255 {offsets = [0, 32], sizes = [2, 32], strides = [1, 1]} : vector<2x128xf32> to vector<2x32xf32>
    %263 = arith.negf %262 : vector<2x32xf32>
    %264 = math.exp %263 : vector<2x32xf32>
    %cst_70 = arith.constant 1.000000e+00 : f32
    %265 = vector.broadcast %cst_70 : f32 to vector<2x32xf32>
    %266 = arith.addf %265, %264 : vector<2x32xf32>
    %267 = arith.divf %265, %266 : vector<2x32xf32>
    %268 = vector.extract_strided_slice %255 {offsets = [0, 64], sizes = [2, 32], strides = [1, 1]} : vector<2x128xf32> to vector<2x32xf32>
    %269 = math.tanh %268 : vector<2x32xf32>
    %270 = vector.extract_strided_slice %255 {offsets = [0, 96], sizes = [2, 32], strides = [1, 1]} : vector<2x128xf32> to vector<2x32xf32>
    %271 = arith.negf %270 : vector<2x32xf32>
    %272 = math.exp %271 : vector<2x32xf32>
    %cst_71 = arith.constant 1.000000e+00 : f32
    %273 = vector.broadcast %cst_71 : f32 to vector<2x32xf32>
    %274 = arith.addf %273, %272 : vector<2x32xf32>
    %275 = arith.divf %273, %274 : vector<2x32xf32>
    %276 = arith.mulf %267, %252 : vector<2x32xf32>
    %277 = arith.mulf %261, %269 : vector<2x32xf32>
    %278 = arith.addf %276, %277 : vector<2x32xf32>
    %279 = math.tanh %278 : vector<2x32xf32>
    %280 = arith.mulf %275, %279 : vector<2x32xf32>
    %c0_72 = arith.constant 0 : index
    %c0_73 = arith.constant 0 : index
    %281 = vector.load %arg30[%c0_72, %c0_73] : memref<16x32xf32, #tpu.memory_space<vmem>>, vector<2x32xf32>
    tpu.vector_store %arg30[%c0_72, %c0_73], %280 {strides = array<i32>} : memref<16x32xf32, #tpu.memory_space<vmem>>, vector<2x32xf32>,
    %282 = vector.extract_strided_slice %249 {offsets = [2, 0], sizes = [2, 128], strides = [1, 1]} : vector<16x128xf32> to vector<2x128xf32>
    %cst_74 = arith.constant dense<0.000000e+00> : vector<2x128xf32>
    %283 = tpu.matmul %280, %250, %cst_74 {dimension_numbers = #tpu.dot_dimension_numbers<[1], [0], [0], [1], [0, 0, 1, 1], [], []>} : vector<2x32xf32>, vector<32x128xf32>, vector<2x128xf32> -> vector<2x128xf32>
    %284 = arith.addf %282, %283 : vector<2x128xf32>
    %285 = vector.extract_strided_slice %284 {offsets = [0, 0], sizes = [2, 32], strides = [1, 1]} : vector<2x128xf32> to vector<2x32xf32>
    %286 = arith.negf %285 : vector<2x32xf32>
    %287 = math.exp %286 : vector<2x32xf32>
    %cst_75 = arith.constant 1.000000e+00 : f32
    %288 = vector.broadcast %cst_75 : f32 to vector<2x32xf32>
    %289 = arith.addf %288, %287 : vector<2x32xf32>
    %290 = arith.divf %288, %289 : vector<2x32xf32>
    %291 = vector.extract_strided_slice %284 {offsets = [0, 32], sizes = [2, 32], strides = [1, 1]} : vector<2x128xf32> to vector<2x32xf32>
    %292 = arith.negf %291 : vector<2x32xf32>
    %293 = math.exp %292 : vector<2x32xf32>
    %cst_76 = arith.constant 1.000000e+00 : f32
    %294 = vector.broadcast %cst_76 : f32 to vector<2x32xf32>
    %295 = arith.addf %294, %293 : vector<2x32xf32>
    %296 = arith.divf %294, %295 : vector<2x32xf32>
    %297 = vector.extract_strided_slice %284 {offsets = [0, 64], sizes = [2, 32], strides = [1, 1]} : vector<2x128xf32> to vector<2x32xf32>
    %298 = math.tanh %297 : vector<2x32xf32>
    %299 = vector.extract_strided_slice %284 {offsets = [0, 96], sizes = [2, 32], strides = [1, 1]} : vector<2x128xf32> to vector<2x32xf32>
    %300 = arith.negf %299 : vector<2x32xf32>
    %301 = math.exp %300 : vector<2x32xf32>
    %cst_77 = arith.constant 1.000000e+00 : f32
    %302 = vector.broadcast %cst_77 : f32 to vector<2x32xf32>
    %303 = arith.addf %302, %301 : vector<2x32xf32>
    %304 = arith.divf %302, %303 : vector<2x32xf32>
    %305 = arith.mulf %296, %278 : vector<2x32xf32>
    %306 = arith.mulf %290, %298 : vector<2x32xf32>
    %307 = arith.addf %305, %306 : vector<2x32xf32>
    %308 = math.tanh %307 : vector<2x32xf32>
    %309 = arith.mulf %304, %308 : vector<2x32xf32>
    %c2_78 = arith.constant 2 : index
    %c0_79 = arith.constant 0 : index
    %310 = vector.load %arg30[%c2_78, %c0_79] : memref<16x32xf32, #tpu.memory_space<vmem>>, vector<2x32xf32>
    tpu.vector_store %arg30[%c2_78, %c0_79], %309 {strides = array<i32>} : memref<16x32xf32, #tpu.memory_space<vmem>>, vector<2x32xf32>,
    %311 = vector.extract_strided_slice %249 {offsets = [4, 0], sizes = [2, 128], strides = [1, 1]} : vector<16x128xf32> to vector<2x128xf32>
    %cst_80 = arith.constant dense<0.000000e+00> : vector<2x128xf32>
    %312 = tpu.matmul %309, %250, %cst_80 {dimension_numbers = #tpu.dot_dimension_numbers<[1], [0], [0], [1], [0, 0, 1, 1], [], []>} : vector<2x32xf32>, vector<32x128xf32>, vector<2x128xf32> -> vector<2x128xf32>
    %313 = arith.addf %311, %312 : vector<2x128xf32>
    %314 = vector.extract_strided_slice %313 {offsets = [0, 0], sizes = [2, 32], strides = [1, 1]} : vector<2x128xf32> to vector<2x32xf32>
    %315 = arith.negf %314 : vector<2x32xf32>
    %316 = math.exp %315 : vector<2x32xf32>
    %cst_81 = arith.constant 1.000000e+00 : f32
    %317 = vector.broadcast %cst_81 : f32 to vector<2x32xf32>
    %318 = arith.addf %317, %316 : vector<2x32xf32>
    %319 = arith.divf %317, %318 : vector<2x32xf32>
    %320 = vector.extract_strided_slice %313 {offsets = [0, 32], sizes = [2, 32], strides = [1, 1]} : vector<2x128xf32> to vector<2x32xf32>
    %321 = arith.negf %320 : vector<2x32xf32>
    %322 = math.exp %321 : vector<2x32xf32>
    %cst_82 = arith.constant 1.000000e+00 : f32
    %323 = vector.broadcast %cst_82 : f32 to vector<2x32xf32>
    %324 = arith.addf %323, %322 : vector<2x32xf32>
    %325 = arith.divf %323, %324 : vector<2x32xf32>
    %326 = vector.extract_strided_slice %313 {offsets = [0, 64], sizes = [2, 32], strides = [1, 1]} : vector<2x128xf32> to vector<2x32xf32>
    %327 = math.tanh %326 : vector<2x32xf32>
    %328 = vector.extract_strided_slice %313 {offsets = [0, 96], sizes = [2, 32], strides = [1, 1]} : vector<2x128xf32> to vector<2x32xf32>
    %329 = arith.negf %328 : vector<2x32xf32>
    %330 = math.exp %329 : vector<2x32xf32>
    %cst_83 = arith.constant 1.000000e+00 : f32
    %331 = vector.broadcast %cst_83 : f32 to vector<2x32xf32>
    %332 = arith.addf %331, %330 : vector<2x32xf32>
    %333 = arith.divf %331, %332 : vector<2x32xf32>
    %334 = arith.mulf %325, %307 : vector<2x32xf32>
    %335 = arith.mulf %319, %327 : vector<2x32xf32>
    %336 = arith.addf %334, %335 : vector<2x32xf32>
    %337 = math.tanh %336 : vector<2x32xf32>
    %338 = arith.mulf %333, %337 : vector<2x32xf32>
    %c4_84 = arith.constant 4 : index
    %c0_85 = arith.constant 0 : index
    %339 = vector.load %arg30[%c4_84, %c0_85] : memref<16x32xf32, #tpu.memory_space<vmem>>, vector<2x32xf32>
    tpu.vector_store %arg30[%c4_84, %c0_85], %338 {strides = array<i32>} : memref<16x32xf32, #tpu.memory_space<vmem>>, vector<2x32xf32>,
    %340 = vector.extract_strided_slice %249 {offsets = [6, 0], sizes = [2, 128], strides = [1, 1]} : vector<16x128xf32> to vector<2x128xf32>
    %cst_86 = arith.constant dense<0.000000e+00> : vector<2x128xf32>
    %341 = tpu.matmul %338, %250, %cst_86 {dimension_numbers = #tpu.dot_dimension_numbers<[1], [0], [0], [1], [0, 0, 1, 1], [], []>} : vector<2x32xf32>, vector<32x128xf32>, vector<2x128xf32> -> vector<2x128xf32>
    %342 = arith.addf %340, %341 : vector<2x128xf32>
    %343 = vector.extract_strided_slice %342 {offsets = [0, 0], sizes = [2, 32], strides = [1, 1]} : vector<2x128xf32> to vector<2x32xf32>
    %344 = arith.negf %343 : vector<2x32xf32>
    %345 = math.exp %344 : vector<2x32xf32>
    %cst_87 = arith.constant 1.000000e+00 : f32
    %346 = vector.broadcast %cst_87 : f32 to vector<2x32xf32>
    %347 = arith.addf %346, %345 : vector<2x32xf32>
    %348 = arith.divf %346, %347 : vector<2x32xf32>
    %349 = vector.extract_strided_slice %342 {offsets = [0, 32], sizes = [2, 32], strides = [1, 1]} : vector<2x128xf32> to vector<2x32xf32>
    %350 = arith.negf %349 : vector<2x32xf32>
    %351 = math.exp %350 : vector<2x32xf32>
    %cst_88 = arith.constant 1.000000e+00 : f32
    %352 = vector.broadcast %cst_88 : f32 to vector<2x32xf32>
    %353 = arith.addf %352, %351 : vector<2x32xf32>
    %354 = arith.divf %352, %353 : vector<2x32xf32>
    %355 = vector.extract_strided_slice %342 {offsets = [0, 64], sizes = [2, 32], strides = [1, 1]} : vector<2x128xf32> to vector<2x32xf32>
    %356 = math.tanh %355 : vector<2x32xf32>
    %357 = vector.extract_strided_slice %342 {offsets = [0, 96], sizes = [2, 32], strides = [1, 1]} : vector<2x128xf32> to vector<2x32xf32>
    %358 = arith.negf %357 : vector<2x32xf32>
    %359 = math.exp %358 : vector<2x32xf32>
    %cst_89 = arith.constant 1.000000e+00 : f32
    %360 = vector.broadcast %cst_89 : f32 to vector<2x32xf32>
    %361 = arith.addf %360, %359 : vector<2x32xf32>
    %362 = arith.divf %360, %361 : vector<2x32xf32>
    %363 = arith.mulf %354, %336 : vector<2x32xf32>
    %364 = arith.mulf %348, %356 : vector<2x32xf32>
    %365 = arith.addf %363, %364 : vector<2x32xf32>
    %366 = math.tanh %365 : vector<2x32xf32>
    %367 = arith.mulf %362, %366 : vector<2x32xf32>
    %c6_90 = arith.constant 6 : index
    %c0_91 = arith.constant 0 : index
    %368 = vector.load %arg30[%c6_90, %c0_91] : memref<16x32xf32, #tpu.memory_space<vmem>>, vector<2x32xf32>
    tpu.vector_store %arg30[%c6_90, %c0_91], %367 {strides = array<i32>} : memref<16x32xf32, #tpu.memory_space<vmem>>, vector<2x32xf32>,
    %369 = vector.extract_strided_slice %249 {offsets = [8, 0], sizes = [2, 128], strides = [1, 1]} : vector<16x128xf32> to vector<2x128xf32>
    %cst_92 = arith.constant dense<0.000000e+00> : vector<2x128xf32>
    %370 = tpu.matmul %367, %250, %cst_92 {dimension_numbers = #tpu.dot_dimension_numbers<[1], [0], [0], [1], [0, 0, 1, 1], [], []>} : vector<2x32xf32>, vector<32x128xf32>, vector<2x128xf32> -> vector<2x128xf32>
    %371 = arith.addf %369, %370 : vector<2x128xf32>
    %372 = vector.extract_strided_slice %371 {offsets = [0, 0], sizes = [2, 32], strides = [1, 1]} : vector<2x128xf32> to vector<2x32xf32>
    %373 = arith.negf %372 : vector<2x32xf32>
    %374 = math.exp %373 : vector<2x32xf32>
    %cst_93 = arith.constant 1.000000e+00 : f32
    %375 = vector.broadcast %cst_93 : f32 to vector<2x32xf32>
    %376 = arith.addf %375, %374 : vector<2x32xf32>
    %377 = arith.divf %375, %376 : vector<2x32xf32>
    %378 = vector.extract_strided_slice %371 {offsets = [0, 32], sizes = [2, 32], strides = [1, 1]} : vector<2x128xf32> to vector<2x32xf32>
    %379 = arith.negf %378 : vector<2x32xf32>
    %380 = math.exp %379 : vector<2x32xf32>
    %cst_94 = arith.constant 1.000000e+00 : f32
    %381 = vector.broadcast %cst_94 : f32 to vector<2x32xf32>
    %382 = arith.addf %381, %380 : vector<2x32xf32>
    %383 = arith.divf %381, %382 : vector<2x32xf32>
    %384 = vector.extract_strided_slice %371 {offsets = [0, 64], sizes = [2, 32], strides = [1, 1]} : vector<2x128xf32> to vector<2x32xf32>
    %385 = math.tanh %384 : vector<2x32xf32>
    %386 = vector.extract_strided_slice %371 {offsets = [0, 96], sizes = [2, 32], strides = [1, 1]} : vector<2x128xf32> to vector<2x32xf32>
    %387 = arith.negf %386 : vector<2x32xf32>
    %388 = math.exp %387 : vector<2x32xf32>
    %cst_95 = arith.constant 1.000000e+00 : f32
    %389 = vector.broadcast %cst_95 : f32 to vector<2x32xf32>
    %390 = arith.addf %389, %388 : vector<2x32xf32>
    %391 = arith.divf %389, %390 : vector<2x32xf32>
    %392 = arith.mulf %383, %365 : vector<2x32xf32>
    %393 = arith.mulf %377, %385 : vector<2x32xf32>
    %394 = arith.addf %392, %393 : vector<2x32xf32>
    %395 = math.tanh %394 : vector<2x32xf32>
    %396 = arith.mulf %391, %395 : vector<2x32xf32>
    %c8_96 = arith.constant 8 : index
    %c0_97 = arith.constant 0 : index
    %397 = vector.load %arg30[%c8_96, %c0_97] : memref<16x32xf32, #tpu.memory_space<vmem>>, vector<2x32xf32>
    tpu.vector_store %arg30[%c8_96, %c0_97], %396 {strides = array<i32>} : memref<16x32xf32, #tpu.memory_space<vmem>>, vector<2x32xf32>,
    %398 = vector.extract_strided_slice %249 {offsets = [10, 0], sizes = [2, 128], strides = [1, 1]} : vector<16x128xf32> to vector<2x128xf32>
    %cst_98 = arith.constant dense<0.000000e+00> : vector<2x128xf32>
    %399 = tpu.matmul %396, %250, %cst_98 {dimension_numbers = #tpu.dot_dimension_numbers<[1], [0], [0], [1], [0, 0, 1, 1], [], []>} : vector<2x32xf32>, vector<32x128xf32>, vector<2x128xf32> -> vector<2x128xf32>
    %400 = arith.addf %398, %399 : vector<2x128xf32>
    %401 = vector.extract_strided_slice %400 {offsets = [0, 0], sizes = [2, 32], strides = [1, 1]} : vector<2x128xf32> to vector<2x32xf32>
    %402 = arith.negf %401 : vector<2x32xf32>
    %403 = math.exp %402 : vector<2x32xf32>
    %cst_99 = arith.constant 1.000000e+00 : f32
    %404 = vector.broadcast %cst_99 : f32 to vector<2x32xf32>
    %405 = arith.addf %404, %403 : vector<2x32xf32>
    %406 = arith.divf %404, %405 : vector<2x32xf32>
    %407 = vector.extract_strided_slice %400 {offsets = [0, 32], sizes = [2, 32], strides = [1, 1]} : vector<2x128xf32> to vector<2x32xf32>
    %408 = arith.negf %407 : vector<2x32xf32>
    %409 = math.exp %408 : vector<2x32xf32>
    %cst_100 = arith.constant 1.000000e+00 : f32
    %410 = vector.broadcast %cst_100 : f32 to vector<2x32xf32>
    %411 = arith.addf %410, %409 : vector<2x32xf32>
    %412 = arith.divf %410, %411 : vector<2x32xf32>
    %413 = vector.extract_strided_slice %400 {offsets = [0, 64], sizes = [2, 32], strides = [1, 1]} : vector<2x128xf32> to vector<2x32xf32>
    %414 = math.tanh %413 : vector<2x32xf32>
    %415 = vector.extract_strided_slice %400 {offsets = [0, 96], sizes = [2, 32], strides = [1, 1]} : vector<2x128xf32> to vector<2x32xf32>
    %416 = arith.negf %415 : vector<2x32xf32>
    %417 = math.exp %416 : vector<2x32xf32>
    %cst_101 = arith.constant 1.000000e+00 : f32
    %418 = vector.broadcast %cst_101 : f32 to vector<2x32xf32>
    %419 = arith.addf %418, %417 : vector<2x32xf32>
    %420 = arith.divf %418, %419 : vector<2x32xf32>
    %421 = arith.mulf %412, %394 : vector<2x32xf32>
    %422 = arith.mulf %406, %414 : vector<2x32xf32>
    %423 = arith.addf %421, %422 : vector<2x32xf32>
    %424 = math.tanh %423 : vector<2x32xf32>
    %425 = arith.mulf %420, %424 : vector<2x32xf32>
    %c10_102 = arith.constant 10 : index
    %c0_103 = arith.constant 0 : index
    %426 = vector.load %arg30[%c10_102, %c0_103] : memref<16x32xf32, #tpu.memory_space<vmem>>, vector<2x32xf32>
    tpu.vector_store %arg30[%c10_102, %c0_103], %425 {strides = array<i32>} : memref<16x32xf32, #tpu.memory_space<vmem>>, vector<2x32xf32>,
    %427 = vector.extract_strided_slice %249 {offsets = [12, 0], sizes = [2, 128], strides = [1, 1]} : vector<16x128xf32> to vector<2x128xf32>
    %cst_104 = arith.constant dense<0.000000e+00> : vector<2x128xf32>
    %428 = tpu.matmul %425, %250, %cst_104 {dimension_numbers = #tpu.dot_dimension_numbers<[1], [0], [0], [1], [0, 0, 1, 1], [], []>} : vector<2x32xf32>, vector<32x128xf32>, vector<2x128xf32> -> vector<2x128xf32>
    %429 = arith.addf %427, %428 : vector<2x128xf32>
    %430 = vector.extract_strided_slice %429 {offsets = [0, 0], sizes = [2, 32], strides = [1, 1]} : vector<2x128xf32> to vector<2x32xf32>
    %431 = arith.negf %430 : vector<2x32xf32>
    %432 = math.exp %431 : vector<2x32xf32>
    %cst_105 = arith.constant 1.000000e+00 : f32
    %433 = vector.broadcast %cst_105 : f32 to vector<2x32xf32>
    %434 = arith.addf %433, %432 : vector<2x32xf32>
    %435 = arith.divf %433, %434 : vector<2x32xf32>
    %436 = vector.extract_strided_slice %429 {offsets = [0, 32], sizes = [2, 32], strides = [1, 1]} : vector<2x128xf32> to vector<2x32xf32>
    %437 = arith.negf %436 : vector<2x32xf32>
    %438 = math.exp %437 : vector<2x32xf32>
    %cst_106 = arith.constant 1.000000e+00 : f32
    %439 = vector.broadcast %cst_106 : f32 to vector<2x32xf32>
    %440 = arith.addf %439, %438 : vector<2x32xf32>
    %441 = arith.divf %439, %440 : vector<2x32xf32>
    %442 = vector.extract_strided_slice %429 {offsets = [0, 64], sizes = [2, 32], strides = [1, 1]} : vector<2x128xf32> to vector<2x32xf32>
    %443 = math.tanh %442 : vector<2x32xf32>
    %444 = vector.extract_strided_slice %429 {offsets = [0, 96], sizes = [2, 32], strides = [1, 1]} : vector<2x128xf32> to vector<2x32xf32>
    %445 = arith.negf %444 : vector<2x32xf32>
    %446 = math.exp %445 : vector<2x32xf32>
    %cst_107 = arith.constant 1.000000e+00 : f32
    %447 = vector.broadcast %cst_107 : f32 to vector<2x32xf32>
    %448 = arith.addf %447, %446 : vector<2x32xf32>
    %449 = arith.divf %447, %448 : vector<2x32xf32>
    %450 = arith.mulf %441, %423 : vector<2x32xf32>
    %451 = arith.mulf %435, %443 : vector<2x32xf32>
    %452 = arith.addf %450, %451 : vector<2x32xf32>
    %453 = math.tanh %452 : vector<2x32xf32>
    %454 = arith.mulf %449, %453 : vector<2x32xf32>
    %c12_108 = arith.constant 12 : index
    %c0_109 = arith.constant 0 : index
    %455 = vector.load %arg30[%c12_108, %c0_109] : memref<16x32xf32, #tpu.memory_space<vmem>>, vector<2x32xf32>
    tpu.vector_store %arg30[%c12_108, %c0_109], %454 {strides = array<i32>} : memref<16x32xf32, #tpu.memory_space<vmem>>, vector<2x32xf32>,
    %456 = vector.extract_strided_slice %249 {offsets = [14, 0], sizes = [2, 128], strides = [1, 1]} : vector<16x128xf32> to vector<2x128xf32>
    %cst_110 = arith.constant dense<0.000000e+00> : vector<2x128xf32>
    %457 = tpu.matmul %454, %250, %cst_110 {dimension_numbers = #tpu.dot_dimension_numbers<[1], [0], [0], [1], [0, 0, 1, 1], [], []>} : vector<2x32xf32>, vector<32x128xf32>, vector<2x128xf32> -> vector<2x128xf32>
    %458 = arith.addf %456, %457 : vector<2x128xf32>
    %459 = vector.extract_strided_slice %458 {offsets = [0, 0], sizes = [2, 32], strides = [1, 1]} : vector<2x128xf32> to vector<2x32xf32>
    %460 = arith.negf %459 : vector<2x32xf32>
    %461 = math.exp %460 : vector<2x32xf32>
    %cst_111 = arith.constant 1.000000e+00 : f32
    %462 = vector.broadcast %cst_111 : f32 to vector<2x32xf32>
    %463 = arith.addf %462, %461 : vector<2x32xf32>
    %464 = arith.divf %462, %463 : vector<2x32xf32>
    %465 = vector.extract_strided_slice %458 {offsets = [0, 32], sizes = [2, 32], strides = [1, 1]} : vector<2x128xf32> to vector<2x32xf32>
    %466 = arith.negf %465 : vector<2x32xf32>
    %467 = math.exp %466 : vector<2x32xf32>
    %cst_112 = arith.constant 1.000000e+00 : f32
    %468 = vector.broadcast %cst_112 : f32 to vector<2x32xf32>
    %469 = arith.addf %468, %467 : vector<2x32xf32>
    %470 = arith.divf %468, %469 : vector<2x32xf32>
    %471 = vector.extract_strided_slice %458 {offsets = [0, 64], sizes = [2, 32], strides = [1, 1]} : vector<2x128xf32> to vector<2x32xf32>
    %472 = math.tanh %471 : vector<2x32xf32>
    %473 = vector.extract_strided_slice %458 {offsets = [0, 96], sizes = [2, 32], strides = [1, 1]} : vector<2x128xf32> to vector<2x32xf32>
    %474 = arith.negf %473 : vector<2x32xf32>
    %475 = math.exp %474 : vector<2x32xf32>
    %cst_113 = arith.constant 1.000000e+00 : f32
    %476 = vector.broadcast %cst_113 : f32 to vector<2x32xf32>
    %477 = arith.addf %476, %475 : vector<2x32xf32>
    %478 = arith.divf %476, %477 : vector<2x32xf32>
    %479 = arith.mulf %470, %452 : vector<2x32xf32>
    %480 = arith.mulf %464, %472 : vector<2x32xf32>
    %481 = arith.addf %479, %480 : vector<2x32xf32>
    %482 = math.tanh %481 : vector<2x32xf32>
    %483 = arith.mulf %478, %482 : vector<2x32xf32>
    %c14_114 = arith.constant 14 : index
    %c0_115 = arith.constant 0 : index
    %484 = vector.load %arg30[%c14_114, %c0_115] : memref<16x32xf32, #tpu.memory_space<vmem>>, vector<2x32xf32>
    tpu.vector_store %arg30[%c14_114, %c0_115], %483 {strides = array<i32>} : memref<16x32xf32, #tpu.memory_space<vmem>>, vector<2x32xf32>,
    %c0_116 = arith.constant 0 : index
    %c0_117 = arith.constant 0 : index
    %485 = vector.load %arg30[%c0_116, %c0_117] : memref<16x32xf32, #tpu.memory_space<vmem>>, vector<16x32xf32>
    %c0_118 = arith.constant 0 : index
    %c0_119 = arith.constant 0 : index
    %486 = vector.load %arg8[%c0_118, %c0_119] : memref<8x128xf32, #tpu.memory_space<vmem>>, vector<8x128xf32>
    %cst_120 = arith.constant dense<0.000000e+00> : vector<16x128xf32>
    %487 = tpu.matmul %0, %486, %cst_120 {dimension_numbers = #tpu.dot_dimension_numbers<[1], [0], [0], [1], [0, 0, 1, 1], [], []>} : vector<16x8xf32>, vector<8x128xf32>, vector<16x128xf32> -> vector<16x128xf32>
    %c0_121 = arith.constant 0 : index
    %c0_122 = arith.constant 0 : index
    %488 = vector.load %arg9[%c0_121, %c0_122] : memref<32x128xf32, #tpu.memory_space<vmem>>, vector<32x128xf32>
    %cst_123 = arith.constant dense<0.000000e+00> : vector<16x128xf32>
    %489 = tpu.matmul %485, %488, %cst_123 {dimension_numbers = #tpu.dot_dimension_numbers<[1], [0], [0], [1], [0, 0, 1, 1], [], []>} : vector<16x32xf32>, vector<32x128xf32>, vector<16x128xf32> -> vector<16x128xf32>
    %490 = arith.addf %487, %489 : vector<16x128xf32>
    %c0_124 = arith.constant 0 : index
    %c0_125 = arith.constant 0 : index
    %491 = vector.load %arg11[%c0_124, %c0_125] : memref<1x128xf32, #tpu.memory_space<vmem>>, vector<1x128xf32>
    %492 = vector.broadcast %491 : vector<1x128xf32> to vector<16x128xf32>
    %493 = arith.addf %490, %492 : vector<16x128xf32>
    %c0_126 = arith.constant 0 : index
    %c0_127 = arith.constant 0 : index
    %494 = vector.load %arg10[%c0_126, %c0_127] : memref<32x128xf32, #tpu.memory_space<vmem>>, vector<32x128xf32>
    %c0_128 = arith.constant 0 : index
    %c0_129 = arith.constant 0 : index
    %495 = vector.load %arg20[%c0_128, %c0_129] : memref<2x32xf32, #tpu.memory_space<vmem>>, vector<2x32xf32>
    %c0_130 = arith.constant 0 : index
    %c0_131 = arith.constant 0 : index
    %496 = vector.load %arg21[%c0_130, %c0_131] : memref<2x32xf32, #tpu.memory_space<vmem>>, vector<2x32xf32>
    %497 = vector.extract_strided_slice %493 {offsets = [0, 0], sizes = [2, 128], strides = [1, 1]} : vector<16x128xf32> to vector<2x128xf32>
    %cst_132 = arith.constant dense<0.000000e+00> : vector<2x128xf32>
    %498 = tpu.matmul %495, %494, %cst_132 {dimension_numbers = #tpu.dot_dimension_numbers<[1], [0], [0], [1], [0, 0, 1, 1], [], []>} : vector<2x32xf32>, vector<32x128xf32>, vector<2x128xf32> -> vector<2x128xf32>
    %499 = arith.addf %497, %498 : vector<2x128xf32>
    %500 = vector.extract_strided_slice %499 {offsets = [0, 0], sizes = [2, 32], strides = [1, 1]} : vector<2x128xf32> to vector<2x32xf32>
    %501 = arith.negf %500 : vector<2x32xf32>
    %502 = math.exp %501 : vector<2x32xf32>
    %cst_133 = arith.constant 1.000000e+00 : f32
    %503 = vector.broadcast %cst_133 : f32 to vector<2x32xf32>
    %504 = arith.addf %503, %502 : vector<2x32xf32>
    %505 = arith.divf %503, %504 : vector<2x32xf32>
    %506 = vector.extract_strided_slice %499 {offsets = [0, 32], sizes = [2, 32], strides = [1, 1]} : vector<2x128xf32> to vector<2x32xf32>
    %507 = arith.negf %506 : vector<2x32xf32>
    %508 = math.exp %507 : vector<2x32xf32>
    %cst_134 = arith.constant 1.000000e+00 : f32
    %509 = vector.broadcast %cst_134 : f32 to vector<2x32xf32>
    %510 = arith.addf %509, %508 : vector<2x32xf32>
    %511 = arith.divf %509, %510 : vector<2x32xf32>
    %512 = vector.extract_strided_slice %499 {offsets = [0, 64], sizes = [2, 32], strides = [1, 1]} : vector<2x128xf32> to vector<2x32xf32>
    %513 = math.tanh %512 : vector<2x32xf32>
    %514 = vector.extract_strided_slice %499 {offsets = [0, 96], sizes = [2, 32], strides = [1, 1]} : vector<2x128xf32> to vector<2x32xf32>
    %515 = arith.negf %514 : vector<2x32xf32>
    %516 = math.exp %515 : vector<2x32xf32>
    %cst_135 = arith.constant 1.000000e+00 : f32
    %517 = vector.broadcast %cst_135 : f32 to vector<2x32xf32>
    %518 = arith.addf %517, %516 : vector<2x32xf32>
    %519 = arith.divf %517, %518 : vector<2x32xf32>
    %520 = arith.mulf %511, %496 : vector<2x32xf32>
    %521 = arith.mulf %505, %513 : vector<2x32xf32>
    %522 = arith.addf %520, %521 : vector<2x32xf32>
    %523 = math.tanh %522 : vector<2x32xf32>
    %524 = arith.mulf %519, %523 : vector<2x32xf32>
    %c0_136 = arith.constant 0 : index
    %c0_137 = arith.constant 0 : index
    %525 = vector.load %arg31[%c0_136, %c0_137] : memref<16x32xf32, #tpu.memory_space<vmem>>, vector<2x32xf32>
    tpu.vector_store %arg31[%c0_136, %c0_137], %524 {strides = array<i32>} : memref<16x32xf32, #tpu.memory_space<vmem>>, vector<2x32xf32>,
    %526 = vector.extract_strided_slice %493 {offsets = [2, 0], sizes = [2, 128], strides = [1, 1]} : vector<16x128xf32> to vector<2x128xf32>
    %cst_138 = arith.constant dense<0.000000e+00> : vector<2x128xf32>
    %527 = tpu.matmul %524, %494, %cst_138 {dimension_numbers = #tpu.dot_dimension_numbers<[1], [0], [0], [1], [0, 0, 1, 1], [], []>} : vector<2x32xf32>, vector<32x128xf32>, vector<2x128xf32> -> vector<2x128xf32>
    %528 = arith.addf %526, %527 : vector<2x128xf32>
    %529 = vector.extract_strided_slice %528 {offsets = [0, 0], sizes = [2, 32], strides = [1, 1]} : vector<2x128xf32> to vector<2x32xf32>
    %530 = arith.negf %529 : vector<2x32xf32>
    %531 = math.exp %530 : vector<2x32xf32>
    %cst_139 = arith.constant 1.000000e+00 : f32
    %532 = vector.broadcast %cst_139 : f32 to vector<2x32xf32>
    %533 = arith.addf %532, %531 : vector<2x32xf32>
    %534 = arith.divf %532, %533 : vector<2x32xf32>
    %535 = vector.extract_strided_slice %528 {offsets = [0, 32], sizes = [2, 32], strides = [1, 1]} : vector<2x128xf32> to vector<2x32xf32>
    %536 = arith.negf %535 : vector<2x32xf32>
    %537 = math.exp %536 : vector<2x32xf32>
    %cst_140 = arith.constant 1.000000e+00 : f32
    %538 = vector.broadcast %cst_140 : f32 to vector<2x32xf32>
    %539 = arith.addf %538, %537 : vector<2x32xf32>
    %540 = arith.divf %538, %539 : vector<2x32xf32>
    %541 = vector.extract_strided_slice %528 {offsets = [0, 64], sizes = [2, 32], strides = [1, 1]} : vector<2x128xf32> to vector<2x32xf32>
    %542 = math.tanh %541 : vector<2x32xf32>
    %543 = vector.extract_strided_slice %528 {offsets = [0, 96], sizes = [2, 32], strides = [1, 1]} : vector<2x128xf32> to vector<2x32xf32>
    %544 = arith.negf %543 : vector<2x32xf32>
    %545 = math.exp %544 : vector<2x32xf32>
    %cst_141 = arith.constant 1.000000e+00 : f32
    %546 = vector.broadcast %cst_141 : f32 to vector<2x32xf32>
    %547 = arith.addf %546, %545 : vector<2x32xf32>
    %548 = arith.divf %546, %547 : vector<2x32xf32>
    %549 = arith.mulf %540, %522 : vector<2x32xf32>
    %550 = arith.mulf %534, %542 : vector<2x32xf32>
    %551 = arith.addf %549, %550 : vector<2x32xf32>
    %552 = math.tanh %551 : vector<2x32xf32>
    %553 = arith.mulf %548, %552 : vector<2x32xf32>
    %c2_142 = arith.constant 2 : index
    %c0_143 = arith.constant 0 : index
    %554 = vector.load %arg31[%c2_142, %c0_143] : memref<16x32xf32, #tpu.memory_space<vmem>>, vector<2x32xf32>
    tpu.vector_store %arg31[%c2_142, %c0_143], %553 {strides = array<i32>} : memref<16x32xf32, #tpu.memory_space<vmem>>, vector<2x32xf32>,
    %555 = vector.extract_strided_slice %493 {offsets = [4, 0], sizes = [2, 128], strides = [1, 1]} : vector<16x128xf32> to vector<2x128xf32>
    %cst_144 = arith.constant dense<0.000000e+00> : vector<2x128xf32>
    %556 = tpu.matmul %553, %494, %cst_144 {dimension_numbers = #tpu.dot_dimension_numbers<[1], [0], [0], [1], [0, 0, 1, 1], [], []>} : vector<2x32xf32>, vector<32x128xf32>, vector<2x128xf32> -> vector<2x128xf32>
    %557 = arith.addf %555, %556 : vector<2x128xf32>
    %558 = vector.extract_strided_slice %557 {offsets = [0, 0], sizes = [2, 32], strides = [1, 1]} : vector<2x128xf32> to vector<2x32xf32>
    %559 = arith.negf %558 : vector<2x32xf32>
    %560 = math.exp %559 : vector<2x32xf32>
    %cst_145 = arith.constant 1.000000e+00 : f32
    %561 = vector.broadcast %cst_145 : f32 to vector<2x32xf32>
    %562 = arith.addf %561, %560 : vector<2x32xf32>
    %563 = arith.divf %561, %562 : vector<2x32xf32>
    %564 = vector.extract_strided_slice %557 {offsets = [0, 32], sizes = [2, 32], strides = [1, 1]} : vector<2x128xf32> to vector<2x32xf32>
    %565 = arith.negf %564 : vector<2x32xf32>
    %566 = math.exp %565 : vector<2x32xf32>
    %cst_146 = arith.constant 1.000000e+00 : f32
    %567 = vector.broadcast %cst_146 : f32 to vector<2x32xf32>
    %568 = arith.addf %567, %566 : vector<2x32xf32>
    %569 = arith.divf %567, %568 : vector<2x32xf32>
    %570 = vector.extract_strided_slice %557 {offsets = [0, 64], sizes = [2, 32], strides = [1, 1]} : vector<2x128xf32> to vector<2x32xf32>
    %571 = math.tanh %570 : vector<2x32xf32>
    %572 = vector.extract_strided_slice %557 {offsets = [0, 96], sizes = [2, 32], strides = [1, 1]} : vector<2x128xf32> to vector<2x32xf32>
    %573 = arith.negf %572 : vector<2x32xf32>
    %574 = math.exp %573 : vector<2x32xf32>
    %cst_147 = arith.constant 1.000000e+00 : f32
    %575 = vector.broadcast %cst_147 : f32 to vector<2x32xf32>
    %576 = arith.addf %575, %574 : vector<2x32xf32>
    %577 = arith.divf %575, %576 : vector<2x32xf32>
    %578 = arith.mulf %569, %551 : vector<2x32xf32>
    %579 = arith.mulf %563, %571 : vector<2x32xf32>
    %580 = arith.addf %578, %579 : vector<2x32xf32>
    %581 = math.tanh %580 : vector<2x32xf32>
    %582 = arith.mulf %577, %581 : vector<2x32xf32>
    %c4_148 = arith.constant 4 : index
    %c0_149 = arith.constant 0 : index
    %583 = vector.load %arg31[%c4_148, %c0_149] : memref<16x32xf32, #tpu.memory_space<vmem>>, vector<2x32xf32>
    tpu.vector_store %arg31[%c4_148, %c0_149], %582 {strides = array<i32>} : memref<16x32xf32, #tpu.memory_space<vmem>>, vector<2x32xf32>,
    %584 = vector.extract_strided_slice %493 {offsets = [6, 0], sizes = [2, 128], strides = [1, 1]} : vector<16x128xf32> to vector<2x128xf32>
    %cst_150 = arith.constant dense<0.000000e+00> : vector<2x128xf32>
    %585 = tpu.matmul %582, %494, %cst_150 {dimension_numbers = #tpu.dot_dimension_numbers<[1], [0], [0], [1], [0, 0, 1, 1], [], []>} : vector<2x32xf32>, vector<32x128xf32>, vector<2x128xf32> -> vector<2x128xf32>
    %586 = arith.addf %584, %585 : vector<2x128xf32>
    %587 = vector.extract_strided_slice %586 {offsets = [0, 0], sizes = [2, 32], strides = [1, 1]} : vector<2x128xf32> to vector<2x32xf32>
    %588 = arith.negf %587 : vector<2x32xf32>
    %589 = math.exp %588 : vector<2x32xf32>
    %cst_151 = arith.constant 1.000000e+00 : f32
    %590 = vector.broadcast %cst_151 : f32 to vector<2x32xf32>
    %591 = arith.addf %590, %589 : vector<2x32xf32>
    %592 = arith.divf %590, %591 : vector<2x32xf32>
    %593 = vector.extract_strided_slice %586 {offsets = [0, 32], sizes = [2, 32], strides = [1, 1]} : vector<2x128xf32> to vector<2x32xf32>
    %594 = arith.negf %593 : vector<2x32xf32>
    %595 = math.exp %594 : vector<2x32xf32>
    %cst_152 = arith.constant 1.000000e+00 : f32
    %596 = vector.broadcast %cst_152 : f32 to vector<2x32xf32>
    %597 = arith.addf %596, %595 : vector<2x32xf32>
    %598 = arith.divf %596, %597 : vector<2x32xf32>
    %599 = vector.extract_strided_slice %586 {offsets = [0, 64], sizes = [2, 32], strides = [1, 1]} : vector<2x128xf32> to vector<2x32xf32>
    %600 = math.tanh %599 : vector<2x32xf32>
    %601 = vector.extract_strided_slice %586 {offsets = [0, 96], sizes = [2, 32], strides = [1, 1]} : vector<2x128xf32> to vector<2x32xf32>
    %602 = arith.negf %601 : vector<2x32xf32>
    %603 = math.exp %602 : vector<2x32xf32>
    %cst_153 = arith.constant 1.000000e+00 : f32
    %604 = vector.broadcast %cst_153 : f32 to vector<2x32xf32>
    %605 = arith.addf %604, %603 : vector<2x32xf32>
    %606 = arith.divf %604, %605 : vector<2x32xf32>
    %607 = arith.mulf %598, %580 : vector<2x32xf32>
    %608 = arith.mulf %592, %600 : vector<2x32xf32>
    %609 = arith.addf %607, %608 : vector<2x32xf32>
    %610 = math.tanh %609 : vector<2x32xf32>
    %611 = arith.mulf %606, %610 : vector<2x32xf32>
    %c6_154 = arith.constant 6 : index
    %c0_155 = arith.constant 0 : index
    %612 = vector.load %arg31[%c6_154, %c0_155] : memref<16x32xf32, #tpu.memory_space<vmem>>, vector<2x32xf32>
    tpu.vector_store %arg31[%c6_154, %c0_155], %611 {strides = array<i32>} : memref<16x32xf32, #tpu.memory_space<vmem>>, vector<2x32xf32>,
    %613 = vector.extract_strided_slice %493 {offsets = [8, 0], sizes = [2, 128], strides = [1, 1]} : vector<16x128xf32> to vector<2x128xf32>
    %cst_156 = arith.constant dense<0.000000e+00> : vector<2x128xf32>
    %614 = tpu.matmul %611, %494, %cst_156 {dimension_numbers = #tpu.dot_dimension_numbers<[1], [0], [0], [1], [0, 0, 1, 1], [], []>} : vector<2x32xf32>, vector<32x128xf32>, vector<2x128xf32> -> vector<2x128xf32>
    %615 = arith.addf %613, %614 : vector<2x128xf32>
    %616 = vector.extract_strided_slice %615 {offsets = [0, 0], sizes = [2, 32], strides = [1, 1]} : vector<2x128xf32> to vector<2x32xf32>
    %617 = arith.negf %616 : vector<2x32xf32>
    %618 = math.exp %617 : vector<2x32xf32>
    %cst_157 = arith.constant 1.000000e+00 : f32
    %619 = vector.broadcast %cst_157 : f32 to vector<2x32xf32>
    %620 = arith.addf %619, %618 : vector<2x32xf32>
    %621 = arith.divf %619, %620 : vector<2x32xf32>
    %622 = vector.extract_strided_slice %615 {offsets = [0, 32], sizes = [2, 32], strides = [1, 1]} : vector<2x128xf32> to vector<2x32xf32>
    %623 = arith.negf %622 : vector<2x32xf32>
    %624 = math.exp %623 : vector<2x32xf32>
    %cst_158 = arith.constant 1.000000e+00 : f32
    %625 = vector.broadcast %cst_158 : f32 to vector<2x32xf32>
    %626 = arith.addf %625, %624 : vector<2x32xf32>
    %627 = arith.divf %625, %626 : vector<2x32xf32>
    %628 = vector.extract_strided_slice %615 {offsets = [0, 64], sizes = [2, 32], strides = [1, 1]} : vector<2x128xf32> to vector<2x32xf32>
    %629 = math.tanh %628 : vector<2x32xf32>
    %630 = vector.extract_strided_slice %615 {offsets = [0, 96], sizes = [2, 32], strides = [1, 1]} : vector<2x128xf32> to vector<2x32xf32>
    %631 = arith.negf %630 : vector<2x32xf32>
    %632 = math.exp %631 : vector<2x32xf32>
    %cst_159 = arith.constant 1.000000e+00 : f32
    %633 = vector.broadcast %cst_159 : f32 to vector<2x32xf32>
    %634 = arith.addf %633, %632 : vector<2x32xf32>
    %635 = arith.divf %633, %634 : vector<2x32xf32>
    %636 = arith.mulf %627, %609 : vector<2x32xf32>
    %637 = arith.mulf %621, %629 : vector<2x32xf32>
    %638 = arith.addf %636, %637 : vector<2x32xf32>
    %639 = math.tanh %638 : vector<2x32xf32>
    %640 = arith.mulf %635, %639 : vector<2x32xf32>
    %c8_160 = arith.constant 8 : index
    %c0_161 = arith.constant 0 : index
    %641 = vector.load %arg31[%c8_160, %c0_161] : memref<16x32xf32, #tpu.memory_space<vmem>>, vector<2x32xf32>
    tpu.vector_store %arg31[%c8_160, %c0_161], %640 {strides = array<i32>} : memref<16x32xf32, #tpu.memory_space<vmem>>, vector<2x32xf32>,
    %642 = vector.extract_strided_slice %493 {offsets = [10, 0], sizes = [2, 128], strides = [1, 1]} : vector<16x128xf32> to vector<2x128xf32>
    %cst_162 = arith.constant dense<0.000000e+00> : vector<2x128xf32>
    %643 = tpu.matmul %640, %494, %cst_162 {dimension_numbers = #tpu.dot_dimension_numbers<[1], [0], [0], [1], [0, 0, 1, 1], [], []>} : vector<2x32xf32>, vector<32x128xf32>, vector<2x128xf32> -> vector<2x128xf32>
    %644 = arith.addf %642, %643 : vector<2x128xf32>
    %645 = vector.extract_strided_slice %644 {offsets = [0, 0], sizes = [2, 32], strides = [1, 1]} : vector<2x128xf32> to vector<2x32xf32>
    %646 = arith.negf %645 : vector<2x32xf32>
    %647 = math.exp %646 : vector<2x32xf32>
    %cst_163 = arith.constant 1.000000e+00 : f32
    %648 = vector.broadcast %cst_163 : f32 to vector<2x32xf32>
    %649 = arith.addf %648, %647 : vector<2x32xf32>
    %650 = arith.divf %648, %649 : vector<2x32xf32>
    %651 = vector.extract_strided_slice %644 {offsets = [0, 32], sizes = [2, 32], strides = [1, 1]} : vector<2x128xf32> to vector<2x32xf32>
    %652 = arith.negf %651 : vector<2x32xf32>
    %653 = math.exp %652 : vector<2x32xf32>
    %cst_164 = arith.constant 1.000000e+00 : f32
    %654 = vector.broadcast %cst_164 : f32 to vector<2x32xf32>
    %655 = arith.addf %654, %653 : vector<2x32xf32>
    %656 = arith.divf %654, %655 : vector<2x32xf32>
    %657 = vector.extract_strided_slice %644 {offsets = [0, 64], sizes = [2, 32], strides = [1, 1]} : vector<2x128xf32> to vector<2x32xf32>
    %658 = math.tanh %657 : vector<2x32xf32>
    %659 = vector.extract_strided_slice %644 {offsets = [0, 96], sizes = [2, 32], strides = [1, 1]} : vector<2x128xf32> to vector<2x32xf32>
    %660 = arith.negf %659 : vector<2x32xf32>
    %661 = math.exp %660 : vector<2x32xf32>
    %cst_165 = arith.constant 1.000000e+00 : f32
    %662 = vector.broadcast %cst_165 : f32 to vector<2x32xf32>
    %663 = arith.addf %662, %661 : vector<2x32xf32>
    %664 = arith.divf %662, %663 : vector<2x32xf32>
    %665 = arith.mulf %656, %638 : vector<2x32xf32>
    %666 = arith.mulf %650, %658 : vector<2x32xf32>
    %667 = arith.addf %665, %666 : vector<2x32xf32>
    %668 = math.tanh %667 : vector<2x32xf32>
    %669 = arith.mulf %664, %668 : vector<2x32xf32>
    %c10_166 = arith.constant 10 : index
    %c0_167 = arith.constant 0 : index
    %670 = vector.load %arg31[%c10_166, %c0_167] : memref<16x32xf32, #tpu.memory_space<vmem>>, vector<2x32xf32>
    tpu.vector_store %arg31[%c10_166, %c0_167], %669 {strides = array<i32>} : memref<16x32xf32, #tpu.memory_space<vmem>>, vector<2x32xf32>,
    %671 = vector.extract_strided_slice %493 {offsets = [12, 0], sizes = [2, 128], strides = [1, 1]} : vector<16x128xf32> to vector<2x128xf32>
    %cst_168 = arith.constant dense<0.000000e+00> : vector<2x128xf32>
    %672 = tpu.matmul %669, %494, %cst_168 {dimension_numbers = #tpu.dot_dimension_numbers<[1], [0], [0], [1], [0, 0, 1, 1], [], []>} : vector<2x32xf32>, vector<32x128xf32>, vector<2x128xf32> -> vector<2x128xf32>
    %673 = arith.addf %671, %672 : vector<2x128xf32>
    %674 = vector.extract_strided_slice %673 {offsets = [0, 0], sizes = [2, 32], strides = [1, 1]} : vector<2x128xf32> to vector<2x32xf32>
    %675 = arith.negf %674 : vector<2x32xf32>
    %676 = math.exp %675 : vector<2x32xf32>
    %cst_169 = arith.constant 1.000000e+00 : f32
    %677 = vector.broadcast %cst_169 : f32 to vector<2x32xf32>
    %678 = arith.addf %677, %676 : vector<2x32xf32>
    %679 = arith.divf %677, %678 : vector<2x32xf32>
    %680 = vector.extract_strided_slice %673 {offsets = [0, 32], sizes = [2, 32], strides = [1, 1]} : vector<2x128xf32> to vector<2x32xf32>
    %681 = arith.negf %680 : vector<2x32xf32>
    %682 = math.exp %681 : vector<2x32xf32>
    %cst_170 = arith.constant 1.000000e+00 : f32
    %683 = vector.broadcast %cst_170 : f32 to vector<2x32xf32>
    %684 = arith.addf %683, %682 : vector<2x32xf32>
    %685 = arith.divf %683, %684 : vector<2x32xf32>
    %686 = vector.extract_strided_slice %673 {offsets = [0, 64], sizes = [2, 32], strides = [1, 1]} : vector<2x128xf32> to vector<2x32xf32>
    %687 = math.tanh %686 : vector<2x32xf32>
    %688 = vector.extract_strided_slice %673 {offsets = [0, 96], sizes = [2, 32], strides = [1, 1]} : vector<2x128xf32> to vector<2x32xf32>
    %689 = arith.negf %688 : vector<2x32xf32>
    %690 = math.exp %689 : vector<2x32xf32>
    %cst_171 = arith.constant 1.000000e+00 : f32
    %691 = vector.broadcast %cst_171 : f32 to vector<2x32xf32>
    %692 = arith.addf %691, %690 : vector<2x32xf32>
    %693 = arith.divf %691, %692 : vector<2x32xf32>
    %694 = arith.mulf %685, %667 : vector<2x32xf32>
    %695 = arith.mulf %679, %687 : vector<2x32xf32>
    %696 = arith.addf %694, %695 : vector<2x32xf32>
    %697 = math.tanh %696 : vector<2x32xf32>
    %698 = arith.mulf %693, %697 : vector<2x32xf32>
    %c12_172 = arith.constant 12 : index
    %c0_173 = arith.constant 0 : index
    %699 = vector.load %arg31[%c12_172, %c0_173] : memref<16x32xf32, #tpu.memory_space<vmem>>, vector<2x32xf32>
    tpu.vector_store %arg31[%c12_172, %c0_173], %698 {strides = array<i32>} : memref<16x32xf32, #tpu.memory_space<vmem>>, vector<2x32xf32>,
    %700 = vector.extract_strided_slice %493 {offsets = [14, 0], sizes = [2, 128], strides = [1, 1]} : vector<16x128xf32> to vector<2x128xf32>
    %cst_174 = arith.constant dense<0.000000e+00> : vector<2x128xf32>
    %701 = tpu.matmul %698, %494, %cst_174 {dimension_numbers = #tpu.dot_dimension_numbers<[1], [0], [0], [1], [0, 0, 1, 1], [], []>} : vector<2x32xf32>, vector<32x128xf32>, vector<2x128xf32> -> vector<2x128xf32>
    %702 = arith.addf %700, %701 : vector<2x128xf32>
    %703 = vector.extract_strided_slice %702 {offsets = [0, 0], sizes = [2, 32], strides = [1, 1]} : vector<2x128xf32> to vector<2x32xf32>
    %704 = arith.negf %703 : vector<2x32xf32>
    %705 = math.exp %704 : vector<2x32xf32>
    %cst_175 = arith.constant 1.000000e+00 : f32
    %706 = vector.broadcast %cst_175 : f32 to vector<2x32xf32>
    %707 = arith.addf %706, %705 : vector<2x32xf32>
    %708 = arith.divf %706, %707 : vector<2x32xf32>
    %709 = vector.extract_strided_slice %702 {offsets = [0, 32], sizes = [2, 32], strides = [1, 1]} : vector<2x128xf32> to vector<2x32xf32>
    %710 = arith.negf %709 : vector<2x32xf32>
    %711 = math.exp %710 : vector<2x32xf32>
    %cst_176 = arith.constant 1.000000e+00 : f32
    %712 = vector.broadcast %cst_176 : f32 to vector<2x32xf32>
    %713 = arith.addf %712, %711 : vector<2x32xf32>
    %714 = arith.divf %712, %713 : vector<2x32xf32>
    %715 = vector.extract_strided_slice %702 {offsets = [0, 64], sizes = [2, 32], strides = [1, 1]} : vector<2x128xf32> to vector<2x32xf32>
    %716 = math.tanh %715 : vector<2x32xf32>
    %717 = vector.extract_strided_slice %702 {offsets = [0, 96], sizes = [2, 32], strides = [1, 1]} : vector<2x128xf32> to vector<2x32xf32>
    %718 = arith.negf %717 : vector<2x32xf32>
    %719 = math.exp %718 : vector<2x32xf32>
    %cst_177 = arith.constant 1.000000e+00 : f32
    %720 = vector.broadcast %cst_177 : f32 to vector<2x32xf32>
    %721 = arith.addf %720, %719 : vector<2x32xf32>
    %722 = arith.divf %720, %721 : vector<2x32xf32>
    %723 = arith.mulf %714, %696 : vector<2x32xf32>
    %724 = arith.mulf %708, %716 : vector<2x32xf32>
    %725 = arith.addf %723, %724 : vector<2x32xf32>
    %726 = math.tanh %725 : vector<2x32xf32>
    %727 = arith.mulf %722, %726 : vector<2x32xf32>
    %c14_178 = arith.constant 14 : index
    %c0_179 = arith.constant 0 : index
    %728 = vector.load %arg31[%c14_178, %c0_179] : memref<16x32xf32, #tpu.memory_space<vmem>>, vector<2x32xf32>
    tpu.vector_store %arg31[%c14_178, %c0_179], %727 {strides = array<i32>} : memref<16x32xf32, #tpu.memory_space<vmem>>, vector<2x32xf32>,
    %c0_180 = arith.constant 0 : index
    %c0_181 = arith.constant 0 : index
    %729 = vector.load %arg31[%c0_180, %c0_181] : memref<16x32xf32, #tpu.memory_space<vmem>>, vector<16x32xf32>
    %c0_182 = arith.constant 0 : index
    %c0_183 = arith.constant 0 : index
    %730 = vector.load %arg12[%c0_182, %c0_183] : memref<32x8xf32, #tpu.memory_space<vmem>>, vector<32x8xf32>
    %cst_184 = arith.constant dense<0.000000e+00> : vector<16x8xf32>
    %731 = tpu.matmul %241, %730, %cst_184 {dimension_numbers = #tpu.dot_dimension_numbers<[1], [0], [0], [1], [0, 0, 1, 1], [], []>} : vector<16x32xf32>, vector<32x8xf32>, vector<16x8xf32> -> vector<16x8xf32>
    %c0_185 = arith.constant 0 : index
    %c0_186 = arith.constant 0 : index
    %732 = vector.load %arg13[%c0_185, %c0_186] : memref<32x8xf32, #tpu.memory_space<vmem>>, vector<32x8xf32>
    %cst_187 = arith.constant dense<0.000000e+00> : vector<16x8xf32>
    %733 = tpu.matmul %485, %732, %cst_187 {dimension_numbers = #tpu.dot_dimension_numbers<[1], [0], [0], [1], [0, 0, 1, 1], [], []>} : vector<16x32xf32>, vector<32x8xf32>, vector<16x8xf32> -> vector<16x8xf32>
    %734 = arith.addf %731, %733 : vector<16x8xf32>
    %c0_188 = arith.constant 0 : index
    %c0_189 = arith.constant 0 : index
    %735 = vector.load %arg14[%c0_188, %c0_189] : memref<32x8xf32, #tpu.memory_space<vmem>>, vector<32x8xf32>
    %cst_190 = arith.constant dense<0.000000e+00> : vector<16x8xf32>
    %736 = tpu.matmul %729, %735, %cst_190 {dimension_numbers = #tpu.dot_dimension_numbers<[1], [0], [0], [1], [0, 0, 1, 1], [], []>} : vector<16x32xf32>, vector<32x8xf32>, vector<16x8xf32> -> vector<16x8xf32>
    %737 = arith.addf %734, %736 : vector<16x8xf32>
    %c0_191 = arith.constant 0 : index
    %c0_192 = arith.constant 0 : index
    %738 = vector.load %arg15[%c0_191, %c0_192] : memref<1x8xf32, #tpu.memory_space<vmem>>, vector<1x8xf32>
    %739 = vector.broadcast %738 : vector<1x8xf32> to vector<16x8xf32>
    %740 = arith.addf %737, %739 : vector<16x8xf32>
    %cst_193 = arith.constant dense<0xFF800000> : vector<16xf32>
    %741 = vector.multi_reduction <maximumf>, %740, %cst_193 [1] : vector<16x8xf32> to vector<16xf32>
    %742 = vector.shape_cast %741 : vector<16xf32> to vector<16x1xf32>
    %743 = vector.broadcast %742 : vector<16x1xf32> to vector<16x8xf32>
    %744 = arith.subf %740, %743 : vector<16x8xf32>
    %745 = math.exp %744 : vector<16x8xf32>
    %cst_194 = arith.constant dense<0.000000e+00> : vector<16xf32>
    %746 = vector.multi_reduction <add>, %745, %cst_194 [1] : vector<16x8xf32> to vector<16xf32>
    %747 = vector.shape_cast %746 : vector<16xf32> to vector<16x1xf32>
    %748 = math.log %747 : vector<16x1xf32>
    %749 = vector.broadcast %748 : vector<16x1xf32> to vector<16x8xf32>
    %750 = arith.subf %744, %749 : vector<16x8xf32>
    %c0_195 = arith.constant 0 : index
    %c0_196 = arith.constant 0 : index
    %751 = vector.load %arg22[%c0_195, %c0_196] : memref<16x8xf32, #tpu.memory_space<vmem>>, vector<16x8xf32>
    tpu.vector_store %arg22[%c0_195, %c0_196], %750 {strides = array<i32>} : memref<16x8xf32, #tpu.memory_space<vmem>>, vector<16x8xf32>,
    %c0_197 = arith.constant 0 : index
    %c0_198 = arith.constant 0 : index
    %752 = vector.load %arg23[%c0_197, %c0_198] : memref<2x32xf32, #tpu.memory_space<vmem>>, vector<2x32xf32>
    tpu.vector_store %arg23[%c0_197, %c0_198], %239 {strides = array<i32>} : memref<2x32xf32, #tpu.memory_space<vmem>>, vector<2x32xf32>,
    %c0_199 = arith.constant 0 : index
    %c0_200 = arith.constant 0 : index
    %753 = vector.load %arg24[%c0_199, %c0_200] : memref<2x32xf32, #tpu.memory_space<vmem>>, vector<2x32xf32>
    tpu.vector_store %arg24[%c0_199, %c0_200], %237 {strides = array<i32>} : memref<2x32xf32, #tpu.memory_space<vmem>>, vector<2x32xf32>,
    %c0_201 = arith.constant 0 : index
    %c0_202 = arith.constant 0 : index
    %754 = vector.load %arg25[%c0_201, %c0_202] : memref<2x32xf32, #tpu.memory_space<vmem>>, vector<2x32xf32>
    tpu.vector_store %arg25[%c0_201, %c0_202], %483 {strides = array<i32>} : memref<2x32xf32, #tpu.memory_space<vmem>>, vector<2x32xf32>,
    %c0_203 = arith.constant 0 : index
    %c0_204 = arith.constant 0 : index
    %755 = vector.load %arg26[%c0_203, %c0_204] : memref<2x32xf32, #tpu.memory_space<vmem>>, vector<2x32xf32>
    tpu.vector_store %arg26[%c0_203, %c0_204], %481 {strides = array<i32>} : memref<2x32xf32, #tpu.memory_space<vmem>>, vector<2x32xf32>,
    %c0_205 = arith.constant 0 : index
    %c0_206 = arith.constant 0 : index
    %756 = vector.load %arg27[%c0_205, %c0_206] : memref<2x32xf32, #tpu.memory_space<vmem>>, vector<2x32xf32>
    tpu.vector_store %arg27[%c0_205, %c0_206], %727 {strides = array<i32>} : memref<2x32xf32, #tpu.memory_space<vmem>>, vector<2x32xf32>,
    %c0_207 = arith.constant 0 : index
    %c0_208 = arith.constant 0 : index
    %757 = vector.load %arg28[%c0_207, %c0_208] : memref<2x32xf32, #tpu.memory_space<vmem>>, vector<2x32xf32>
    tpu.vector_store %arg28[%c0_207, %c0_208], %725 {strides = array<i32>} : memref<2x32xf32, #tpu.memory_space<vmem>>, vector<2x32xf32>,
    return
  }
}

</mosaic_0001>

<llo_original>
// kernel: dlstm3_forward.1
$region0: #{dlstm3_forward.1}
  #allocation0 [shape = 'u32[]', space=smem, size = 0x4, offset = 0x4, fixed_abs, tag = 'smem constant byte address 0x4 - core index']
  #allocation1 [shape = 'u32[144,128]{1,0:T(1,128)}', space=vmem, size = 0x12000, scoped, tag = 'internal scratch']
  #allocation2 [shape = 'f32[16,32]{1,0:T(8,128)}', space=vmem, size = 0x2000, scoped, tag = 'scratch operand']
  #allocation3 [shape = 'f32[16,32]{1,0:T(8,128)}', space=vmem, size = 0x2000, scoped, tag = 'scratch operand']
  #allocation4 [shape = 'f32[16,32]{1,0:T(8,128)}', space=vmem, size = 0x2000, scoped, tag = 'scratch operand']
  %s0 = inlined_call_operand.vmem [shape: f32[16,8], index: 0, kind: input, shape index: {}]
  %s1 = inlined_call_operand.vmem [shape: f32[8,128], index: 1, kind: input, shape index: {}]
  %s2 = inlined_call_operand.vmem [shape: f32[32,128], index: 2, kind: input, shape index: {}]
  %s3 = inlined_call_operand.vmem [shape: f32[1,128], index: 3, kind: input, shape index: {}]
  %s4 = inlined_call_operand.vmem [shape: f32[8,128], index: 4, kind: input, shape index: {}]
  %s5 = inlined_call_operand.vmem [shape: f32[32,128], index: 5, kind: input, shape index: {}]
  %s6 = inlined_call_operand.vmem [shape: f32[32,128], index: 6, kind: input, shape index: {}]
  %s7 = inlined_call_operand.vmem [shape: f32[1,128], index: 7, kind: input, shape index: {}]
  %s8 = inlined_call_operand.vmem [shape: f32[8,128], index: 8, kind: input, shape index: {}]
  %s9 = inlined_call_operand.vmem [shape: f32[32,128], index: 9, kind: input, shape index: {}]
  %s10 = inlined_call_operand.vmem [shape: f32[32,128], index: 10, kind: input, shape index: {}]
  %s11 = inlined_call_operand.vmem [shape: f32[1,128], index: 11, kind: input, shape index: {}]
  %s12 = inlined_call_operand.vmem [shape: f32[32,8], index: 12, kind: input, shape index: {}]
  %s13 = inlined_call_operand.vmem [shape: f32[32,8], index: 13, kind: input, shape index: {}]
  %s14 = inlined_call_operand.vmem [shape: f32[32,8], index: 14, kind: input, shape index: {}]
  %s15 = inlined_call_operand.vmem [shape: f32[1,8], index: 15, kind: input, shape index: {}]
  %s16 = inlined_call_operand.vmem [shape: f32[2,32], index: 16, kind: input, shape index: {}]
  %s17 = inlined_call_operand.vmem [shape: f32[2,32], index: 17, kind: input, shape index: {}]
  %s18 = inlined_call_operand.vmem [shape: f32[2,32], index: 18, kind: input, shape index: {}]
  %s19 = inlined_call_operand.vmem [shape: f32[2,32], index: 19, kind: input, shape index: {}]
  %s20 = inlined_call_operand.vmem [shape: f32[2,32], index: 20, kind: input, shape index: {}]
  %s21 = inlined_call_operand.vmem [shape: f32[2,32], index: 21, kind: input, shape index: {}]
  %s22 = inlined_call_operand.vmem [shape: f32[16,8], index: 22, kind: output, shape index: {0}]
  %s23 = inlined_call_operand.hbm [shape: f32[2,32], index: 23, kind: output, shape index: {1}]
  %s24 = inlined_call_operand.hbm [shape: f32[2,32], index: 24, kind: output, shape index: {2}]
  %s25 = inlined_call_operand.hbm [shape: f32[2,32], index: 25, kind: output, shape index: {3}]
  %s26 = inlined_call_operand.hbm [shape: f32[2,32], index: 26, kind: output, shape index: {4}]
  %s27 = inlined_call_operand.hbm [shape: f32[2,32], index: 27, kind: output, shape index: {5}]
  %s28 = inlined_call_operand.hbm [shape: f32[2,32], index: 28, kind: output, shape index: {6}]
  %29 = xla_tuple %s22, %s23, %s24, %s25, %s26, %s27, %s28
  %s30 = sld [smem:[#allocation0]]
  $region146: #{dlstm3_forward.1} parent=0
    _
  %s32 = ssub.s32 1, %s30
  %s33 = scalar_select 0, %s32, %s30
  $region1: #{dlstm3_forward.1} parent=0
    #allocation5 [shape = 'u8[1024]{0}', space=vmem, size = 0x400, scoped, tag = 'output window, operand 1, single buffered']
    #allocation6 [shape = 's32[1]{0}', space=sflag, size = 0x4, scoped, tag = 'scoped memory for dlstm3_forward.1']
    #allocation7 [shape = 'u8[1024]{0}', space=vmem, size = 0x400, scoped, tag = 'output window, operand 2, single buffered']
    #allocation8 [shape = 's32[1]{0}', space=sflag, size = 0x4, scoped, tag = 'scoped memory for dlstm3_forward.1']
    #allocation9 [shape = 'u8[1024]{0}', space=vmem, size = 0x400, scoped, tag = 'output window, operand 3, single buffered']
    #allocation10 [shape = 'u8[1024]{0}', space=vmem, size = 0x400, scoped, tag = 'output window, operand 4, single buffered']
    #allocation11 [shape = 's32[1]{0}', space=sflag, size = 0x4, scoped, tag = 'scoped memory for dlstm3_forward.1']
    #allocation12 [shape = 'u8[1024]{0}', space=vmem, size = 0x400, scoped, tag = 'output window, operand 5, single buffered']
    #allocation13 [shape = 'u8[1024]{0}', space=vmem, size = 0x400, scoped, tag = 'output window, operand 6, single buffered']
    #allocation14 [shape = 's32[1]{0}', space=sflag, size = 0x4, scoped, tag = 'scoped memory for dlstm3_forward.1']
    %34 = vsyncpa [#allocation6], 0
    %35 = vsyncpa [#allocation8], 0
    %36 = vsyncpa [#allocation11], 0
    %37 = vsyncpa [#allocation14], 0
    // Predicated region
    $region2: #{dlstm3_forward.1} parent=1 // pred_check
      _
    $region3: #{dlstm3_forward.1} parent=1 // pred_check_branch
      %39 = sbr.rel (0) target = $region5
    $region4: #{dlstm3_forward.1} parent=1 // pred_region
      _
    $region5: #{dlstm3_forward.1} parent=1 // pred_fallthru
      _
    // Predicated region
    $region6: #{dlstm3_forward.1} parent=1 // pred_check
      _
    $region7: #{dlstm3_forward.1} parent=1 // pred_check_branch
      %41 = sbr.rel (0) target = $region9
    $region8: #{dlstm3_forward.1} parent=1 // pred_region
      _
    $region9: #{dlstm3_forward.1} parent=1 // pred_fallthru
      _
    // Predicated region
    $region10: #{dlstm3_forward.1} parent=1 // pred_check
      _
    $region11: #{dlstm3_forward.1} parent=1 // pred_check_branch
      %43 = sbr.rel (0) target = $region13
    $region12: #{dlstm3_forward.1} parent=1 // pred_region
      _
    $region13: #{dlstm3_forward.1} parent=1 // pred_fallthru
      _
    // Predicated region
    $region14: #{dlstm3_forward.1} parent=1 // pred_check
      _
    $region15: #{dlstm3_forward.1} parent=1 // pred_check_branch
      %45 = sbr.rel (0) target = $region17
    $region16: #{dlstm3_forward.1} parent=1 // pred_region
      _
    $region17: #{dlstm3_forward.1} parent=1 // pred_fallthru
      _
    // Predicated region
    $region18: #{dlstm3_forward.1} parent=1 // pred_check
      _
    $region19: #{dlstm3_forward.1} parent=1 // pred_check_branch
      %47 = sbr.rel (0) target = $region21
    $region20: #{dlstm3_forward.1} parent=1 // pred_region
      _
    $region21: #{dlstm3_forward.1} parent=1 // pred_fallthru
      _
    // Predicated region
    $region22: #{dlstm3_forward.1} parent=1 // pred_check
      _
    $region23: #{dlstm3_forward.1} parent=1 // pred_check_branch
      %49 = sbr.rel (0) target = $region25
    $region24: #{dlstm3_forward.1} parent=1 // pred_region
      _
    $region25: #{dlstm3_forward.1} parent=1 // pred_fallthru
      _
    // Predicated region
    $region26: #{dlstm3_forward.1} parent=1 // pred_check
      _
    $region27: #{dlstm3_forward.1} parent=1 // pred_check_branch
      %51 = sbr.rel (0) target = $region29
    $region28: #{dlstm3_forward.1} parent=1 // pred_region
      _
    $region29: #{dlstm3_forward.1} parent=1 // pred_fallthru
      _
    // Predicated region
    $region30: #{dlstm3_forward.1} parent=1 // pred_check
      _
    $region31: #{dlstm3_forward.1} parent=1 // pred_check_branch
      %53 = sbr.rel (0) target = $region33
    $region32: #{dlstm3_forward.1} parent=1 // pred_region
      _
    $region33: #{dlstm3_forward.1} parent=1 // pred_fallthru
      _
    // Predicated region
    $region34: #{dlstm3_forward.1} parent=1 // pred_check
      _
    $region35: #{dlstm3_forward.1} parent=1 // pred_check_branch
      %55 = sbr.rel (0) target = $region37
    $region36: #{dlstm3_forward.1} parent=1 // pred_region
      _
    $region37: #{dlstm3_forward.1} parent=1 // pred_fallthru
      _
    // Predicated region
    $region38: #{dlstm3_forward.1} parent=1 // pred_check
      _
    $region39: #{dlstm3_forward.1} parent=1 // pred_check_branch
      %57 = sbr.rel (0) target = $region41
    $region40: #{dlstm3_forward.1} parent=1 // pred_region
      _
    $region41: #{dlstm3_forward.1} parent=1 // pred_fallthru
      _
    // Predicated region
    $region42: #{dlstm3_forward.1} parent=1 // pred_check
      _
    $region43: #{dlstm3_forward.1} parent=1 // pred_check_branch
      %59 = sbr.rel (0) target = $region45
    $region44: #{dlstm3_forward.1} parent=1 // pred_region
      _
    $region45: #{dlstm3_forward.1} parent=1 // pred_fallthru
      _
    // Predicated region
    $region46: #{dlstm3_forward.1} parent=1 // pred_check
      _
    $region47: #{dlstm3_forward.1} parent=1 // pred_check_branch
      %61 = sbr.rel (0) target = $region49
    $region48: #{dlstm3_forward.1} parent=1 // pred_region
      _
    $region49: #{dlstm3_forward.1} parent=1 // pred_fallthru
      _
    // Predicated region
    $region50: #{dlstm3_forward.1} parent=1 // pred_check
      _
    $region51: #{dlstm3_forward.1} parent=1 // pred_check_branch
      %63 = sbr.rel (0) target = $region53
    $region52: #{dlstm3_forward.1} parent=1 // pred_region
      _
    $region53: #{dlstm3_forward.1} parent=1 // pred_fallthru
      _
    // Predicated region
    $region54: #{dlstm3_forward.1} parent=1 // pred_check
      _
    $region55: #{dlstm3_forward.1} parent=1 // pred_check_branch
      %65 = sbr.rel (0) target = $region57
    $region56: #{dlstm3_forward.1} parent=1 // pred_region
      _
    $region57: #{dlstm3_forward.1} parent=1 // pred_fallthru
      _
    // Predicated region
    $region58: #{dlstm3_forward.1} parent=1 // pred_check
      _
    $region59: #{dlstm3_forward.1} parent=1 // pred_check_branch
      %67 = sbr.rel (0) target = $region61
    $region60: #{dlstm3_forward.1} parent=1 // pred_region
      _
    $region61: #{dlstm3_forward.1} parent=1 // pred_fallthru
      _
    // Predicated region
    $region62: #{dlstm3_forward.1} parent=1 // pred_check
      _
    $region63: #{dlstm3_forward.1} parent=1 // pred_check_branch
      %69 = sbr.rel (0) target = $region65
    $region64: #{dlstm3_forward.1} parent=1 // pred_region
      _
    $region65: #{dlstm3_forward.1} parent=1 // pred_fallthru
      _
    // Predicated region
    $region66: #{dlstm3_forward.1} parent=1 // pred_check
      _
    $region67: #{dlstm3_forward.1} parent=1 // pred_check_branch
      %71 = sbr.rel (0) target = $region69
    $region68: #{dlstm3_forward.1} parent=1 // pred_region
      _
    $region69: #{dlstm3_forward.1} parent=1 // pred_fallthru
      _
    // Predicated region
    $region70: #{dlstm3_forward.1} parent=1 // pred_check
      _
    $region71: #{dlstm3_forward.1} parent=1 // pred_check_branch
      %73 = sbr.rel (0) target = $region73
    $region72: #{dlstm3_forward.1} parent=1 // pred_region
      _
    $region73: #{dlstm3_forward.1} parent=1 // pred_fallthru
      _
    // Predicated region
    $region74: #{dlstm3_forward.1} parent=1 // pred_check
      _
    $region75: #{dlstm3_forward.1} parent=1 // pred_check_branch
      %75 = sbr.rel (0) target = $region77
    $region76: #{dlstm3_forward.1} parent=1 // pred_region
      _
    $region77: #{dlstm3_forward.1} parent=1 // pred_fallthru
      _
    // Predicated region
    $region78: #{dlstm3_forward.1} parent=1 // pred_check
      _
    $region79: #{dlstm3_forward.1} parent=1 // pred_check_branch
      %77 = sbr.rel (0) target = $region81
    $region80: #{dlstm3_forward.1} parent=1 // pred_region
      _
    $region81: #{dlstm3_forward.1} parent=1 // pred_fallthru
      _
    // Predicated region
    $region82: #{dlstm3_forward.1} parent=1 // pred_check
      _
    $region83: #{dlstm3_forward.1} parent=1 // pred_check_branch
      %79 = sbr.rel (0) target = $region85
    $region84: #{dlstm3_forward.1} parent=1 // pred_region
      _
    $region85: #{dlstm3_forward.1} parent=1 // pred_fallthru
      _
    // Predicated region
    $region86: #{dlstm3_forward.1} parent=1 // pred_check
      _
    $region87: #{dlstm3_forward.1} parent=1 // pred_check_branch
      %81 = sbr.rel (0) target = $region89
    $region88: #{dlstm3_forward.1} parent=1 // pred_region
      _
    $region89: #{dlstm3_forward.1} parent=1 // pred_fallthru
      _
    %v82 = vld [vmem:[%s0] sm:$0xff]
    %v83 = vld [vmem:[%s0 + $0x8] sm:$0xff]
    %v84 = vld [vmem:[%s1] sm:$0xff]
    %v85 = vld [vmem:[%s3] sm:$0x1]
    %v87 = vlaneseq
    %v88 = vshrl.u32 %v87, 7
    %v89 = vsub.s32 0, %v88
    %v90 = vrot.slane %v85, %v89
    %vm92 = vcmask 64512
    %v94 = vsel %vm92, %v82, 0
    %v97 = vsel %vm92, %v83, 0
    %99 = vmatprep.subr.mxu0 0.0
    %100 = vmatpush1.msra.mxu0 0.0
    %101 = vmatprep.subr.mxu0 0.0
    %102 = vmatpush1.msra.mxu0 0.0
    %103 = vmatprep.subr.mxu0 0.0
    %104 = vmatpush1.msra.mxu0 0.0
    %105 = vmatprep.subr.mxu0 0.0
    %106 = vmatpush1.msra.mxu0 0.0
    %107 = vmatprep.subr.mxu0 0.0
    %108 = vmatpush1.msra.mxu0 0.0
    %109 = vmatprep.subr.mxu0 0.0
    %110 = vmatpush1.msra.mxu0 0.0
    %111 = vmatprep.subr.mxu0 0.0
    %112 = vmatpush1.msra.mxu0 0.0
    %113 = vmatprep.subr.mxu0 0.0
    %114 = vmatpush1.msra.mxu0 0.0
    %115 = vmatprep.subr.mxu0 0.0
    %116 = vmatpush1.msra.mxu0 0.0
    %117 = vmatprep.subr.mxu0 0.0
    %118 = vmatpush1.msra.mxu0 0.0
    %119 = vmatprep.subr.mxu0 0.0
    %120 = vmatpush1.msra.mxu0 0.0
    %121 = vmatprep.subr.mxu0 0.0
    %122 = vmatpush1.msra.mxu0 0.0
    %123 = vmatprep.subr.mxu0 0.0
    %124 = vmatpush1.msra.mxu0 0.0
    %125 = vmatprep.subr.mxu0 0.0
    %126 = vmatpush1.msra.mxu0 0.0
    %127 = vmatprep.subr.mxu0 0.0
    %128 = vmatpush1.msra.mxu0 0.0
    %129 = vmatprep.subr.mxu0 0.0
    %130 = vmatpush1.msra.mxu0 %v84
    %131 = vmatprep.subr.mxu0 0.0
    %132 = vmatpush2.msra.mxu0 0.0
    %133 = vmatprep.subr.mxu0 0.0
    %134 = vmatpush2.msra.mxu0 0.0
    %135 = vmatprep.subr.mxu0 0.0
    %136 = vmatpush2.msra.mxu0 0.0
    %137 = vmatprep.subr.mxu0 0.0
    %138 = vmatpush2.msra.mxu0 0.0
    %139 = vmatprep.subr.mxu0 0.0
    %140 = vmatpush2.msra.mxu0 0.0
    %141 = vmatprep.subr.mxu0 0.0
    %142 = vmatpush2.msra.mxu0 0.0
    %143 = vmatprep.subr.mxu0 0.0
    %144 = vmatpush2.msra.mxu0 0.0
    %145 = vmatprep.subr.mxu0 0.0
    %146 = vmatpush2.msra.mxu0 0.0
    %147 = vmatprep.subr.mxu0 0.0
    %148 = vmatpush2.msra.mxu0 0.0
    %149 = vmatprep.subr.mxu0 0.0
    %150 = vmatpush2.msra.mxu0 0.0
    %151 = vmatprep.subr.mxu0 0.0
    %152 = vmatpush2.msra.mxu0 0.0
    %153 = vmatprep.subr.mxu0 0.0
    %154 = vmatpush2.msra.mxu0 0.0
    %155 = vmatprep.subr.mxu0 0.0
    %156 = vmatpush2.msra.mxu0 0.0
    %157 = vmatprep.subr.mxu0 0.0
    %158 = vmatpush2.msra.mxu0 0.0
    %159 = vmatprep.subr.mxu0 0.0
    %160 = vmatpush2.msra.mxu0 0.0
    %161 = vmatprep.subr.mxu0 0.0
    %162 = vmatpush2.msra.mxu0 0.0
    %163 = vmatprep.mubr.f32.mxu0 0.0
    %164 = vmatmul.mubr.f32.gmra.mxu0 %v94
    %v165 = vpop.f32.mrf.mxu0
    %v166 = vadd.f32 %v90, %v165
    %v167 = vpop.f32.mrf.mxu0
    %168 = vmatprep.mubr.f32.mxu0 0.0
    %169 = vmatmul.mubr.f32.gmra.mxu0 %v97
    %v170 = vpop.f32.mrf.mxu0
    %v171 = vadd.f32 %v90, %v170
    %v172 = vpop.f32.mrf.mxu0
    %173 = vdwg.mxu0
    %v174 = vld [vmem:[%s2] sm:$0xff]
    %v175 = vld [vmem:[%s2 + $0x8] sm:$0xff]
    %v176 = vld [vmem:[%s2 + $0x10] sm:$0xff]
    %v177 = vld [vmem:[%s2 + $0x18] sm:$0xff]
    %v178 = vld [vmem:[%s16] sm:$0x3]
    %v179 = vld [vmem:[%s17] sm:$0x3]
    %vm180 = vcmask 261120
    %v182 = vsel %vm180, %v178, 0
    %184 = vmatprep.subr.mxu0 0.0
    %185 = vmatpush1.msra.mxu0 0.0
    %186 = vmatprep.subr.mxu0 0.0
    %187 = vmatpush1.msra.mxu0 0.0
    %188 = vmatprep.subr.mxu0 0.0
    %189 = vmatpush1.msra.mxu0 0.0
    %190 = vmatprep.subr.mxu0 0.0
    %191 = vmatpush1.msra.mxu0 0.0
    %192 = vmatprep.subr.mxu0 0.0
    %193 = vmatpush1.msra.mxu0 0.0
    %194 = vmatprep.subr.mxu0 0.0
    %195 = vmatpush1.msra.mxu0 0.0
    %196 = vmatprep.subr.mxu0 0.0
    %197 = vmatpush1.msra.mxu0 0.0
    %198 = vmatprep.subr.mxu0 0.0
    %199 = vmatpush1.msra.mxu0 0.0
    %200 = vmatprep.subr.mxu0 0.0
    %201 = vmatpush1.msra.mxu0 0.0
    %202 = vmatprep.subr.mxu0 0.0
    %203 = vmatpush1.msra.mxu0 0.0
    %204 = vmatprep.subr.mxu0 0.0
    %205 = vmatpush1.msra.mxu0 0.0
    %206 = vmatprep.subr.mxu0 0.0
    %207 = vmatpush1.msra.mxu0 0.0
    %208 = vmatprep.subr.mxu0 0.0
    %209 = vmatpush1.msra.mxu0 %v177
    %210 = vmatprep.subr.mxu0 0.0
    %211 = vmatpush1.msra.mxu0 %v176
    %212 = vmatprep.subr.mxu0 0.0
    %213 = vmatpush1.msra.mxu0 %v175
    %214 = vmatprep.subr.mxu0 0.0
    %215 = vmatpush1.msra.mxu0 %v174
    %216 = vmatprep.subr.mxu0 0.0
    %217 = vmatpush2.msra.mxu0 0.0
    %218 = vmatprep.subr.mxu0 0.0
    %219 = vmatpush2.msra.mxu0 0.0
    %220 = vmatprep.subr.mxu0 0.0
    %221 = vmatpush2.msra.mxu0 0.0
    %222 = vmatprep.subr.mxu0 0.0
    %223 = vmatpush2.msra.mxu0 0.0
    %224 = vmatprep.subr.mxu0 0.0
    %225 = vmatpush2.msra.mxu0 0.0
    %226 = vmatprep.subr.mxu0 0.0
    %227 = vmatpush2.msra.mxu0 0.0
    %228 = vmatprep.subr.mxu0 0.0
    %229 = vmatpush2.msra.mxu0 0.0
    %230 = vmatprep.subr.mxu0 0.0
    %231 = vmatpush2.msra.mxu0 0.0
    %232 = vmatprep.subr.mxu0 0.0
    %233 = vmatpush2.msra.mxu0 0.0
    %234 = vmatprep.subr.mxu0 0.0
    %235 = vmatpush2.msra.mxu0 0.0
    %236 = vmatprep.subr.mxu0 0.0
    %237 = vmatpush2.msra.mxu0 0.0
    %238 = vmatprep.subr.mxu0 0.0
    %239 = vmatpush2.msra.mxu0 0.0
    %240 = vmatprep.subr.mxu0 0.0
    %241 = vmatpush2.msra.mxu0 0.0
    %242 = vmatprep.subr.mxu0 0.0
    %243 = vmatpush2.msra.mxu0 0.0
    %244 = vmatprep.subr.mxu0 0.0
    %245 = vmatpush2.msra.mxu0 0.0
    %246 = vmatprep.subr.mxu0 0.0
    %247 = vmatpush2.msra.mxu0 0.0
    %248 = vmatprep.mubr.f32.mxu0 0.0
    %249 = vmatmul.mubr.f32.gmra.mxu0 %v182
    %v250 = vpop.f32.mrf.mxu0
    %v251 = vadd.f32 0.0, %v250
    %v252 = vpop.f32.mrf.mxu0
    %253 = vdwg.mxu0
    %v254 = vadd.f32 %v166, %v251
    %v255 = vxor.u32 %v254, 2147483648
    %v256 = vmul.f32 %v255, 1.442695
    %v257 = vpow.pop %v256
    %v258 = vadd.f32 %v257, 1.0
    %v259 = vrcp.pop %v258
    %v260 = vmul.f32 1.0, %v259
    %v261 = vtanh.pop %v254
    %263 = vrot.lane.b32.xlu0 %v179, 32
    %v264 = vpop.permute.xlu0 %263
    %v266 = vmul.f32 %v260, %v264
    %268 = vrot.lane.b32.xlu0 %v261, 64
    %v269 = vpop.permute.xlu0 %268
    %v271 = vmul.f32 %v260, %v269
    %273 = vrot.lane.b32.xlu0 %v271, 32
    %v274 = vpop.permute.xlu0 %273
    %v276 = vadd.f32 %v266, %v274
    %v277 = vtanh.pop %v276
    %279 = vrot.lane.b32.xlu0 %v277, 64
    %v280 = vpop.permute.xlu0 %279
    %v282 = vmul.f32 %v260, %v280
    %284 = vrot.lane.b32.xlu0 %v282, 32
    %v285 = vpop.permute.xlu0 %284
    %vm287 = vcmask 254976
    %288 = vst.msk [vmem:[#allocation2] sm:$0x3] %vm287, %v285
    %v289 = vsel %vm180, %v285, 0
    %291 = vmatprep.subr.mxu0 0.0
    %292 = vmatpush1.msra.mxu0 0.0
    %293 = vmatprep.subr.mxu0 0.0
    %294 = vmatpush1.msra.mxu0 0.0
    %295 = vmatprep.subr.mxu0 0.0
    %296 = vmatpush1.msra.mxu0 0.0
    %297 = vmatprep.subr.mxu0 0.0
    %298 = vmatpush1.msra.mxu0 0.0
    %299 = vmatprep.subr.mxu0 0.0
    %300 = vmatpush1.msra.mxu0 0.0
    %301 = vmatprep.subr.mxu0 0.0
    %302 = vmatpush1.msra.mxu0 0.0
    %303 = vmatprep.subr.mxu0 0.0
    %304 = vmatpush1.msra.mxu0 0.0
    %305 = vmatprep.subr.mxu0 0.0
    %306 = vmatpush1.msra.mxu0 0.0
    %307 = vmatprep.subr.mxu0 0.0
    %308 = vmatpush1.msra.mxu0 0.0
    %309 = vmatprep.subr.mxu0 0.0
    %310 = vmatpush1.msra.mxu0 0.0
    %311 = vmatprep.subr.mxu0 0.0
    %312 = vmatpush1.msra.mxu0 0.0
    %313 = vmatprep.subr.mxu0 0.0
    %314 = vmatpush1.msra.mxu0 0.0
    %315 = vmatprep.subr.mxu0 0.0
    %316 = vmatpush1.msra.mxu0 %v177
    %317 = vmatprep.subr.mxu0 0.0
    %318 = vmatpush1.msra.mxu0 %v176
    %319 = vmatprep.subr.mxu0 0.0
    %320 = vmatpush1.msra.mxu0 %v175
    %321 = vmatprep.subr.mxu0 0.0
    %322 = vmatpush1.msra.mxu0 %v174
    %323 = vmatprep.subr.mxu0 0.0
    %324 = vmatpush2.msra.mxu0 0.0
    %325 = vmatprep.subr.mxu0 0.0
    %326 = vmatpush2.msra.mxu0 0.0
    %327 = vmatprep.subr.mxu0 0.0
    %328 = vmatpush2.msra.mxu0 0.0
    %329 = vmatprep.subr.mxu0 0.0
    %330 = vmatpush2.msra.mxu0 0.0
    %331 = vmatprep.subr.mxu0 0.0
    %332 = vmatpush2.msra.mxu0 0.0
    %333 = vmatprep.subr.mxu0 0.0
    %334 = vmatpush2.msra.mxu0 0.0
    %335 = vmatprep.subr.mxu0 0.0
    %336 = vmatpush2.msra.mxu0 0.0
    %337 = vmatprep.subr.mxu0 0.0
    %338 = vmatpush2.msra.mxu0 0.0
    %339 = vmatprep.subr.mxu0 0.0
    %340 = vmatpush2.msra.mxu0 0.0
    %341 = vmatprep.subr.mxu0 0.0
    %342 = vmatpush2.msra.mxu0 0.0
    %343 = vmatprep.subr.mxu0 0.0
    %344 = vmatpush2.msra.mxu0 0.0
    %345 = vmatprep.subr.mxu0 0.0
    %346 = vmatpush2.msra.mxu0 0.0
    %347 = vmatprep.subr.mxu0 0.0
    %348 = vmatpush2.msra.mxu0 0.0
    %349 = vmatprep.subr.mxu0 0.0
    %350 = vmatpush2.msra.mxu0 0.0
    %351 = vmatprep.subr.mxu0 0.0
    %352 = vmatpush2.msra.mxu0 0.0
    %353 = vmatprep.subr.mxu0 0.0
    %354 = vmatpush2.msra.mxu0 0.0
    %355 = vmatprep.mubr.f32.mxu0 0.0
    %356 = vmatmul.mubr.f32.gmra.mxu0 %v289
    %v357 = vpop.f32.mrf.mxu0
    %v358 = vadd.f32 0.0, %v357
    %v359 = vpop.f32.mrf.mxu0
    %360 = vdwg.mxu0
    %v362 = vrot.slane %v358, 6
    %v364 = vadd.f32 %v166, %v362
    %v365 = vxor.u32 %v364, 2147483648
    %v366 = vmul.f32 %v365, 1.442695
    %v367 = vpow.pop %v366
    %v368 = vadd.f32 %v367, 1.0
    %v369 = vrcp.pop %v368
    %v370 = vmul.f32 1.0, %v369
    %v371 = vtanh.pop %v364
    %v373 = vrot.slane %v276, 6
    %v375 = vmul.f32 %v370, %v373
    %377 = vrot.lane.b32.xlu0 %v371, 64
    %v378 = vpop.permute.xlu0 %377
    %v380 = vmul.f32 %v370, %v378
    %382 = vrot.lane.b32.xlu0 %v380, 32
    %v383 = vpop.permute.xlu0 %382
    %v385 = vadd.f32 %v375, %v383
    %v386 = vtanh.pop %v385
    %388 = vrot.lane.b32.xlu0 %v386, 64
    %v389 = vpop.permute.xlu0 %388
    %v391 = vmul.f32 %v370, %v389
    %393 = vrot.lane.b32.xlu0 %v391, 32
    %v394 = vpop.permute.xlu0 %393
    %vm396 = vcmask 257026
    %397 = vst.msk [vmem:[#allocation2] sm:$0xc] %vm396, %v394
    %v398 = vrot.slane %v391, 2
    %399 = vrot.lane.b32.xlu0 %v398, 32
    %v400 = vpop.permute.xlu0 %399
    %v401 = vsel %vm180, %v400, 0
    %403 = vmatprep.subr.mxu0 0.0
    %404 = vmatpush1.msra.mxu0 0.0
    %405 = vmatprep.subr.mxu0 0.0
    %406 = vmatpush1.msra.mxu0 0.0
    %407 = vmatprep.subr.mxu0 0.0
    %408 = vmatpush1.msra.mxu0 0.0
    %409 = vmatprep.subr.mxu0 0.0
    %410 = vmatpush1.msra.mxu0 0.0
    %411 = vmatprep.subr.mxu0 0.0
    %412 = vmatpush1.msra.mxu0 0.0
    %413 = vmatprep.subr.mxu0 0.0
    %414 = vmatpush1.msra.mxu0 0.0
    %415 = vmatprep.subr.mxu0 0.0
    %416 = vmatpush1.msra.mxu0 0.0
    %417 = vmatprep.subr.mxu0 0.0
    %418 = vmatpush1.msra.mxu0 0.0
    %419 = vmatprep.subr.mxu0 0.0
    %420 = vmatpush1.msra.mxu0 0.0
    %421 = vmatprep.subr.mxu0 0.0
    %422 = vmatpush1.msra.mxu0 0.0
    %423 = vmatprep.subr.mxu0 0.0
    %424 = vmatpush1.msra.mxu0 0.0
    %425 = vmatprep.subr.mxu0 0.0
    %426 = vmatpush1.msra.mxu0 0.0
    %427 = vmatprep.subr.mxu0 0.0
    %428 = vmatpush1.msra.mxu0 %v177
    %429 = vmatprep.subr.mxu0 0.0
    %430 = vmatpush1.msra.mxu0 %v176
    %431 = vmatprep.subr.mxu0 0.0
    %432 = vmatpush1.msra.mxu0 %v175
    %433 = vmatprep.subr.mxu0 0.0
    %434 = vmatpush1.msra.mxu0 %v174
    %435 = vmatprep.subr.mxu0 0.0
    %436 = vmatpush2.msra.mxu0 0.0
    %437 = vmatprep.subr.mxu0 0.0
    %438 = vmatpush2.msra.mxu0 0.0
    %439 = vmatprep.subr.mxu0 0.0
    %440 = vmatpush2.msra.mxu0 0.0
    %441 = vmatprep.subr.mxu0 0.0
    %442 = vmatpush2.msra.mxu0 0.0
    %443 = vmatprep.subr.mxu0 0.0
    %444 = vmatpush2.msra.mxu0 0.0
    %445 = vmatprep.subr.mxu0 0.0
    %446 = vmatpush2.msra.mxu0 0.0
    %447 = vmatprep.subr.mxu0 0.0
    %448 = vmatpush2.msra.mxu0 0.0
    %449 = vmatprep.subr.mxu0 0.0
    %450 = vmatpush2.msra.mxu0 0.0
    %451 = vmatprep.subr.mxu0 0.0
    %452 = vmatpush2.msra.mxu0 0.0
    %453 = vmatprep.subr.mxu0 0.0
    %454 = vmatpush2.msra.mxu0 0.0
    %455 = vmatprep.subr.mxu0 0.0
    %456 = vmatpush2.msra.mxu0 0.0
    %457 = vmatprep.subr.mxu0 0.0
    %458 = vmatpush2.msra.mxu0 0.0
    %459 = vmatprep.subr.mxu0 0.0
    %460 = vmatpush2.msra.mxu0 0.0
    %461 = vmatprep.subr.mxu0 0.0
    %462 = vmatpush2.msra.mxu0 0.0
    %463 = vmatprep.subr.mxu0 0.0
    %464 = vmatpush2.msra.mxu0 0.0
    %465 = vmatprep.subr.mxu0 0.0
    %466 = vmatpush2.msra.mxu0 0.0
    %467 = vmatprep.mubr.f32.mxu0 0.0
    %468 = vmatmul.mubr.f32.gmra.mxu0 %v401
    %v469 = vpop.f32.mrf.mxu0
    %v470 = vadd.f32 0.0, %v469
    %v471 = vpop.f32.mrf.mxu0
    %472 = vdwg.mxu0
    %v474 = vrot.slane %v470, 4
    %v476 = vadd.f32 %v166, %v474
    %v477 = vxor.u32 %v476, 2147483648
    %v478 = vmul.f32 %v477, 1.442695
    %v479 = vpow.pop %v478
    %v480 = vadd.f32 %v479, 1.0
    %v481 = vrcp.pop %v480
    %v482 = vmul.f32 1.0, %v481
    %v483 = vtanh.pop %v476
    %v485 = vrot.slane %v385, 6
    %v487 = vmul.f32 %v482, %v485
    %489 = vrot.lane.b32.xlu0 %v483, 64
    %v490 = vpop.permute.xlu0 %489
    %v492 = vmul.f32 %v482, %v490
    %494 = vrot.lane.b32.xlu0 %v492, 32
    %v495 = vpop.permute.xlu0 %494
    %v497 = vadd.f32 %v487, %v495
    %v498 = vtanh.pop %v497
    %500 = vrot.lane.b32.xlu0 %v498, 64
    %v501 = vpop.permute.xlu0 %500
    %v503 = vmul.f32 %v482, %v501
    %505 = vrot.lane.b32.xlu0 %v503, 32
    %v506 = vpop.permute.xlu0 %505
    %vm508 = vcmask 259076
    %509 = vst.msk [vmem:[#allocation2] sm:$0x30] %vm508, %v506
    %v510 = vrot.slane %v503, 4
    %511 = vrot.lane.b32.xlu0 %v510, 32
    %v512 = vpop.permute.xlu0 %511
    %v513 = vsel %vm180, %v512, 0
    %515 = vmatprep.subr.mxu0 0.0
    %516 = vmatpush1.msra.mxu0 0.0
    %517 = vmatprep.subr.mxu0 0.0
    %518 = vmatpush1.msra.mxu0 0.0
    %519 = vmatprep.subr.mxu0 0.0
    %520 = vmatpush1.msra.mxu0 0.0
    %521 = vmatprep.subr.mxu0 0.0
    %522 = vmatpush1.msra.mxu0 0.0
    %523 = vmatprep.subr.mxu0 0.0
    %524 = vmatpush1.msra.mxu0 0.0
    %525 = vmatprep.subr.mxu0 0.0
    %526 = vmatpush1.msra.mxu0 0.0
    %527 = vmatprep.subr.mxu0 0.0
    %528 = vmatpush1.msra.mxu0 0.0
    %529 = vmatprep.subr.mxu0 0.0
    %530 = vmatpush1.msra.mxu0 0.0
    %531 = vmatprep.subr.mxu0 0.0
    %532 = vmatpush1.msra.mxu0 0.0
    %533 = vmatprep.subr.mxu0 0.0
    %534 = vmatpush1.msra.mxu0 0.0
    %535 = vmatprep.subr.mxu0 0.0
    %536 = vmatpush1.msra.mxu0 0.0
    %537 = vmatprep.subr.mxu0 0.0
    %538 = vmatpush1.msra.mxu0 0.0
    %539 = vmatprep.subr.mxu0 0.0
    %540 = vmatpush1.msra.mxu0 %v177
    %541 = vmatprep.subr.mxu0 0.0
    %542 = vmatpush1.msra.mxu0 %v176
    %543 = vmatprep.subr.mxu0 0.0
    %544 = vmatpush1.msra.mxu0 %v175
    %545 = vmatprep.subr.mxu0 0.0
    %546 = vmatpush1.msra.mxu0 %v174
    %547 = vmatprep.subr.mxu0 0.0
    %548 = vmatpush2.msra.mxu0 0.0
    %549 = vmatprep.subr.mxu0 0.0
    %550 = vmatpush2.msra.mxu0 0.0
    %551 = vmatprep.subr.mxu0 0.0
    %552 = vmatpush2.msra.mxu0 0.0
    %553 = vmatprep.subr.mxu0 0.0
    %554 = vmatpush2.msra.mxu0 0.0
    %555 = vmatprep.subr.mxu0 0.0
    %556 = vmatpush2.msra.mxu0 0.0
    %557 = vmatprep.subr.mxu0 0.0
    %558 = vmatpush2.msra.mxu0 0.0
    %559 = vmatprep.subr.mxu0 0.0
    %560 = vmatpush2.msra.mxu0 0.0
    %561 = vmatprep.subr.mxu0 0.0
    %562 = vmatpush2.msra.mxu0 0.0
    %563 = vmatprep.subr.mxu0 0.0
    %564 = vmatpush2.msra.mxu0 0.0
    %565 = vmatprep.subr.mxu0 0.0
    %566 = vmatpush2.msra.mxu0 0.0
    %567 = vmatprep.subr.mxu0 0.0
    %568 = vmatpush2.msra.mxu0 0.0
    %569 = vmatprep.subr.mxu0 0.0
    %570 = vmatpush2.msra.mxu0 0.0
    %571 = vmatprep.subr.mxu0 0.0
    %572 = vmatpush2.msra.mxu0 0.0
    %573 = vmatprep.subr.mxu0 0.0
    %574 = vmatpush2.msra.mxu0 0.0
    %575 = vmatprep.subr.mxu0 0.0
    %576 = vmatpush2.msra.mxu0 0.0
    %577 = vmatprep.subr.mxu0 0.0
    %578 = vmatpush2.msra.mxu0 0.0
    %579 = vmatprep.mubr.f32.mxu0 0.0
    %580 = vmatmul.mubr.f32.gmra.mxu0 %v513
    %v581 = vpop.f32.mrf.mxu0
    %v582 = vadd.f32 0.0, %v581
    %v583 = vpop.f32.mrf.mxu0
    %584 = vdwg.mxu0
    %v586 = vrot.slane %v582, 2
    %v588 = vadd.f32 %v166, %v586
    %v589 = vxor.u32 %v588, 2147483648
    %v590 = vmul.f32 %v589, 1.442695
    %v591 = vpow.pop %v590
    %v592 = vadd.f32 %v591, 1.0
    %v593 = vrcp.pop %v592
    %v594 = vmul.f32 1.0, %v593
    %v595 = vtanh.pop %v588
    %v597 = vrot.slane %v497, 6
    %v599 = vmul.f32 %v594, %v597
    %601 = vrot.lane.b32.xlu0 %v595, 64
    %v602 = vpop.permute.xlu0 %601
    %v604 = vmul.f32 %v594, %v602
    %606 = vrot.lane.b32.xlu0 %v604, 32
    %v607 = vpop.permute.xlu0 %606
    %v609 = vadd.f32 %v599, %v607
    %v610 = vtanh.pop %v609
    %612 = vrot.lane.b32.xlu0 %v610, 64
    %v613 = vpop.permute.xlu0 %612
    %v615 = vmul.f32 %v594, %v613
    %617 = vrot.lane.b32.xlu0 %v615, 32
    %v618 = vpop.permute.xlu0 %617
    %vm620 = vcmask 261126
    %621 = vst.msk [vmem:[#allocation2] sm:$0xc0] %vm620, %v618
    %v622 = vrot.slane %v615, 6
    %623 = vrot.lane.b32.xlu0 %v622, 32
    %v624 = vpop.permute.xlu0 %623
    %v625 = vsel %vm180, %v624, 0
    %627 = vmatprep.subr.mxu0 0.0
    %628 = vmatpush1.msra.mxu0 0.0
    %629 = vmatprep.subr.mxu0 0.0
    %630 = vmatpush1.msra.mxu0 0.0
    %631 = vmatprep.subr.mxu0 0.0
    %632 = vmatpush1.msra.mxu0 0.0
    %633 = vmatprep.subr.mxu0 0.0
    %634 = vmatpush1.msra.mxu0 0.0
    %635 = vmatprep.subr.mxu0 0.0
    %636 = vmatpush1.msra.mxu0 0.0
    %637 = vmatprep.subr.mxu0 0.0
    %638 = vmatpush1.msra.mxu0 0.0
    %639 = vmatprep.subr.mxu0 0.0
    %640 = vmatpush1.msra.mxu0 0.0
    %641 = vmatprep.subr.mxu0 0.0
    %642 = vmatpush1.msra.mxu0 0.0
    %643 = vmatprep.subr.mxu0 0.0
    %644 = vmatpush1.msra.mxu0 0.0
    %645 = vmatprep.subr.mxu0 0.0
    %646 = vmatpush1.msra.mxu0 0.0
    %647 = vmatprep.subr.mxu0 0.0
    %648 = vmatpush1.msra.mxu0 0.0
    %649 = vmatprep.subr.mxu0 0.0
    %650 = vmatpush1.msra.mxu0 0.0
    %651 = vmatprep.subr.mxu0 0.0
    %652 = vmatpush1.msra.mxu0 %v177
    %653 = vmatprep.subr.mxu0 0.0
    %654 = vmatpush1.msra.mxu0 %v176
    %655 = vmatprep.subr.mxu0 0.0
    %656 = vmatpush1.msra.mxu0 %v175
    %657 = vmatprep.subr.mxu0 0.0
    %658 = vmatpush1.msra.mxu0 %v174
    %659 = vmatprep.subr.mxu0 0.0
    %660 = vmatpush2.msra.mxu0 0.0
    %661 = vmatprep.subr.mxu0 0.0
    %662 = vmatpush2.msra.mxu0 0.0
    %663 = vmatprep.subr.mxu0 0.0
    %664 = vmatpush2.msra.mxu0 0.0
    %665 = vmatprep.subr.mxu0 0.0
    %666 = vmatpush2.msra.mxu0 0.0
    %667 = vmatprep.subr.mxu0 0.0
    %668 = vmatpush2.msra.mxu0 0.0
    %669 = vmatprep.subr.mxu0 0.0
    %670 = vmatpush2.msra.mxu0 0.0
    %671 = vmatprep.subr.mxu0 0.0
    %672 = vmatpush2.msra.mxu0 0.0
    %673 = vmatprep.subr.mxu0 0.0
    %674 = vmatpush2.msra.mxu0 0.0
    %675 = vmatprep.subr.mxu0 0.0
    %676 = vmatpush2.msra.mxu0 0.0
    %677 = vmatprep.subr.mxu0 0.0
    %678 = vmatpush2.msra.mxu0 0.0
    %679 = vmatprep.subr.mxu0 0.0
    %680 = vmatpush2.msra.mxu0 0.0
    %681 = vmatprep.subr.mxu0 0.0
    %682 = vmatpush2.msra.mxu0 0.0
    %683 = vmatprep.subr.mxu0 0.0
    %684 = vmatpush2.msra.mxu0 0.0
    %685 = vmatprep.subr.mxu0 0.0
    %686 = vmatpush2.msra.mxu0 0.0
    %687 = vmatprep.subr.mxu0 0.0
    %688 = vmatpush2.msra.mxu0 0.0
    %689 = vmatprep.subr.mxu0 0.0
    %690 = vmatpush2.msra.mxu0 0.0
    %691 = vmatprep.mubr.f32.mxu0 0.0
    %692 = vmatmul.mubr.f32.gmra.mxu0 %v625
    %v693 = vpop.f32.mrf.mxu0
    %v694 = vadd.f32 0.0, %v693
    %v695 = vpop.f32.mrf.mxu0
    %696 = vdwg.mxu0
    %v697 = vadd.f32 %v171, %v694
    %v698 = vxor.u32 %v697, 2147483648
    %v699 = vmul.f32 %v698, 1.442695
    %v700 = vpow.pop %v699
    %v701 = vadd.f32 %v700, 1.0
    %v702 = vrcp.pop %v701
    %v703 = vmul.f32 1.0, %v702
    %v704 = vtanh.pop %v697
    %v706 = vrot.slane %v609, 6
    %v708 = vmul.f32 %v703, %v706
    %710 = vrot.lane.b32.xlu0 %v704, 64
    %v711 = vpop.permute.xlu0 %710
    %v713 = vmul.f32 %v703, %v711
    %715 = vrot.lane.b32.xlu0 %v713, 32
    %v716 = vpop.permute.xlu0 %715
    %v718 = vadd.f32 %v708, %v716
    %v719 = vtanh.pop %v718
    %721 = vrot.lane.b32.xlu0 %v719, 64
    %v722 = vpop.permute.xlu0 %721
    %v724 = vmul.f32 %v703, %v722
    %726 = vrot.lane.b32.xlu0 %v724, 32
    %v727 = vpop.permute.xlu0 %726
    %729 = vst.msk [vmem:[#allocation2 + $0x8] sm:$0x3] %vm287, %v727
    %v730 = vsel %vm180, %v727, 0
    %732 = vmatprep.subr.mxu0 0.0
    %733 = vmatpush1.msra.mxu0 0.0
    %734 = vmatprep.subr.mxu0 0.0
    %735 = vmatpush1.msra.mxu0 0.0
    %736 = vmatprep.subr.mxu0 0.0
    %737 = vmatpush1.msra.mxu0 0.0
    %738 = vmatprep.subr.mxu0 0.0
    %739 = vmatpush1.msra.mxu0 0.0
    %740 = vmatprep.subr.mxu0 0.0
    %741 = vmatpush1.msra.mxu0 0.0
    %742 = vmatprep.subr.mxu0 0.0
    %743 = vmatpush1.msra.mxu0 0.0
    %744 = vmatprep.subr.mxu0 0.0
    %745 = vmatpush1.msra.mxu0 0.0
    %746 = vmatprep.subr.mxu0 0.0
    %747 = vmatpush1.msra.mxu0 0.0
    %748 = vmatprep.subr.mxu0 0.0
    %749 = vmatpush1.msra.mxu0 0.0
    %750 = vmatprep.subr.mxu0 0.0
    %751 = vmatpush1.msra.mxu0 0.0
    %752 = vmatprep.subr.mxu0 0.0
    %753 = vmatpush1.msra.mxu0 0.0
    %754 = vmatprep.subr.mxu0 0.0
    %755 = vmatpush1.msra.mxu0 0.0
    %756 = vmatprep.subr.mxu0 0.0
    %757 = vmatpush1.msra.mxu0 %v177
    %758 = vmatprep.subr.mxu0 0.0
    %759 = vmatpush1.msra.mxu0 %v176
    %760 = vmatprep.subr.mxu0 0.0
    %761 = vmatpush1.msra.mxu0 %v175
    %762 = vmatprep.subr.mxu0 0.0
    %763 = vmatpush1.msra.mxu0 %v174
    %764 = vmatprep.subr.mxu0 0.0
    %765 = vmatpush2.msra.mxu0 0.0
    %766 = vmatprep.subr.mxu0 0.0
    %767 = vmatpush2.msra.mxu0 0.0
    %768 = vmatprep.subr.mxu0 0.0
    %769 = vmatpush2.msra.mxu0 0.0
    %770 = vmatprep.subr.mxu0 0.0
    %771 = vmatpush2.msra.mxu0 0.0
    %772 = vmatprep.subr.mxu0 0.0
    %773 = vmatpush2.msra.mxu0 0.0
    %774 = vmatprep.subr.mxu0 0.0
    %775 = vmatpush2.msra.mxu0 0.0
    %776 = vmatprep.subr.mxu0 0.0
    %777 = vmatpush2.msra.mxu0 0.0
    %778 = vmatprep.subr.mxu0 0.0
    %779 = vmatpush2.msra.mxu0 0.0
    %780 = vmatprep.subr.mxu0 0.0
    %781 = vmatpush2.msra.mxu0 0.0
    %782 = vmatprep.subr.mxu0 0.0
    %783 = vmatpush2.msra.mxu0 0.0
    %784 = vmatprep.subr.mxu0 0.0
    %785 = vmatpush2.msra.mxu0 0.0
    %786 = vmatprep.subr.mxu0 0.0
    %787 = vmatpush2.msra.mxu0 0.0
    %788 = vmatprep.subr.mxu0 0.0
    %789 = vmatpush2.msra.mxu0 0.0
    %790 = vmatprep.subr.mxu0 0.0
    %791 = vmatpush2.msra.mxu0 0.0
    %792 = vmatprep.subr.mxu0 0.0
    %793 = vmatpush2.msra.mxu0 0.0
    %794 = vmatprep.subr.mxu0 0.0
    %795 = vmatpush2.msra.mxu0 0.0
    %796 = vmatprep.mubr.f32.mxu0 0.0
    %797 = vmatmul.mubr.f32.gmra.mxu0 %v730
    %v798 = vpop.f32.mrf.mxu0
    %v799 = vadd.f32 0.0, %v798
    %v800 = vpop.f32.mrf.mxu0
    %801 = vdwg.mxu0
    %v803 = vrot.slane %v799, 6
    %v805 = vadd.f32 %v171, %v803
    %v806 = vxor.u32 %v805, 2147483648
    %v807 = vmul.f32 %v806, 1.442695
    %v808 = vpow.pop %v807
    %v809 = vadd.f32 %v808, 1.0
    %v810 = vrcp.pop %v809
    %v811 = vmul.f32 1.0, %v810
    %v812 = vtanh.pop %v805
    %v814 = vrot.slane %v718, 6
    %v816 = vmul.f32 %v811, %v814
    %818 = vrot.lane.b32.xlu0 %v812, 64
    %v819 = vpop.permute.xlu0 %818
    %v821 = vmul.f32 %v811, %v819
    %823 = vrot.lane.b32.xlu0 %v821, 32
    %v824 = vpop.permute.xlu0 %823
    %v826 = vadd.f32 %v816, %v824
    %v827 = vtanh.pop %v826
    %829 = vrot.lane.b32.xlu0 %v827, 64
    %v830 = vpop.permute.xlu0 %829
    %v832 = vmul.f32 %v811, %v830
    %834 = vrot.lane.b32.xlu0 %v832, 32
    %v835 = vpop.permute.xlu0 %834
    %837 = vst.msk [vmem:[#allocation2 + $0x8] sm:$0xc] %vm396, %v835
    %v838 = vrot.slane %v832, 2
    %839 = vrot.lane.b32.xlu0 %v838, 32
    %v840 = vpop.permute.xlu0 %839
    %v841 = vsel %vm180, %v840, 0
    %843 = vmatprep.subr.mxu0 0.0
    %844 = vmatpush1.msra.mxu0 0.0
    %845 = vmatprep.subr.mxu0 0.0
    %846 = vmatpush1.msra.mxu0 0.0
    %847 = vmatprep.subr.mxu0 0.0
    %848 = vmatpush1.msra.mxu0 0.0
    %849 = vmatprep.subr.mxu0 0.0
    %850 = vmatpush1.msra.mxu0 0.0
    %851 = vmatprep.subr.mxu0 0.0
    %852 = vmatpush1.msra.mxu0 0.0
    %853 = vmatprep.subr.mxu0 0.0
    %854 = vmatpush1.msra.mxu0 0.0
    %855 = vmatprep.subr.mxu0 0.0
    %856 = vmatpush1.msra.mxu0 0.0
    %857 = vmatprep.subr.mxu0 0.0
    %858 = vmatpush1.msra.mxu0 0.0
    %859 = vmatprep.subr.mxu0 0.0
    %860 = vmatpush1.msra.mxu0 0.0
    %861 = vmatprep.subr.mxu0 0.0
    %862 = vmatpush1.msra.mxu0 0.0
    %863 = vmatprep.subr.mxu0 0.0
    %864 = vmatpush1.msra.mxu0 0.0
    %865 = vmatprep.subr.mxu0 0.0
    %866 = vmatpush1.msra.mxu0 0.0
    %867 = vmatprep.subr.mxu0 0.0
    %868 = vmatpush1.msra.mxu0 %v177
    %869 = vmatprep.subr.mxu0 0.0
    %870 = vmatpush1.msra.mxu0 %v176
    %871 = vmatprep.subr.mxu0 0.0
    %872 = vmatpush1.msra.mxu0 %v175
    %873 = vmatprep.subr.mxu0 0.0
    %874 = vmatpush1.msra.mxu0 %v174
    %875 = vmatprep.subr.mxu0 0.0
    %876 = vmatpush2.msra.mxu0 0.0
    %877 = vmatprep.subr.mxu0 0.0
    %878 = vmatpush2.msra.mxu0 0.0
    %879 = vmatprep.subr.mxu0 0.0
    %880 = vmatpush2.msra.mxu0 0.0
    %881 = vmatprep.subr.mxu0 0.0
    %882 = vmatpush2.msra.mxu0 0.0
    %883 = vmatprep.subr.mxu0 0.0
    %884 = vmatpush2.msra.mxu0 0.0
    %885 = vmatprep.subr.mxu0 0.0
    %886 = vmatpush2.msra.mxu0 0.0
    %887 = vmatprep.subr.mxu0 0.0
    %888 = vmatpush2.msra.mxu0 0.0
    %889 = vmatprep.subr.mxu0 0.0
    %890 = vmatpush2.msra.mxu0 0.0
    %891 = vmatprep.subr.mxu0 0.0
    %892 = vmatpush2.msra.mxu0 0.0
    %893 = vmatprep.subr.mxu0 0.0
    %894 = vmatpush2.msra.mxu0 0.0
    %895 = vmatprep.subr.mxu0 0.0
    %896 = vmatpush2.msra.mxu0 0.0
    %897 = vmatprep.subr.mxu0 0.0
    %898 = vmatpush2.msra.mxu0 0.0
    %899 = vmatprep.subr.mxu0 0.0
    %900 = vmatpush2.msra.mxu0 0.0
    %901 = vmatprep.subr.mxu0 0.0
    %902 = vmatpush2.msra.mxu0 0.0
    %903 = vmatprep.subr.mxu0 0.0
    %904 = vmatpush2.msra.mxu0 0.0
    %905 = vmatprep.subr.mxu0 0.0
    %906 = vmatpush2.msra.mxu0 0.0
    %907 = vmatprep.mubr.f32.mxu0 0.0
    %908 = vmatmul.mubr.f32.gmra.mxu0 %v841
    %v909 = vpop.f32.mrf.mxu0
    %v910 = vadd.f32 0.0, %v909
    %v911 = vpop.f32.mrf.mxu0
    %912 = vdwg.mxu0
    %v914 = vrot.slane %v910, 4
    %v916 = vadd.f32 %v171, %v914
    %v917 = vxor.u32 %v916, 2147483648
    %v918 = vmul.f32 %v917, 1.442695
    %v919 = vpow.pop %v918
    %v920 = vadd.f32 %v919, 1.0
    %v921 = vrcp.pop %v920
    %v922 = vmul.f32 1.0, %v921
    %v923 = vtanh.pop %v916
    %v925 = vrot.slane %v826, 6
    %v927 = vmul.f32 %v922, %v925
    %929 = vrot.lane.b32.xlu0 %v923, 64
    %v930 = vpop.permute.xlu0 %929
    %v932 = vmul.f32 %v922, %v930
    %934 = vrot.lane.b32.xlu0 %v932, 32
    %v935 = vpop.permute.xlu0 %934
    %v937 = vadd.f32 %v927, %v935
    %v938 = vtanh.pop %v937
    %940 = vrot.lane.b32.xlu0 %v938, 64
    %v941 = vpop.permute.xlu0 %940
    %v943 = vmul.f32 %v922, %v941
    %945 = vrot.lane.b32.xlu0 %v943, 32
    %v946 = vpop.permute.xlu0 %945
    %948 = vst.msk [vmem:[#allocation2 + $0x8] sm:$0x30] %vm508, %v946
    %v949 = vrot.slane %v943, 4
    %950 = vrot.lane.b32.xlu0 %v949, 32
    %v951 = vpop.permute.xlu0 %950
    %v952 = vsel %vm180, %v951, 0
    %954 = vmatprep.subr.mxu0 0.0
    %955 = vmatpush1.msra.mxu0 0.0
    %956 = vmatprep.subr.mxu0 0.0
    %957 = vmatpush1.msra.mxu0 0.0
    %958 = vmatprep.subr.mxu0 0.0
    %959 = vmatpush1.msra.mxu0 0.0
    %960 = vmatprep.subr.mxu0 0.0
    %961 = vmatpush1.msra.mxu0 0.0
    %962 = vmatprep.subr.mxu0 0.0
    %963 = vmatpush1.msra.mxu0 0.0
    %964 = vmatprep.subr.mxu0 0.0
    %965 = vmatpush1.msra.mxu0 0.0
    %966 = vmatprep.subr.mxu0 0.0
    %967 = vmatpush1.msra.mxu0 0.0
    %968 = vmatprep.subr.mxu0 0.0
    %969 = vmatpush1.msra.mxu0 0.0
    %970 = vmatprep.subr.mxu0 0.0
    %971 = vmatpush1.msra.mxu0 0.0
    %972 = vmatprep.subr.mxu0 0.0
    %973 = vmatpush1.msra.mxu0 0.0
    %974 = vmatprep.subr.mxu0 0.0
    %975 = vmatpush1.msra.mxu0 0.0
    %976 = vmatprep.subr.mxu0 0.0
    %977 = vmatpush1.msra.mxu0 0.0
    %978 = vmatprep.subr.mxu0 0.0
    %979 = vmatpush1.msra.mxu0 %v177
    %980 = vmatprep.subr.mxu0 0.0
    %981 = vmatpush1.msra.mxu0 %v176
    %982 = vmatprep.subr.mxu0 0.0
    %983 = vmatpush1.msra.mxu0 %v175
    %984 = vmatprep.subr.mxu0 0.0
    %985 = vmatpush1.msra.mxu0 %v174
    %986 = vmatprep.subr.mxu0 0.0
    %987 = vmatpush2.msra.mxu0 0.0
    %988 = vmatprep.subr.mxu0 0.0
    %989 = vmatpush2.msra.mxu0 0.0
    %990 = vmatprep.subr.mxu0 0.0
    %991 = vmatpush2.msra.mxu0 0.0
    %992 = vmatprep.subr.mxu0 0.0
    %993 = vmatpush2.msra.mxu0 0.0
    %994 = vmatprep.subr.mxu0 0.0
    %995 = vmatpush2.msra.mxu0 0.0
    %996 = vmatprep.subr.mxu0 0.0
    %997 = vmatpush2.msra.mxu0 0.0
    %998 = vmatprep.subr.mxu0 0.0
    %999 = vmatpush2.msra.mxu0 0.0
    %1000 = vmatprep.subr.mxu0 0.0
    %1001 = vmatpush2.msra.mxu0 0.0
    %1002 = vmatprep.subr.mxu0 0.0
    %1003 = vmatpush2.msra.mxu0 0.0
    %1004 = vmatprep.subr.mxu0 0.0
    %1005 = vmatpush2.msra.mxu0 0.0
    %1006 = vmatprep.subr.mxu0 0.0
    %1007 = vmatpush2.msra.mxu0 0.0
    %1008 = vmatprep.subr.mxu0 0.0
    %1009 = vmatpush2.msra.mxu0 0.0
    %1010 = vmatprep.subr.mxu0 0.0
    %1011 = vmatpush2.msra.mxu0 0.0
    %1012 = vmatprep.subr.mxu0 0.0
    %1013 = vmatpush2.msra.mxu0 0.0
    %1014 = vmatprep.subr.mxu0 0.0
    %1015 = vmatpush2.msra.mxu0 0.0
    %1016 = vmatprep.subr.mxu0 0.0
    %1017 = vmatpush2.msra.mxu0 0.0
    %1018 = vmatprep.mubr.f32.mxu0 0.0
    %1019 = vmatmul.mubr.f32.gmra.mxu0 %v952
    %v1020 = vpop.f32.mrf.mxu0
    %v1021 = vadd.f32 0.0, %v1020
    %v1022 = vpop.f32.mrf.mxu0
    %1023 = vdwg.mxu0
    %v1025 = vrot.slane %v1021, 2
    %v1027 = vadd.f32 %v171, %v1025
    %v1028 = vxor.u32 %v1027, 2147483648
    %v1029 = vmul.f32 %v1028, 1.442695
    %v1030 = vpow.pop %v1029
    %v1031 = vadd.f32 %v1030, 1.0
    %v1032 = vrcp.pop %v1031
    %v1033 = vmul.f32 1.0, %v1032
    %v1034 = vtanh.pop %v1027
    %v1036 = vrot.slane %v937, 6
    %v1038 = vmul.f32 %v1033, %v1036
    %1040 = vrot.lane.b32.xlu0 %v1034, 64
    %v1041 = vpop.permute.xlu0 %1040
    %v1043 = vmul.f32 %v1033, %v1041
    %1045 = vrot.lane.b32.xlu0 %v1043, 32
    %v1046 = vpop.permute.xlu0 %1045
    %v1048 = vadd.f32 %v1038, %v1046
    %v1049 = vtanh.pop %v1048
    %1051 = vrot.lane.b32.xlu0 %v1049, 64
    %v1052 = vpop.permute.xlu0 %1051
    %v1054 = vmul.f32 %v1033, %v1052
    %1056 = vrot.lane.b32.xlu0 %v1054, 32
    %v1057 = vpop.permute.xlu0 %1056
    %1059 = vst.msk [vmem:[#allocation2 + $0x8] sm:$0xc0] %vm620, %v1057
    %v1060 = vld [vmem:[#allocation2] sm:$0xff]
    %v1061 = vld [vmem:[#allocation2 + $0x8] sm:$0xff]
    %v1062 = vld [vmem:[%s4] sm:$0xff]
    %v1063 = vld [vmem:[%s5] sm:$0xff]
    %v1064 = vld [vmem:[%s5 + $0x8] sm:$0xff]
    %v1065 = vld [vmem:[%s5 + $0x10] sm:$0xff]
    %v1066 = vld [vmem:[%s5 + $0x18] sm:$0xff]
    %v1068 = vsel %vm180, %v1060, 0
    %v1071 = vsel %vm180, %v1061, 0
    %1073 = vmatprep.subr.mxu0 0.0
    %1074 = vmatpush1.msra.mxu0 0.0
    %1075 = vmatprep.subr.mxu0 0.0
    %1076 = vmatpush1.msra.mxu0 0.0
    %1077 = vmatprep.subr.mxu0 0.0
    %1078 = vmatpush1.msra.mxu0 0.0
    %1079 = vmatprep.subr.mxu0 0.0
    %1080 = vmatpush1.msra.mxu0 0.0
    %1081 = vmatprep.subr.mxu0 0.0
    %1082 = vmatpush1.msra.mxu0 0.0
    %1083 = vmatprep.subr.mxu0 0.0
    %1084 = vmatpush1.msra.mxu0 0.0
    %1085 = vmatprep.subr.mxu0 0.0
    %1086 = vmatpush1.msra.mxu0 0.0
    %1087 = vmatprep.subr.mxu0 0.0
    %1088 = vmatpush1.msra.mxu0 0.0
    %1089 = vmatprep.subr.mxu0 0.0
    %1090 = vmatpush1.msra.mxu0 0.0
    %1091 = vmatprep.subr.mxu0 0.0
    %1092 = vmatpush1.msra.mxu0 0.0
    %1093 = vmatprep.subr.mxu0 0.0
    %1094 = vmatpush1.msra.mxu0 0.0
    %1095 = vmatprep.subr.mxu0 0.0
    %1096 = vmatpush1.msra.mxu0 0.0
    %1097 = vmatprep.subr.mxu0 0.0
    %1098 = vmatpush1.msra.mxu0 %v1066
    %1099 = vmatprep.subr.mxu0 0.0
    %1100 = vmatpush1.msra.mxu0 %v1065
    %1101 = vmatprep.subr.mxu0 0.0
    %1102 = vmatpush1.msra.mxu0 %v1064
    %1103 = vmatprep.subr.mxu0 0.0
    %1104 = vmatpush1.msra.mxu0 %v1063
    %1105 = vmatprep.subr.mxu0 0.0
    %1106 = vmatpush2.msra.mxu0 0.0
    %1107 = vmatprep.subr.mxu0 0.0
    %1108 = vmatpush2.msra.mxu0 0.0
    %1109 = vmatprep.subr.mxu0 0.0
    %1110 = vmatpush2.msra.mxu0 0.0
    %1111 = vmatprep.subr.mxu0 0.0
    %1112 = vmatpush2.msra.mxu0 0.0
    %1113 = vmatprep.subr.mxu0 0.0
    %1114 = vmatpush2.msra.mxu0 0.0
    %1115 = vmatprep.subr.mxu0 0.0
    %1116 = vmatpush2.msra.mxu0 0.0
    %1117 = vmatprep.subr.mxu0 0.0
    %1118 = vmatpush2.msra.mxu0 0.0
    %1119 = vmatprep.subr.mxu0 0.0
    %1120 = vmatpush2.msra.mxu0 0.0
    %1121 = vmatprep.subr.mxu0 0.0
    %1122 = vmatpush2.msra.mxu0 0.0
    %1123 = vmatprep.subr.mxu0 0.0
    %1124 = vmatpush2.msra.mxu0 0.0
    %1125 = vmatprep.subr.mxu0 0.0
    %1126 = vmatpush2.msra.mxu0 0.0
    %1127 = vmatprep.subr.mxu0 0.0
    %1128 = vmatpush2.msra.mxu0 0.0
    %1129 = vmatprep.subr.mxu0 0.0
    %1130 = vmatpush2.msra.mxu0 0.0
    %1131 = vmatprep.subr.mxu0 0.0
    %1132 = vmatpush2.msra.mxu0 0.0
    %1133 = vmatprep.subr.mxu0 0.0
    %1134 = vmatpush2.msra.mxu0 0.0
    %1135 = vmatprep.subr.mxu0 0.0
    %1136 = vmatpush2.msra.mxu0 0.0
    %1137 = vmatprep.mubr.f32.mxu0 0.0
    %1138 = vmatmul.mubr.f32.gmra.mxu0 %v1068
    %v1139 = vpop.f32.mrf.mxu0
    %v1140 = vadd.f32 0.0, %v1139
    %v1141 = vpop.f32.mrf.mxu0
    %1142 = vmatprep.mubr.f32.mxu0 0.0
    %1143 = vmatmul.mubr.f32.gmra.mxu0 %v1071
    %v1144 = vpop.f32.mrf.mxu0
    %v1145 = vadd.f32 0.0, %v1144
    %v1146 = vpop.f32.mrf.mxu0
    %1147 = vdwg.mxu0
    %1148 = vmatprep.subr.mxu0 0.0
    %1149 = vmatpush1.msra.mxu0 0.0
    %1150 = vmatprep.subr.mxu0 0.0
    %1151 = vmatpush1.msra.mxu0 0.0
    %1152 = vmatprep.subr.mxu0 0.0
    %1153 = vmatpush1.msra.mxu0 0.0
    %1154 = vmatprep.subr.mxu0 0.0
    %1155 = vmatpush1.msra.mxu0 0.0
    %1156 = vmatprep.subr.mxu0 0.0
    %1157 = vmatpush1.msra.mxu0 0.0
    %1158 = vmatprep.subr.mxu0 0.0
    %1159 = vmatpush1.msra.mxu0 0.0
    %1160 = vmatprep.subr.mxu0 0.0
    %1161 = vmatpush1.msra.mxu0 0.0
    %1162 = vmatprep.subr.mxu0 0.0
    %1163 = vmatpush1.msra.mxu0 0.0
    %1164 = vmatprep.subr.mxu0 0.0
    %1165 = vmatpush1.msra.mxu0 0.0
    %1166 = vmatprep.subr.mxu0 0.0
    %1167 = vmatpush1.msra.mxu0 0.0
    %1168 = vmatprep.subr.mxu0 0.0
    %1169 = vmatpush1.msra.mxu0 0.0
    %1170 = vmatprep.subr.mxu0 0.0
    %1171 = vmatpush1.msra.mxu0 0.0
    %1172 = vmatprep.subr.mxu0 0.0
    %1173 = vmatpush1.msra.mxu0 0.0
    %1174 = vmatprep.subr.mxu0 0.0
    %1175 = vmatpush1.msra.mxu0 0.0
    %1176 = vmatprep.subr.mxu0 0.0
    %1177 = vmatpush1.msra.mxu0 0.0
    %1178 = vmatprep.subr.mxu0 0.0
    %1179 = vmatpush1.msra.mxu0 %v1062
    %1180 = vmatprep.subr.mxu0 0.0
    %1181 = vmatpush2.msra.mxu0 0.0
    %1182 = vmatprep.subr.mxu0 0.0
    %1183 = vmatpush2.msra.mxu0 0.0
    %1184 = vmatprep.subr.mxu0 0.0
    %1185 = vmatpush2.msra.mxu0 0.0
    %1186 = vmatprep.subr.mxu0 0.0
    %1187 = vmatpush2.msra.mxu0 0.0
    %1188 = vmatprep.subr.mxu0 0.0
    %1189 = vmatpush2.msra.mxu0 0.0
    %1190 = vmatprep.subr.mxu0 0.0
    %1191 = vmatpush2.msra.mxu0 0.0
    %1192 = vmatprep.subr.mxu0 0.0
    %1193 = vmatpush2.msra.mxu0 0.0
    %1194 = vmatprep.subr.mxu0 0.0
    %1195 = vmatpush2.msra.mxu0 0.0
    %1196 = vmatprep.subr.mxu0 0.0
    %1197 = vmatpush2.msra.mxu0 0.0
    %1198 = vmatprep.subr.mxu0 0.0
    %1199 = vmatpush2.msra.mxu0 0.0
    %1200 = vmatprep.subr.mxu0 0.0
    %1201 = vmatpush2.msra.mxu0 0.0
    %1202 = vmatprep.subr.mxu0 0.0
    %1203 = vmatpush2.msra.mxu0 0.0
    %1204 = vmatprep.subr.mxu0 0.0
    %1205 = vmatpush2.msra.mxu0 0.0
    %1206 = vmatprep.subr.mxu0 0.0
    %1207 = vmatpush2.msra.mxu0 0.0
    %1208 = vmatprep.subr.mxu0 0.0
    %1209 = vmatpush2.msra.mxu0 0.0
    %1210 = vmatprep.subr.mxu0 0.0
    %1211 = vmatpush2.msra.mxu0 0.0
    %1212 = vmatprep.mubr.f32.mxu0 0.0
    %1213 = vmatmul.mubr.f32.gmra.mxu0 %v94
    %v1214 = vpop.f32.mrf.mxu0
    %v1215 = vadd.f32 %v1140, %v1214
    %v1216 = vpop.f32.mrf.mxu0
    %1217 = vmatprep.mubr.f32.mxu0 0.0
    %1218 = vmatmul.mubr.f32.gmra.mxu0 %v97
    %v1219 = vpop.f32.mrf.mxu0
    %v1220 = vadd.f32 %v1145, %v1219
    %v1221 = vpop.f32.mrf.mxu0
    %1222 = vdwg.mxu0
    %v1223 = vld [vmem:[%s7] sm:$0x1]
    %v1225 = vlaneseq
    %v1226 = vshrl.u32 %v1225, 7
    %v1227 = vsub.s32 0, %v1226
    %v1228 = vrot.slane %v1223, %v1227
    %v1230 = vadd.f32 %v1215, %v1228
    %v1231 = vadd.f32 %v1220, %v1228
    %v1232 = vld [vmem:[%s6] sm:$0xff]
    %v1233 = vld [vmem:[%s6 + $0x8] sm:$0xff]
    %v1234 = vld [vmem:[%s6 + $0x10] sm:$0xff]
    %v1235 = vld [vmem:[%s6 + $0x18] sm:$0xff]
    %v1236 = vld [vmem:[%s18] sm:$0x3]
    %v1237 = vld [vmem:[%s19] sm:$0x3]
    %v1239 = vsel %vm180, %v1236, 0
    %1241 = vmatprep.subr.mxu0 0.0
    %1242 = vmatpush1.msra.mxu0 0.0
    %1243 = vmatprep.subr.mxu0 0.0
    %1244 = vmatpush1.msra.mxu0 0.0
    %1245 = vmatprep.subr.mxu0 0.0
    %1246 = vmatpush1.msra.mxu0 0.0
    %1247 = vmatprep.subr.mxu0 0.0
    %1248 = vmatpush1.msra.mxu0 0.0
    %1249 = vmatprep.subr.mxu0 0.0
    %1250 = vmatpush1.msra.mxu0 0.0
    %1251 = vmatprep.subr.mxu0 0.0
    %1252 = vmatpush1.msra.mxu0 0.0
    %1253 = vmatprep.subr.mxu0 0.0
    %1254 = vmatpush1.msra.mxu0 0.0
    %1255 = vmatprep.subr.mxu0 0.0
    %1256 = vmatpush1.msra.mxu0 0.0
    %1257 = vmatprep.subr.mxu0 0.0
    %1258 = vmatpush1.msra.mxu0 0.0
    %1259 = vmatprep.subr.mxu0 0.0
    %1260 = vmatpush1.msra.mxu0 0.0
    %1261 = vmatprep.subr.mxu0 0.0
    %1262 = vmatpush1.msra.mxu0 0.0
    %1263 = vmatprep.subr.mxu0 0.0
    %1264 = vmatpush1.msra.mxu0 0.0
    %1265 = vmatprep.subr.mxu0 0.0
    %1266 = vmatpush1.msra.mxu0 %v1235
    %1267 = vmatprep.subr.mxu0 0.0
    %1268 = vmatpush1.msra.mxu0 %v1234
    %1269 = vmatprep.subr.mxu0 0.0
    %1270 = vmatpush1.msra.mxu0 %v1233
    %1271 = vmatprep.subr.mxu0 0.0
    %1272 = vmatpush1.msra.mxu0 %v1232
    %1273 = vmatprep.subr.mxu0 0.0
    %1274 = vmatpush2.msra.mxu0 0.0
    %1275 = vmatprep.subr.mxu0 0.0
    %1276 = vmatpush2.msra.mxu0 0.0
    %1277 = vmatprep.subr.mxu0 0.0
    %1278 = vmatpush2.msra.mxu0 0.0
    %1279 = vmatprep.subr.mxu0 0.0
    %1280 = vmatpush2.msra.mxu0 0.0
    %1281 = vmatprep.subr.mxu0 0.0
    %1282 = vmatpush2.msra.mxu0 0.0
    %1283 = vmatprep.subr.mxu0 0.0
    %1284 = vmatpush2.msra.mxu0 0.0
    %1285 = vmatprep.subr.mxu0 0.0
    %1286 = vmatpush2.msra.mxu0 0.0
    %1287 = vmatprep.subr.mxu0 0.0
    %1288 = vmatpush2.msra.mxu0 0.0
    %1289 = vmatprep.subr.mxu0 0.0
    %1290 = vmatpush2.msra.mxu0 0.0
    %1291 = vmatprep.subr.mxu0 0.0
    %1292 = vmatpush2.msra.mxu0 0.0
    %1293 = vmatprep.subr.mxu0 0.0
    %1294 = vmatpush2.msra.mxu0 0.0
    %1295 = vmatprep.subr.mxu0 0.0
    %1296 = vmatpush2.msra.mxu0 0.0
    %1297 = vmatprep.subr.mxu0 0.0
    %1298 = vmatpush2.msra.mxu0 0.0
    %1299 = vmatprep.subr.mxu0 0.0
    %1300 = vmatpush2.msra.mxu0 0.0
    %1301 = vmatprep.subr.mxu0 0.0
    %1302 = vmatpush2.msra.mxu0 0.0
    %1303 = vmatprep.subr.mxu0 0.0
    %1304 = vmatpush2.msra.mxu0 0.0
    %1305 = vmatprep.mubr.f32.mxu0 0.0
    %1306 = vmatmul.mubr.f32.gmra.mxu0 %v1239
    %v1307 = vpop.f32.mrf.mxu0
    %v1308 = vadd.f32 0.0, %v1307
    %v1309 = vpop.f32.mrf.mxu0
    %1310 = vdwg.mxu0
    %v1311 = vadd.f32 %v1230, %v1308
    %v1312 = vxor.u32 %v1311, 2147483648
    %v1313 = vmul.f32 %v1312, 1.442695
    %v1314 = vpow.pop %v1313
    %v1315 = vadd.f32 %v1314, 1.0
    %v1316 = vrcp.pop %v1315
    %v1317 = vmul.f32 1.0, %v1316
    %v1318 = vtanh.pop %v1311
    %1320 = vrot.lane.b32.xlu0 %v1237, 32
    %v1321 = vpop.permute.xlu0 %1320
    %v1323 = vmul.f32 %v1317, %v1321
    %1325 = vrot.lane.b32.xlu0 %v1318, 64
    %v1326 = vpop.permute.xlu0 %1325
    %v1328 = vmul.f32 %v1317, %v1326
    %1330 = vrot.lane.b32.xlu0 %v1328, 32
    %v1331 = vpop.permute.xlu0 %1330
    %v1333 = vadd.f32 %v1323, %v1331
    %v1334 = vtanh.pop %v1333
    %1336 = vrot.lane.b32.xlu0 %v1334, 64
    %v1337 = vpop.permute.xlu0 %1336
    %v1339 = vmul.f32 %v1317, %v1337
    %1341 = vrot.lane.b32.xlu0 %v1339, 32
    %v1342 = vpop.permute.xlu0 %1341
    %1344 = vst.msk [vmem:[#allocation3] sm:$0x3] %vm287, %v1342
    %v1345 = vsel %vm180, %v1342, 0
    %1347 = vmatprep.subr.mxu0 0.0
    %1348 = vmatpush1.msra.mxu0 0.0
    %1349 = vmatprep.subr.mxu0 0.0
    %1350 = vmatpush1.msra.mxu0 0.0
    %1351 = vmatprep.subr.mxu0 0.0
    %1352 = vmatpush1.msra.mxu0 0.0
    %1353 = vmatprep.subr.mxu0 0.0
    %1354 = vmatpush1.msra.mxu0 0.0
    %1355 = vmatprep.subr.mxu0 0.0
    %1356 = vmatpush1.msra.mxu0 0.0
    %1357 = vmatprep.subr.mxu0 0.0
    %1358 = vmatpush1.msra.mxu0 0.0
    %1359 = vmatprep.subr.mxu0 0.0
    %1360 = vmatpush1.msra.mxu0 0.0
    %1361 = vmatprep.subr.mxu0 0.0
    %1362 = vmatpush1.msra.mxu0 0.0
    %1363 = vmatprep.subr.mxu0 0.0
    %1364 = vmatpush1.msra.mxu0 0.0
    %1365 = vmatprep.subr.mxu0 0.0
    %1366 = vmatpush1.msra.mxu0 0.0
    %1367 = vmatprep.subr.mxu0 0.0
    %1368 = vmatpush1.msra.mxu0 0.0
    %1369 = vmatprep.subr.mxu0 0.0
    %1370 = vmatpush1.msra.mxu0 0.0
    %1371 = vmatprep.subr.mxu0 0.0
    %1372 = vmatpush1.msra.mxu0 %v1235
    %1373 = vmatprep.subr.mxu0 0.0
    %1374 = vmatpush1.msra.mxu0 %v1234
    %1375 = vmatprep.subr.mxu0 0.0
    %1376 = vmatpush1.msra.mxu0 %v1233
    %1377 = vmatprep.subr.mxu0 0.0
    %1378 = vmatpush1.msra.mxu0 %v1232
    %1379 = vmatprep.subr.mxu0 0.0
    %1380 = vmatpush2.msra.mxu0 0.0
    %1381 = vmatprep.subr.mxu0 0.0
    %1382 = vmatpush2.msra.mxu0 0.0
    %1383 = vmatprep.subr.mxu0 0.0
    %1384 = vmatpush2.msra.mxu0 0.0
    %1385 = vmatprep.subr.mxu0 0.0
    %1386 = vmatpush2.msra.mxu0 0.0
    %1387 = vmatprep.subr.mxu0 0.0
    %1388 = vmatpush2.msra.mxu0 0.0
    %1389 = vmatprep.subr.mxu0 0.0
    %1390 = vmatpush2.msra.mxu0 0.0
    %1391 = vmatprep.subr.mxu0 0.0
    %1392 = vmatpush2.msra.mxu0 0.0
    %1393 = vmatprep.subr.mxu0 0.0
    %1394 = vmatpush2.msra.mxu0 0.0
    %1395 = vmatprep.subr.mxu0 0.0
    %1396 = vmatpush2.msra.mxu0 0.0
    %1397 = vmatprep.subr.mxu0 0.0
    %1398 = vmatpush2.msra.mxu0 0.0
    %1399 = vmatprep.subr.mxu0 0.0
    %1400 = vmatpush2.msra.mxu0 0.0
    %1401 = vmatprep.subr.mxu0 0.0
    %1402 = vmatpush2.msra.mxu0 0.0
    %1403 = vmatprep.subr.mxu0 0.0
    %1404 = vmatpush2.msra.mxu0 0.0
    %1405 = vmatprep.subr.mxu0 0.0
    %1406 = vmatpush2.msra.mxu0 0.0
    %1407 = vmatprep.subr.mxu0 0.0
    %1408 = vmatpush2.msra.mxu0 0.0
    %1409 = vmatprep.subr.mxu0 0.0
    %1410 = vmatpush2.msra.mxu0 0.0
    %1411 = vmatprep.mubr.f32.mxu0 0.0
    %1412 = vmatmul.mubr.f32.gmra.mxu0 %v1345
    %v1413 = vpop.f32.mrf.mxu0
    %v1414 = vadd.f32 0.0, %v1413
    %v1415 = vpop.f32.mrf.mxu0
    %1416 = vdwg.mxu0
    %v1418 = vrot.slane %v1414, 6
    %v1420 = vadd.f32 %v1230, %v1418
    %v1421 = vxor.u32 %v1420, 2147483648
    %v1422 = vmul.f32 %v1421, 1.442695
    %v1423 = vpow.pop %v1422
    %v1424 = vadd.f32 %v1423, 1.0
    %v1425 = vrcp.pop %v1424
    %v1426 = vmul.f32 1.0, %v1425
    %v1427 = vtanh.pop %v1420
    %v1429 = vrot.slane %v1333, 6
    %v1431 = vmul.f32 %v1426, %v1429
    %1433 = vrot.lane.b32.xlu0 %v1427, 64
    %v1434 = vpop.permute.xlu0 %1433
    %v1436 = vmul.f32 %v1426, %v1434
    %1438 = vrot.lane.b32.xlu0 %v1436, 32
    %v1439 = vpop.permute.xlu0 %1438
    %v1441 = vadd.f32 %v1431, %v1439
    %v1442 = vtanh.pop %v1441
    %1444 = vrot.lane.b32.xlu0 %v1442, 64
    %v1445 = vpop.permute.xlu0 %1444
    %v1447 = vmul.f32 %v1426, %v1445
    %1449 = vrot.lane.b32.xlu0 %v1447, 32
    %v1450 = vpop.permute.xlu0 %1449
    %1452 = vst.msk [vmem:[#allocation3] sm:$0xc] %vm396, %v1450
    %v1453 = vrot.slane %v1447, 2
    %1454 = vrot.lane.b32.xlu0 %v1453, 32
    %v1455 = vpop.permute.xlu0 %1454
    %v1456 = vsel %vm180, %v1455, 0
    %1458 = vmatprep.subr.mxu0 0.0
    %1459 = vmatpush1.msra.mxu0 0.0
    %1460 = vmatprep.subr.mxu0 0.0
    %1461 = vmatpush1.msra.mxu0 0.0
    %1462 = vmatprep.subr.mxu0 0.0
    %1463 = vmatpush1.msra.mxu0 0.0
    %1464 = vmatprep.subr.mxu0 0.0
    %1465 = vmatpush1.msra.mxu0 0.0
    %1466 = vmatprep.subr.mxu0 0.0
    %1467 = vmatpush1.msra.mxu0 0.0
    %1468 = vmatprep.subr.mxu0 0.0
    %1469 = vmatpush1.msra.mxu0 0.0
    %1470 = vmatprep.subr.mxu0 0.0
    %1471 = vmatpush1.msra.mxu0 0.0
    %1472 = vmatprep.subr.mxu0 0.0
    %1473 = vmatpush1.msra.mxu0 0.0
    %1474 = vmatprep.subr.mxu0 0.0
    %1475 = vmatpush1.msra.mxu0 0.0
    %1476 = vmatprep.subr.mxu0 0.0
    %1477 = vmatpush1.msra.mxu0 0.0
    %1478 = vmatprep.subr.mxu0 0.0
    %1479 = vmatpush1.msra.mxu0 0.0
    %1480 = vmatprep.subr.mxu0 0.0
    %1481 = vmatpush1.msra.mxu0 0.0
    %1482 = vmatprep.subr.mxu0 0.0
    %1483 = vmatpush1.msra.mxu0 %v1235
    %1484 = vmatprep.subr.mxu0 0.0
    %1485 = vmatpush1.msra.mxu0 %v1234
    %1486 = vmatprep.subr.mxu0 0.0
    %1487 = vmatpush1.msra.mxu0 %v1233
    %1488 = vmatprep.subr.mxu0 0.0
    %1489 = vmatpush1.msra.mxu0 %v1232
    %1490 = vmatprep.subr.mxu0 0.0
    %1491 = vmatpush2.msra.mxu0 0.0
    %1492 = vmatprep.subr.mxu0 0.0
    %1493 = vmatpush2.msra.mxu0 0.0
    %1494 = vmatprep.subr.mxu0 0.0
    %1495 = vmatpush2.msra.mxu0 0.0
    %1496 = vmatprep.subr.mxu0 0.0
    %1497 = vmatpush2.msra.mxu0 0.0
    %1498 = vmatprep.subr.mxu0 0.0
    %1499 = vmatpush2.msra.mxu0 0.0
    %1500 = vmatprep.subr.mxu0 0.0
    %1501 = vmatpush2.msra.mxu0 0.0
    %1502 = vmatprep.subr.mxu0 0.0
    %1503 = vmatpush2.msra.mxu0 0.0
    %1504 = vmatprep.subr.mxu0 0.0
    %1505 = vmatpush2.msra.mxu0 0.0
    %1506 = vmatprep.subr.mxu0 0.0
    %1507 = vmatpush2.msra.mxu0 0.0
    %1508 = vmatprep.subr.mxu0 0.0
    %1509 = vmatpush2.msra.mxu0 0.0
    %1510 = vmatprep.subr.mxu0 0.0
    %1511 = vmatpush2.msra.mxu0 0.0
    %1512 = vmatprep.subr.mxu0 0.0
    %1513 = vmatpush2.msra.mxu0 0.0
    %1514 = vmatprep.subr.mxu0 0.0
    %1515 = vmatpush2.msra.mxu0 0.0
    %1516 = vmatprep.subr.mxu0 0.0
    %1517 = vmatpush2.msra.mxu0 0.0
    %1518 = vmatprep.subr.mxu0 0.0
    %1519 = vmatpush2.msra.mxu0 0.0
    %1520 = vmatprep.subr.mxu0 0.0
    %1521 = vmatpush2.msra.mxu0 0.0
    %1522 = vmatprep.mubr.f32.mxu0 0.0
    %1523 = vmatmul.mubr.f32.gmra.mxu0 %v1456
    %v1524 = vpop.f32.mrf.mxu0
    %v1525 = vadd.f32 0.0, %v1524
    %v1526 = vpop.f32.mrf.mxu0
    %1527 = vdwg.mxu0
    %v1529 = vrot.slane %v1525, 4
    %v1531 = vadd.f32 %v1230, %v1529
    %v1532 = vxor.u32 %v1531, 2147483648
    %v1533 = vmul.f32 %v1532, 1.442695
    %v1534 = vpow.pop %v1533
    %v1535 = vadd.f32 %v1534, 1.0
    %v1536 = vrcp.pop %v1535
    %v1537 = vmul.f32 1.0, %v1536
    %v1538 = vtanh.pop %v1531
    %v1540 = vrot.slane %v1441, 6
    %v1542 = vmul.f32 %v1537, %v1540
    %1544 = vrot.lane.b32.xlu0 %v1538, 64
    %v1545 = vpop.permute.xlu0 %1544
    %v1547 = vmul.f32 %v1537, %v1545
    %1549 = vrot.lane.b32.xlu0 %v1547, 32
    %v1550 = vpop.permute.xlu0 %1549
    %v1552 = vadd.f32 %v1542, %v1550
    %v1553 = vtanh.pop %v1552
    %1555 = vrot.lane.b32.xlu0 %v1553, 64
    %v1556 = vpop.permute.xlu0 %1555
    %v1558 = vmul.f32 %v1537, %v1556
    %1560 = vrot.lane.b32.xlu0 %v1558, 32
    %v1561 = vpop.permute.xlu0 %1560
    %1563 = vst.msk [vmem:[#allocation3] sm:$0x30] %vm508, %v1561
    %v1564 = vrot.slane %v1558, 4
    %1565 = vrot.lane.b32.xlu0 %v1564, 32
    %v1566 = vpop.permute.xlu0 %1565
    %v1567 = vsel %vm180, %v1566, 0
    %1569 = vmatprep.subr.mxu0 0.0
    %1570 = vmatpush1.msra.mxu0 0.0
    %1571 = vmatprep.subr.mxu0 0.0
    %1572 = vmatpush1.msra.mxu0 0.0
    %1573 = vmatprep.subr.mxu0 0.0
    %1574 = vmatpush1.msra.mxu0 0.0
    %1575 = vmatprep.subr.mxu0 0.0
    %1576 = vmatpush1.msra.mxu0 0.0
    %1577 = vmatprep.subr.mxu0 0.0
    %1578 = vmatpush1.msra.mxu0 0.0
    %1579 = vmatprep.subr.mxu0 0.0
    %1580 = vmatpush1.msra.mxu0 0.0
    %1581 = vmatprep.subr.mxu0 0.0
    %1582 = vmatpush1.msra.mxu0 0.0
    %1583 = vmatprep.subr.mxu0 0.0
    %1584 = vmatpush1.msra.mxu0 0.0
    %1585 = vmatprep.subr.mxu0 0.0
    %1586 = vmatpush1.msra.mxu0 0.0
    %1587 = vmatprep.subr.mxu0 0.0
    %1588 = vmatpush1.msra.mxu0 0.0
    %1589 = vmatprep.subr.mxu0 0.0
    %1590 = vmatpush1.msra.mxu0 0.0
    %1591 = vmatprep.subr.mxu0 0.0
    %1592 = vmatpush1.msra.mxu0 0.0
    %1593 = vmatprep.subr.mxu0 0.0
    %1594 = vmatpush1.msra.mxu0 %v1235
    %1595 = vmatprep.subr.mxu0 0.0
    %1596 = vmatpush1.msra.mxu0 %v1234
    %1597 = vmatprep.subr.mxu0 0.0
    %1598 = vmatpush1.msra.mxu0 %v1233
    %1599 = vmatprep.subr.mxu0 0.0
    %1600 = vmatpush1.msra.mxu0 %v1232
    %1601 = vmatprep.subr.mxu0 0.0
    %1602 = vmatpush2.msra.mxu0 0.0
    %1603 = vmatprep.subr.mxu0 0.0
    %1604 = vmatpush2.msra.mxu0 0.0
    %1605 = vmatprep.subr.mxu0 0.0
    %1606 = vmatpush2.msra.mxu0 0.0
    %1607 = vmatprep.subr.mxu0 0.0
    %1608 = vmatpush2.msra.mxu0 0.0
    %1609 = vmatprep.subr.mxu0 0.0
    %1610 = vmatpush2.msra.mxu0 0.0
    %1611 = vmatprep.subr.mxu0 0.0
    %1612 = vmatpush2.msra.mxu0 0.0
    %1613 = vmatprep.subr.mxu0 0.0
    %1614 = vmatpush2.msra.mxu0 0.0
    %1615 = vmatprep.subr.mxu0 0.0
    %1616 = vmatpush2.msra.mxu0 0.0
    %1617 = vmatprep.subr.mxu0 0.0
    %1618 = vmatpush2.msra.mxu0 0.0
    %1619 = vmatprep.subr.mxu0 0.0
    %1620 = vmatpush2.msra.mxu0 0.0
    %1621 = vmatprep.subr.mxu0 0.0
    %1622 = vmatpush2.msra.mxu0 0.0
    %1623 = vmatprep.subr.mxu0 0.0
    %1624 = vmatpush2.msra.mxu0 0.0
    %1625 = vmatprep.subr.mxu0 0.0
    %1626 = vmatpush2.msra.mxu0 0.0
    %1627 = vmatprep.subr.mxu0 0.0
    %1628 = vmatpush2.msra.mxu0 0.0
    %1629 = vmatprep.subr.mxu0 0.0
    %1630 = vmatpush2.msra.mxu0 0.0
    %1631 = vmatprep.subr.mxu0 0.0
    %1632 = vmatpush2.msra.mxu0 0.0
    %1633 = vmatprep.mubr.f32.mxu0 0.0
    %1634 = vmatmul.mubr.f32.gmra.mxu0 %v1567
    %v1635 = vpop.f32.mrf.mxu0
    %v1636 = vadd.f32 0.0, %v1635
    %v1637 = vpop.f32.mrf.mxu0
    %1638 = vdwg.mxu0
    %v1640 = vrot.slane %v1636, 2
    %v1642 = vadd.f32 %v1230, %v1640
    %v1643 = vxor.u32 %v1642, 2147483648
    %v1644 = vmul.f32 %v1643, 1.442695
    %v1645 = vpow.pop %v1644
    %v1646 = vadd.f32 %v1645, 1.0
    %v1647 = vrcp.pop %v1646
    %v1648 = vmul.f32 1.0, %v1647
    %v1649 = vtanh.pop %v1642
    %v1651 = vrot.slane %v1552, 6
    %v1653 = vmul.f32 %v1648, %v1651
    %1655 = vrot.lane.b32.xlu0 %v1649, 64
    %v1656 = vpop.permute.xlu0 %1655
    %v1658 = vmul.f32 %v1648, %v1656
    %1660 = vrot.lane.b32.xlu0 %v1658, 32
    %v1661 = vpop.permute.xlu0 %1660
    %v1663 = vadd.f32 %v1653, %v1661
    %v1664 = vtanh.pop %v1663
    %1666 = vrot.lane.b32.xlu0 %v1664, 64
    %v1667 = vpop.permute.xlu0 %1666
    %v1669 = vmul.f32 %v1648, %v1667
    %1671 = vrot.lane.b32.xlu0 %v1669, 32
    %v1672 = vpop.permute.xlu0 %1671
    %1674 = vst.msk [vmem:[#allocation3] sm:$0xc0] %vm620, %v1672
    %v1675 = vrot.slane %v1669, 6
    %1676 = vrot.lane.b32.xlu0 %v1675, 32
    %v1677 = vpop.permute.xlu0 %1676
    %v1678 = vsel %vm180, %v1677, 0
    %1680 = vmatprep.subr.mxu0 0.0
    %1681 = vmatpush1.msra.mxu0 0.0
    %1682 = vmatprep.subr.mxu0 0.0
    %1683 = vmatpush1.msra.mxu0 0.0
    %1684 = vmatprep.subr.mxu0 0.0
    %1685 = vmatpush1.msra.mxu0 0.0
    %1686 = vmatprep.subr.mxu0 0.0
    %1687 = vmatpush1.msra.mxu0 0.0
    %1688 = vmatprep.subr.mxu0 0.0
    %1689 = vmatpush1.msra.mxu0 0.0
    %1690 = vmatprep.subr.mxu0 0.0
    %1691 = vmatpush1.msra.mxu0 0.0
    %1692 = vmatprep.subr.mxu0 0.0
    %1693 = vmatpush1.msra.mxu0 0.0
    %1694 = vmatprep.subr.mxu0 0.0
    %1695 = vmatpush1.msra.mxu0 0.0
    %1696 = vmatprep.subr.mxu0 0.0
    %1697 = vmatpush1.msra.mxu0 0.0
    %1698 = vmatprep.subr.mxu0 0.0
    %1699 = vmatpush1.msra.mxu0 0.0
    %1700 = vmatprep.subr.mxu0 0.0
    %1701 = vmatpush1.msra.mxu0 0.0
    %1702 = vmatprep.subr.mxu0 0.0
    %1703 = vmatpush1.msra.mxu0 0.0
    %1704 = vmatprep.subr.mxu0 0.0
    %1705 = vmatpush1.msra.mxu0 %v1235
    %1706 = vmatprep.subr.mxu0 0.0
    %1707 = vmatpush1.msra.mxu0 %v1234
    %1708 = vmatprep.subr.mxu0 0.0
    %1709 = vmatpush1.msra.mxu0 %v1233
    %1710 = vmatprep.subr.mxu0 0.0
    %1711 = vmatpush1.msra.mxu0 %v1232
    %1712 = vmatprep.subr.mxu0 0.0
    %1713 = vmatpush2.msra.mxu0 0.0
    %1714 = vmatprep.subr.mxu0 0.0
    %1715 = vmatpush2.msra.mxu0 0.0
    %1716 = vmatprep.subr.mxu0 0.0
    %1717 = vmatpush2.msra.mxu0 0.0
    %1718 = vmatprep.subr.mxu0 0.0
    %1719 = vmatpush2.msra.mxu0 0.0
    %1720 = vmatprep.subr.mxu0 0.0
    %1721 = vmatpush2.msra.mxu0 0.0
    %1722 = vmatprep.subr.mxu0 0.0
    %1723 = vmatpush2.msra.mxu0 0.0
    %1724 = vmatprep.subr.mxu0 0.0
    %1725 = vmatpush2.msra.mxu0 0.0
    %1726 = vmatprep.subr.mxu0 0.0
    %1727 = vmatpush2.msra.mxu0 0.0
    %1728 = vmatprep.subr.mxu0 0.0
    %1729 = vmatpush2.msra.mxu0 0.0
    %1730 = vmatprep.subr.mxu0 0.0
    %1731 = vmatpush2.msra.mxu0 0.0
    %1732 = vmatprep.subr.mxu0 0.0
    %1733 = vmatpush2.msra.mxu0 0.0
    %1734 = vmatprep.subr.mxu0 0.0
    %1735 = vmatpush2.msra.mxu0 0.0
    %1736 = vmatprep.subr.mxu0 0.0
    %1737 = vmatpush2.msra.mxu0 0.0
    %1738 = vmatprep.subr.mxu0 0.0
    %1739 = vmatpush2.msra.mxu0 0.0
    %1740 = vmatprep.subr.mxu0 0.0
    %1741 = vmatpush2.msra.mxu0 0.0
    %1742 = vmatprep.subr.mxu0 0.0
    %1743 = vmatpush2.msra.mxu0 0.0
    %1744 = vmatprep.mubr.f32.mxu0 0.0
    %1745 = vmatmul.mubr.f32.gmra.mxu0 %v1678
    %v1746 = vpop.f32.mrf.mxu0
    %v1747 = vadd.f32 0.0, %v1746
    %v1748 = vpop.f32.mrf.mxu0
    %1749 = vdwg.mxu0
    %v1750 = vadd.f32 %v1231, %v1747
    %v1751 = vxor.u32 %v1750, 2147483648
    %v1752 = vmul.f32 %v1751, 1.442695
    %v1753 = vpow.pop %v1752
    %v1754 = vadd.f32 %v1753, 1.0
    %v1755 = vrcp.pop %v1754
    %v1756 = vmul.f32 1.0, %v1755
    %v1757 = vtanh.pop %v1750
    %v1759 = vrot.slane %v1663, 6
    %v1761 = vmul.f32 %v1756, %v1759
    %1763 = vrot.lane.b32.xlu0 %v1757, 64
    %v1764 = vpop.permute.xlu0 %1763
    %v1766 = vmul.f32 %v1756, %v1764
    %1768 = vrot.lane.b32.xlu0 %v1766, 32
    %v1769 = vpop.permute.xlu0 %1768
    %v1771 = vadd.f32 %v1761, %v1769
    %v1772 = vtanh.pop %v1771
    %1774 = vrot.lane.b32.xlu0 %v1772, 64
    %v1775 = vpop.permute.xlu0 %1774
    %v1777 = vmul.f32 %v1756, %v1775
    %1779 = vrot.lane.b32.xlu0 %v1777, 32
    %v1780 = vpop.permute.xlu0 %1779
    %1782 = vst.msk [vmem:[#allocation3 + $0x8] sm:$0x3] %vm287, %v1780
    %v1783 = vsel %vm180, %v1780, 0
    %1785 = vmatprep.subr.mxu0 0.0
    %1786 = vmatpush1.msra.mxu0 0.0
    %1787 = vmatprep.subr.mxu0 0.0
    %1788 = vmatpush1.msra.mxu0 0.0
    %1789 = vmatprep.subr.mxu0 0.0
    %1790 = vmatpush1.msra.mxu0 0.0
    %1791 = vmatprep.subr.mxu0 0.0
    %1792 = vmatpush1.msra.mxu0 0.0
    %1793 = vmatprep.subr.mxu0 0.0
    %1794 = vmatpush1.msra.mxu0 0.0
    %1795 = vmatprep.subr.mxu0 0.0
    %1796 = vmatpush1.msra.mxu0 0.0
    %1797 = vmatprep.subr.mxu0 0.0
    %1798 = vmatpush1.msra.mxu0 0.0
    %1799 = vmatprep.subr.mxu0 0.0
    %1800 = vmatpush1.msra.mxu0 0.0
    %1801 = vmatprep.subr.mxu0 0.0
    %1802 = vmatpush1.msra.mxu0 0.0
    %1803 = vmatprep.subr.mxu0 0.0
    %1804 = vmatpush1.msra.mxu0 0.0
    %1805 = vmatprep.subr.mxu0 0.0
    %1806 = vmatpush1.msra.mxu0 0.0
    %1807 = vmatprep.subr.mxu0 0.0
    %1808 = vmatpush1.msra.mxu0 0.0
    %1809 = vmatprep.subr.mxu0 0.0
    %1810 = vmatpush1.msra.mxu0 %v1235
    %1811 = vmatprep.subr.mxu0 0.0
    %1812 = vmatpush1.msra.mxu0 %v1234
    %1813 = vmatprep.subr.mxu0 0.0
    %1814 = vmatpush1.msra.mxu0 %v1233
    %1815 = vmatprep.subr.mxu0 0.0
    %1816 = vmatpush1.msra.mxu0 %v1232
    %1817 = vmatprep.subr.mxu0 0.0
    %1818 = vmatpush2.msra.mxu0 0.0
    %1819 = vmatprep.subr.mxu0 0.0
    %1820 = vmatpush2.msra.mxu0 0.0
    %1821 = vmatprep.subr.mxu0 0.0
    %1822 = vmatpush2.msra.mxu0 0.0
    %1823 = vmatprep.subr.mxu0 0.0
    %1824 = vmatpush2.msra.mxu0 0.0
    %1825 = vmatprep.subr.mxu0 0.0
    %1826 = vmatpush2.msra.mxu0 0.0
    %1827 = vmatprep.subr.mxu0 0.0
    %1828 = vmatpush2.msra.mxu0 0.0
    %1829 = vmatprep.subr.mxu0 0.0
    %1830 = vmatpush2.msra.mxu0 0.0
    %1831 = vmatprep.subr.mxu0 0.0
    %1832 = vmatpush2.msra.mxu0 0.0
    %1833 = vmatprep.subr.mxu0 0.0
    %1834 = vmatpush2.msra.mxu0 0.0
    %1835 = vmatprep.subr.mxu0 0.0
    %1836 = vmatpush2.msra.mxu0 0.0
    %1837 = vmatprep.subr.mxu0 0.0
    %1838 = vmatpush2.msra.mxu0 0.0
    %1839 = vmatprep.subr.mxu0 0.0
    %1840 = vmatpush2.msra.mxu0 0.0
    %1841 = vmatprep.subr.mxu0 0.0
    %1842 = vmatpush2.msra.mxu0 0.0
    %1843 = vmatprep.subr.mxu0 0.0
    %1844 = vmatpush2.msra.mxu0 0.0
    %1845 = vmatprep.subr.mxu0 0.0
    %1846 = vmatpush2.msra.mxu0 0.0
    %1847 = vmatprep.subr.mxu0 0.0
    %1848 = vmatpush2.msra.mxu0 0.0
    %1849 = vmatprep.mubr.f32.mxu0 0.0
    %1850 = vmatmul.mubr.f32.gmra.mxu0 %v1783
    %v1851 = vpop.f32.mrf.mxu0
    %v1852 = vadd.f32 0.0, %v1851
    %v1853 = vpop.f32.mrf.mxu0
    %1854 = vdwg.mxu0
    %v1856 = vrot.slane %v1852, 6
    %v1858 = vadd.f32 %v1231, %v1856
    %v1859 = vxor.u32 %v1858, 2147483648
    %v1860 = vmul.f32 %v1859, 1.442695
    %v1861 = vpow.pop %v1860
    %v1862 = vadd.f32 %v1861, 1.0
    %v1863 = vrcp.pop %v1862
    %v1864 = vmul.f32 1.0, %v1863
    %v1865 = vtanh.pop %v1858
    %v1867 = vrot.slane %v1771, 6
    %v1869 = vmul.f32 %v1864, %v1867
    %1871 = vrot.lane.b32.xlu0 %v1865, 64
    %v1872 = vpop.permute.xlu0 %1871
    %v1874 = vmul.f32 %v1864, %v1872
    %1876 = vrot.lane.b32.xlu0 %v1874, 32
    %v1877 = vpop.permute.xlu0 %1876
    %v1879 = vadd.f32 %v1869, %v1877
    %v1880 = vtanh.pop %v1879
    %1882 = vrot.lane.b32.xlu0 %v1880, 64
    %v1883 = vpop.permute.xlu0 %1882
    %v1885 = vmul.f32 %v1864, %v1883
    %1887 = vrot.lane.b32.xlu0 %v1885, 32
    %v1888 = vpop.permute.xlu0 %1887
    %1890 = vst.msk [vmem:[#allocation3 + $0x8] sm:$0xc] %vm396, %v1888
    %v1891 = vrot.slane %v1885, 2
    %1892 = vrot.lane.b32.xlu0 %v1891, 32
    %v1893 = vpop.permute.xlu0 %1892
    %v1894 = vsel %vm180, %v1893, 0
    %1896 = vmatprep.subr.mxu0 0.0
    %1897 = vmatpush1.msra.mxu0 0.0
    %1898 = vmatprep.subr.mxu0 0.0
    %1899 = vmatpush1.msra.mxu0 0.0
    %1900 = vmatprep.subr.mxu0 0.0
    %1901 = vmatpush1.msra.mxu0 0.0
    %1902 = vmatprep.subr.mxu0 0.0
    %1903 = vmatpush1.msra.mxu0 0.0
    %1904 = vmatprep.subr.mxu0 0.0
    %1905 = vmatpush1.msra.mxu0 0.0
    %1906 = vmatprep.subr.mxu0 0.0
    %1907 = vmatpush1.msra.mxu0 0.0
    %1908 = vmatprep.subr.mxu0 0.0
    %1909 = vmatpush1.msra.mxu0 0.0
    %1910 = vmatprep.subr.mxu0 0.0
    %1911 = vmatpush1.msra.mxu0 0.0
    %1912 = vmatprep.subr.mxu0 0.0
    %1913 = vmatpush1.msra.mxu0 0.0
    %1914 = vmatprep.subr.mxu0 0.0
    %1915 = vmatpush1.msra.mxu0 0.0
    %1916 = vmatprep.subr.mxu0 0.0
    %1917 = vmatpush1.msra.mxu0 0.0
    %1918 = vmatprep.subr.mxu0 0.0
    %1919 = vmatpush1.msra.mxu0 0.0
    %1920 = vmatprep.subr.mxu0 0.0
    %1921 = vmatpush1.msra.mxu0 %v1235
    %1922 = vmatprep.subr.mxu0 0.0
    %1923 = vmatpush1.msra.mxu0 %v1234
    %1924 = vmatprep.subr.mxu0 0.0
    %1925 = vmatpush1.msra.mxu0 %v1233
    %1926 = vmatprep.subr.mxu0 0.0
    %1927 = vmatpush1.msra.mxu0 %v1232
    %1928 = vmatprep.subr.mxu0 0.0
    %1929 = vmatpush2.msra.mxu0 0.0
    %1930 = vmatprep.subr.mxu0 0.0
    %1931 = vmatpush2.msra.mxu0 0.0
    %1932 = vmatprep.subr.mxu0 0.0
    %1933 = vmatpush2.msra.mxu0 0.0
    %1934 = vmatprep.subr.mxu0 0.0
    %1935 = vmatpush2.msra.mxu0 0.0
    %1936 = vmatprep.subr.mxu0 0.0
    %1937 = vmatpush2.msra.mxu0 0.0
    %1938 = vmatprep.subr.mxu0 0.0
    %1939 = vmatpush2.msra.mxu0 0.0
    %1940 = vmatprep.subr.mxu0 0.0
    %1941 = vmatpush2.msra.mxu0 0.0
    %1942 = vmatprep.subr.mxu0 0.0
    %1943 = vmatpush2.msra.mxu0 0.0
    %1944 = vmatprep.subr.mxu0 0.0
    %1945 = vmatpush2.msra.mxu0 0.0
    %1946 = vmatprep.subr.mxu0 0.0
    %1947 = vmatpush2.msra.mxu0 0.0
    %1948 = vmatprep.subr.mxu0 0.0
    %1949 = vmatpush2.msra.mxu0 0.0
    %1950 = vmatprep.subr.mxu0 0.0
    %1951 = vmatpush2.msra.mxu0 0.0
    %1952 = vmatprep.subr.mxu0 0.0
    %1953 = vmatpush2.msra.mxu0 0.0
    %1954 = vmatprep.subr.mxu0 0.0
    %1955 = vmatpush2.msra.mxu0 0.0
    %1956 = vmatprep.subr.mxu0 0.0
    %1957 = vmatpush2.msra.mxu0 0.0
    %1958 = vmatprep.subr.mxu0 0.0
    %1959 = vmatpush2.msra.mxu0 0.0
    %1960 = vmatprep.mubr.f32.mxu0 0.0
    %1961 = vmatmul.mubr.f32.gmra.mxu0 %v1894
    %v1962 = vpop.f32.mrf.mxu0
    %v1963 = vadd.f32 0.0, %v1962
    %v1964 = vpop.f32.mrf.mxu0
    %1965 = vdwg.mxu0
    %v1967 = vrot.slane %v1963, 4
    %v1969 = vadd.f32 %v1231, %v1967
    %v1970 = vxor.u32 %v1969, 2147483648
    %v1971 = vmul.f32 %v1970, 1.442695
    %v1972 = vpow.pop %v1971
    %v1973 = vadd.f32 %v1972, 1.0
    %v1974 = vrcp.pop %v1973
    %v1975 = vmul.f32 1.0, %v1974
    %v1976 = vtanh.pop %v1969
    %v1978 = vrot.slane %v1879, 6
    %v1980 = vmul.f32 %v1975, %v1978
    %1982 = vrot.lane.b32.xlu0 %v1976, 64
    %v1983 = vpop.permute.xlu0 %1982
    %v1985 = vmul.f32 %v1975, %v1983
    %1987 = vrot.lane.b32.xlu0 %v1985, 32
    %v1988 = vpop.permute.xlu0 %1987
    %v1990 = vadd.f32 %v1980, %v1988
    %v1991 = vtanh.pop %v1990
    %1993 = vrot.lane.b32.xlu0 %v1991, 64
    %v1994 = vpop.permute.xlu0 %1993
    %v1996 = vmul.f32 %v1975, %v1994
    %1998 = vrot.lane.b32.xlu0 %v1996, 32
    %v1999 = vpop.permute.xlu0 %1998
    %2001 = vst.msk [vmem:[#allocation3 + $0x8] sm:$0x30] %vm508, %v1999
    %v2002 = vrot.slane %v1996, 4
    %2003 = vrot.lane.b32.xlu0 %v2002, 32
    %v2004 = vpop.permute.xlu0 %2003
    %v2005 = vsel %vm180, %v2004, 0
    %2007 = vmatprep.subr.mxu0 0.0
    %2008 = vmatpush1.msra.mxu0 0.0
    %2009 = vmatprep.subr.mxu0 0.0
    %2010 = vmatpush1.msra.mxu0 0.0
    %2011 = vmatprep.subr.mxu0 0.0
    %2012 = vmatpush1.msra.mxu0 0.0
    %2013 = vmatprep.subr.mxu0 0.0
    %2014 = vmatpush1.msra.mxu0 0.0
    %2015 = vmatprep.subr.mxu0 0.0
    %2016 = vmatpush1.msra.mxu0 0.0
    %2017 = vmatprep.subr.mxu0 0.0
    %2018 = vmatpush1.msra.mxu0 0.0
    %2019 = vmatprep.subr.mxu0 0.0
    %2020 = vmatpush1.msra.mxu0 0.0
    %2021 = vmatprep.subr.mxu0 0.0
    %2022 = vmatpush1.msra.mxu0 0.0
    %2023 = vmatprep.subr.mxu0 0.0
    %2024 = vmatpush1.msra.mxu0 0.0
    %2025 = vmatprep.subr.mxu0 0.0
    %2026 = vmatpush1.msra.mxu0 0.0
    %2027 = vmatprep.subr.mxu0 0.0
    %2028 = vmatpush1.msra.mxu0 0.0
    %2029 = vmatprep.subr.mxu0 0.0
    %2030 = vmatpush1.msra.mxu0 0.0
    %2031 = vmatprep.subr.mxu0 0.0
    %2032 = vmatpush1.msra.mxu0 %v1235
    %2033 = vmatprep.subr.mxu0 0.0
    %2034 = vmatpush1.msra.mxu0 %v1234
    %2035 = vmatprep.subr.mxu0 0.0
    %2036 = vmatpush1.msra.mxu0 %v1233
    %2037 = vmatprep.subr.mxu0 0.0
    %2038 = vmatpush1.msra.mxu0 %v1232
    %2039 = vmatprep.subr.mxu0 0.0
    %2040 = vmatpush2.msra.mxu0 0.0
    %2041 = vmatprep.subr.mxu0 0.0
    %2042 = vmatpush2.msra.mxu0 0.0
    %2043 = vmatprep.subr.mxu0 0.0
    %2044 = vmatpush2.msra.mxu0 0.0
    %2045 = vmatprep.subr.mxu0 0.0
    %2046 = vmatpush2.msra.mxu0 0.0
    %2047 = vmatprep.subr.mxu0 0.0
    %2048 = vmatpush2.msra.mxu0 0.0
    %2049 = vmatprep.subr.mxu0 0.0
    %2050 = vmatpush2.msra.mxu0 0.0
    %2051 = vmatprep.subr.mxu0 0.0
    %2052 = vmatpush2.msra.mxu0 0.0
    %2053 = vmatprep.subr.mxu0 0.0
    %2054 = vmatpush2.msra.mxu0 0.0
    %2055 = vmatprep.subr.mxu0 0.0
    %2056 = vmatpush2.msra.mxu0 0.0
    %2057 = vmatprep.subr.mxu0 0.0
    %2058 = vmatpush2.msra.mxu0 0.0
    %2059 = vmatprep.subr.mxu0 0.0
    %2060 = vmatpush2.msra.mxu0 0.0
    %2061 = vmatprep.subr.mxu0 0.0
    %2062 = vmatpush2.msra.mxu0 0.0
    %2063 = vmatprep.subr.mxu0 0.0
    %2064 = vmatpush2.msra.mxu0 0.0
    %2065 = vmatprep.subr.mxu0 0.0
    %2066 = vmatpush2.msra.mxu0 0.0
    %2067 = vmatprep.subr.mxu0 0.0
    %2068 = vmatpush2.msra.mxu0 0.0
    %2069 = vmatprep.subr.mxu0 0.0
    %2070 = vmatpush2.msra.mxu0 0.0
    %2071 = vmatprep.mubr.f32.mxu0 0.0
    %2072 = vmatmul.mubr.f32.gmra.mxu0 %v2005
    %v2073 = vpop.f32.mrf.mxu0
    %v2074 = vadd.f32 0.0, %v2073
    %v2075 = vpop.f32.mrf.mxu0
    %2076 = vdwg.mxu0
    %v2078 = vrot.slane %v2074, 2
    %v2080 = vadd.f32 %v1231, %v2078
    %v2081 = vxor.u32 %v2080, 2147483648
    %v2082 = vmul.f32 %v2081, 1.442695
    %v2083 = vpow.pop %v2082
    %v2084 = vadd.f32 %v2083, 1.0
    %v2085 = vrcp.pop %v2084
    %v2086 = vmul.f32 1.0, %v2085
    %v2087 = vtanh.pop %v2080
    %v2089 = vrot.slane %v1990, 6
    %v2091 = vmul.f32 %v2086, %v2089
    %2093 = vrot.lane.b32.xlu0 %v2087, 64
    %v2094 = vpop.permute.xlu0 %2093
    %v2096 = vmul.f32 %v2086, %v2094
    %2098 = vrot.lane.b32.xlu0 %v2096, 32
    %v2099 = vpop.permute.xlu0 %2098
    %v2101 = vadd.f32 %v2091, %v2099
    %v2102 = vtanh.pop %v2101
    %2104 = vrot.lane.b32.xlu0 %v2102, 64
    %v2105 = vpop.permute.xlu0 %2104
    %v2107 = vmul.f32 %v2086, %v2105
    %2109 = vrot.lane.b32.xlu0 %v2107, 32
    %v2110 = vpop.permute.xlu0 %2109
    %2112 = vst.msk [vmem:[#allocation3 + $0x8] sm:$0xc0] %vm620, %v2110
    %v2113 = vld [vmem:[#allocation3] sm:$0xff]
    %v2114 = vld [vmem:[#allocation3 + $0x8] sm:$0xff]
    %v2115 = vld [vmem:[%s8] sm:$0xff]
    %v2116 = vld [vmem:[%s9] sm:$0xff]
    %v2117 = vld [vmem:[%s9 + $0x8] sm:$0xff]
    %v2118 = vld [vmem:[%s9 + $0x10] sm:$0xff]
    %v2119 = vld [vmem:[%s9 + $0x18] sm:$0xff]
    %v2121 = vsel %vm180, %v2113, 0
    %v2124 = vsel %vm180, %v2114, 0
    %2126 = vmatprep.subr.mxu0 0.0
    %2127 = vmatpush1.msra.mxu0 0.0
    %2128 = vmatprep.subr.mxu0 0.0
    %2129 = vmatpush1.msra.mxu0 0.0
    %2130 = vmatprep.subr.mxu0 0.0
    %2131 = vmatpush1.msra.mxu0 0.0
    %2132 = vmatprep.subr.mxu0 0.0
    %2133 = vmatpush1.msra.mxu0 0.0
    %2134 = vmatprep.subr.mxu0 0.0
    %2135 = vmatpush1.msra.mxu0 0.0
    %2136 = vmatprep.subr.mxu0 0.0
    %2137 = vmatpush1.msra.mxu0 0.0
    %2138 = vmatprep.subr.mxu0 0.0
    %2139 = vmatpush1.msra.mxu0 0.0
    %2140 = vmatprep.subr.mxu0 0.0
    %2141 = vmatpush1.msra.mxu0 0.0
    %2142 = vmatprep.subr.mxu0 0.0
    %2143 = vmatpush1.msra.mxu0 0.0
    %2144 = vmatprep.subr.mxu0 0.0
    %2145 = vmatpush1.msra.mxu0 0.0
    %2146 = vmatprep.subr.mxu0 0.0
    %2147 = vmatpush1.msra.mxu0 0.0
    %2148 = vmatprep.subr.mxu0 0.0
    %2149 = vmatpush1.msra.mxu0 0.0
    %2150 = vmatprep.subr.mxu0 0.0
    %2151 = vmatpush1.msra.mxu0 %v2119
    %2152 = vmatprep.subr.mxu0 0.0
    %2153 = vmatpush1.msra.mxu0 %v2118
    %2154 = vmatprep.subr.mxu0 0.0
    %2155 = vmatpush1.msra.mxu0 %v2117
    %2156 = vmatprep.subr.mxu0 0.0
    %2157 = vmatpush1.msra.mxu0 %v2116
    %2158 = vmatprep.subr.mxu0 0.0
    %2159 = vmatpush2.msra.mxu0 0.0
    %2160 = vmatprep.subr.mxu0 0.0
    %2161 = vmatpush2.msra.mxu0 0.0
    %2162 = vmatprep.subr.mxu0 0.0
    %2163 = vmatpush2.msra.mxu0 0.0
    %2164 = vmatprep.subr.mxu0 0.0
    %2165 = vmatpush2.msra.mxu0 0.0
    %2166 = vmatprep.subr.mxu0 0.0
    %2167 = vmatpush2.msra.mxu0 0.0
    %2168 = vmatprep.subr.mxu0 0.0
    %2169 = vmatpush2.msra.mxu0 0.0
    %2170 = vmatprep.subr.mxu0 0.0
    %2171 = vmatpush2.msra.mxu0 0.0
    %2172 = vmatprep.subr.mxu0 0.0
    %2173 = vmatpush2.msra.mxu0 0.0
    %2174 = vmatprep.subr.mxu0 0.0
    %2175 = vmatpush2.msra.mxu0 0.0
    %2176 = vmatprep.subr.mxu0 0.0
    %2177 = vmatpush2.msra.mxu0 0.0
    %2178 = vmatprep.subr.mxu0 0.0
    %2179 = vmatpush2.msra.mxu0 0.0
    %2180 = vmatprep.subr.mxu0 0.0
    %2181 = vmatpush2.msra.mxu0 0.0
    %2182 = vmatprep.subr.mxu0 0.0
    %2183 = vmatpush2.msra.mxu0 0.0
    %2184 = vmatprep.subr.mxu0 0.0
    %2185 = vmatpush2.msra.mxu0 0.0
    %2186 = vmatprep.subr.mxu0 0.0
    %2187 = vmatpush2.msra.mxu0 0.0
    %2188 = vmatprep.subr.mxu0 0.0
    %2189 = vmatpush2.msra.mxu0 0.0
    %2190 = vmatprep.mubr.f32.mxu0 0.0
    %2191 = vmatmul.mubr.f32.gmra.mxu0 %v2121
    %v2192 = vpop.f32.mrf.mxu0
    %v2193 = vadd.f32 0.0, %v2192
    %v2194 = vpop.f32.mrf.mxu0
    %2195 = vmatprep.mubr.f32.mxu0 0.0
    %2196 = vmatmul.mubr.f32.gmra.mxu0 %v2124
    %v2197 = vpop.f32.mrf.mxu0
    %v2198 = vadd.f32 0.0, %v2197
    %v2199 = vpop.f32.mrf.mxu0
    %2200 = vdwg.mxu0
    %2201 = vmatprep.subr.mxu0 0.0
    %2202 = vmatpush1.msra.mxu0 0.0
    %2203 = vmatprep.subr.mxu0 0.0
    %2204 = vmatpush1.msra.mxu0 0.0
    %2205 = vmatprep.subr.mxu0 0.0
    %2206 = vmatpush1.msra.mxu0 0.0
    %2207 = vmatprep.subr.mxu0 0.0
    %2208 = vmatpush1.msra.mxu0 0.0
    %2209 = vmatprep.subr.mxu0 0.0
    %2210 = vmatpush1.msra.mxu0 0.0
    %2211 = vmatprep.subr.mxu0 0.0
    %2212 = vmatpush1.msra.mxu0 0.0
    %2213 = vmatprep.subr.mxu0 0.0
    %2214 = vmatpush1.msra.mxu0 0.0
    %2215 = vmatprep.subr.mxu0 0.0
    %2216 = vmatpush1.msra.mxu0 0.0
    %2217 = vmatprep.subr.mxu0 0.0
    %2218 = vmatpush1.msra.mxu0 0.0
    %2219 = vmatprep.subr.mxu0 0.0
    %2220 = vmatpush1.msra.mxu0 0.0
    %2221 = vmatprep.subr.mxu0 0.0
    %2222 = vmatpush1.msra.mxu0 0.0
    %2223 = vmatprep.subr.mxu0 0.0
    %2224 = vmatpush1.msra.mxu0 0.0
    %2225 = vmatprep.subr.mxu0 0.0
    %2226 = vmatpush1.msra.mxu0 0.0
    %2227 = vmatprep.subr.mxu0 0.0
    %2228 = vmatpush1.msra.mxu0 0.0
    %2229 = vmatprep.subr.mxu0 0.0
    %2230 = vmatpush1.msra.mxu0 0.0
    %2231 = vmatprep.subr.mxu0 0.0
    %2232 = vmatpush1.msra.mxu0 %v2115
    %2233 = vmatprep.subr.mxu0 0.0
    %2234 = vmatpush2.msra.mxu0 0.0
    %2235 = vmatprep.subr.mxu0 0.0
    %2236 = vmatpush2.msra.mxu0 0.0
    %2237 = vmatprep.subr.mxu0 0.0
    %2238 = vmatpush2.msra.mxu0 0.0
    %2239 = vmatprep.subr.mxu0 0.0
    %2240 = vmatpush2.msra.mxu0 0.0
    %2241 = vmatprep.subr.mxu0 0.0
    %2242 = vmatpush2.msra.mxu0 0.0
    %2243 = vmatprep.subr.mxu0 0.0
    %2244 = vmatpush2.msra.mxu0 0.0
    %2245 = vmatprep.subr.mxu0 0.0
    %2246 = vmatpush2.msra.mxu0 0.0
    %2247 = vmatprep.subr.mxu0 0.0
    %2248 = vmatpush2.msra.mxu0 0.0
    %2249 = vmatprep.subr.mxu0 0.0
    %2250 = vmatpush2.msra.mxu0 0.0
    %2251 = vmatprep.subr.mxu0 0.0
    %2252 = vmatpush2.msra.mxu0 0.0
    %2253 = vmatprep.subr.mxu0 0.0
    %2254 = vmatpush2.msra.mxu0 0.0
    %2255 = vmatprep.subr.mxu0 0.0
    %2256 = vmatpush2.msra.mxu0 0.0
    %2257 = vmatprep.subr.mxu0 0.0
    %2258 = vmatpush2.msra.mxu0 0.0
    %2259 = vmatprep.subr.mxu0 0.0
    %2260 = vmatpush2.msra.mxu0 0.0
    %2261 = vmatprep.subr.mxu0 0.0
    %2262 = vmatpush2.msra.mxu0 0.0
    %2263 = vmatprep.subr.mxu0 0.0
    %2264 = vmatpush2.msra.mxu0 0.0
    %2265 = vmatprep.mubr.f32.mxu0 0.0
    %2266 = vmatmul.mubr.f32.gmra.mxu0 %v94
    %v2267 = vpop.f32.mrf.mxu0
    %v2268 = vadd.f32 %v2193, %v2267
    %v2269 = vpop.f32.mrf.mxu0
    %2270 = vmatprep.mubr.f32.mxu0 0.0
    %2271 = vmatmul.mubr.f32.gmra.mxu0 %v97
    %v2272 = vpop.f32.mrf.mxu0
    %v2273 = vadd.f32 %v2198, %v2272
    %v2274 = vpop.f32.mrf.mxu0
    %2275 = vdwg.mxu0
    %v2276 = vld [vmem:[%s11] sm:$0x1]
    %v2278 = vlaneseq
    %v2279 = vshrl.u32 %v2278, 7
    %v2280 = vsub.s32 0, %v2279
    %v2281 = vrot.slane %v2276, %v2280
    %v2283 = vadd.f32 %v2268, %v2281
    %v2284 = vadd.f32 %v2273, %v2281
    %v2285 = vld [vmem:[%s10] sm:$0xff]
    %v2286 = vld [vmem:[%s10 + $0x8] sm:$0xff]
    %v2287 = vld [vmem:[%s10 + $0x10] sm:$0xff]
    %v2288 = vld [vmem:[%s10 + $0x18] sm:$0xff]
    %v2289 = vld [vmem:[%s20] sm:$0x3]
    %v2290 = vld [vmem:[%s21] sm:$0x3]
    %v2292 = vsel %vm180, %v2289, 0
    %2294 = vmatprep.subr.mxu0 0.0
    %2295 = vmatpush1.msra.mxu0 0.0
    %2296 = vmatprep.subr.mxu0 0.0
    %2297 = vmatpush1.msra.mxu0 0.0
    %2298 = vmatprep.subr.mxu0 0.0
    %2299 = vmatpush1.msra.mxu0 0.0
    %2300 = vmatprep.subr.mxu0 0.0
    %2301 = vmatpush1.msra.mxu0 0.0
    %2302 = vmatprep.subr.mxu0 0.0
    %2303 = vmatpush1.msra.mxu0 0.0
    %2304 = vmatprep.subr.mxu0 0.0
    %2305 = vmatpush1.msra.mxu0 0.0
    %2306 = vmatprep.subr.mxu0 0.0
    %2307 = vmatpush1.msra.mxu0 0.0
    %2308 = vmatprep.subr.mxu0 0.0
    %2309 = vmatpush1.msra.mxu0 0.0
    %2310 = vmatprep.subr.mxu0 0.0
    %2311 = vmatpush1.msra.mxu0 0.0
    %2312 = vmatprep.subr.mxu0 0.0
    %2313 = vmatpush1.msra.mxu0 0.0
    %2314 = vmatprep.subr.mxu0 0.0
    %2315 = vmatpush1.msra.mxu0 0.0
    %2316 = vmatprep.subr.mxu0 0.0
    %2317 = vmatpush1.msra.mxu0 0.0
    %2318 = vmatprep.subr.mxu0 0.0
    %2319 = vmatpush1.msra.mxu0 %v2288
    %2320 = vmatprep.subr.mxu0 0.0
    %2321 = vmatpush1.msra.mxu0 %v2287
    %2322 = vmatprep.subr.mxu0 0.0
    %2323 = vmatpush1.msra.mxu0 %v2286
    %2324 = vmatprep.subr.mxu0 0.0
    %2325 = vmatpush1.msra.mxu0 %v2285
    %2326 = vmatprep.subr.mxu0 0.0
    %2327 = vmatpush2.msra.mxu0 0.0
    %2328 = vmatprep.subr.mxu0 0.0
    %2329 = vmatpush2.msra.mxu0 0.0
    %2330 = vmatprep.subr.mxu0 0.0
    %2331 = vmatpush2.msra.mxu0 0.0
    %2332 = vmatprep.subr.mxu0 0.0
    %2333 = vmatpush2.msra.mxu0 0.0
    %2334 = vmatprep.subr.mxu0 0.0
    %2335 = vmatpush2.msra.mxu0 0.0
    %2336 = vmatprep.subr.mxu0 0.0
    %2337 = vmatpush2.msra.mxu0 0.0
    %2338 = vmatprep.subr.mxu0 0.0
    %2339 = vmatpush2.msra.mxu0 0.0
    %2340 = vmatprep.subr.mxu0 0.0
    %2341 = vmatpush2.msra.mxu0 0.0
    %2342 = vmatprep.subr.mxu0 0.0
    %2343 = vmatpush2.msra.mxu0 0.0
    %2344 = vmatprep.subr.mxu0 0.0
    %2345 = vmatpush2.msra.mxu0 0.0
    %2346 = vmatprep.subr.mxu0 0.0
    %2347 = vmatpush2.msra.mxu0 0.0
    %2348 = vmatprep.subr.mxu0 0.0
    %2349 = vmatpush2.msra.mxu0 0.0
    %2350 = vmatprep.subr.mxu0 0.0
    %2351 = vmatpush2.msra.mxu0 0.0
    %2352 = vmatprep.subr.mxu0 0.0
    %2353 = vmatpush2.msra.mxu0 0.0
    %2354 = vmatprep.subr.mxu0 0.0
    %2355 = vmatpush2.msra.mxu0 0.0
    %2356 = vmatprep.subr.mxu0 0.0
    %2357 = vmatpush2.msra.mxu0 0.0
    %2358 = vmatprep.mubr.f32.mxu0 0.0
    %2359 = vmatmul.mubr.f32.gmra.mxu0 %v2292
    %v2360 = vpop.f32.mrf.mxu0
    %v2361 = vadd.f32 0.0, %v2360
    %v2362 = vpop.f32.mrf.mxu0
    %2363 = vdwg.mxu0
    %v2364 = vadd.f32 %v2283, %v2361
    %v2365 = vxor.u32 %v2364, 2147483648
    %v2366 = vmul.f32 %v2365, 1.442695
    %v2367 = vpow.pop %v2366
    %v2368 = vadd.f32 %v2367, 1.0
    %v2369 = vrcp.pop %v2368
    %v2370 = vmul.f32 1.0, %v2369
    %v2371 = vtanh.pop %v2364
    %2373 = vrot.lane.b32.xlu0 %v2290, 32
    %v2374 = vpop.permute.xlu0 %2373
    %v2376 = vmul.f32 %v2370, %v2374
    %2378 = vrot.lane.b32.xlu0 %v2371, 64
    %v2379 = vpop.permute.xlu0 %2378
    %v2381 = vmul.f32 %v2370, %v2379
    %2383 = vrot.lane.b32.xlu0 %v2381, 32
    %v2384 = vpop.permute.xlu0 %2383
    %v2386 = vadd.f32 %v2376, %v2384
    %v2387 = vtanh.pop %v2386
    %2389 = vrot.lane.b32.xlu0 %v2387, 64
    %v2390 = vpop.permute.xlu0 %2389
    %v2392 = vmul.f32 %v2370, %v2390
    %2394 = vrot.lane.b32.xlu0 %v2392, 32
    %v2395 = vpop.permute.xlu0 %2394
    %2397 = vst.msk [vmem:[#allocation4] sm:$0x3] %vm287, %v2395
    %v2398 = vsel %vm180, %v2395, 0
    %2400 = vmatprep.subr.mxu0 0.0
    %2401 = vmatpush1.msra.mxu0 0.0
    %2402 = vmatprep.subr.mxu0 0.0
    %2403 = vmatpush1.msra.mxu0 0.0
    %2404 = vmatprep.subr.mxu0 0.0
    %2405 = vmatpush1.msra.mxu0 0.0
    %2406 = vmatprep.subr.mxu0 0.0
    %2407 = vmatpush1.msra.mxu0 0.0
    %2408 = vmatprep.subr.mxu0 0.0
    %2409 = vmatpush1.msra.mxu0 0.0
    %2410 = vmatprep.subr.mxu0 0.0
    %2411 = vmatpush1.msra.mxu0 0.0
    %2412 = vmatprep.subr.mxu0 0.0
    %2413 = vmatpush1.msra.mxu0 0.0
    %2414 = vmatprep.subr.mxu0 0.0
    %2415 = vmatpush1.msra.mxu0 0.0
    %2416 = vmatprep.subr.mxu0 0.0
    %2417 = vmatpush1.msra.mxu0 0.0
    %2418 = vmatprep.subr.mxu0 0.0
    %2419 = vmatpush1.msra.mxu0 0.0
    %2420 = vmatprep.subr.mxu0 0.0
    %2421 = vmatpush1.msra.mxu0 0.0
    %2422 = vmatprep.subr.mxu0 0.0
    %2423 = vmatpush1.msra.mxu0 0.0
    %2424 = vmatprep.subr.mxu0 0.0
    %2425 = vmatpush1.msra.mxu0 %v2288
    %2426 = vmatprep.subr.mxu0 0.0
    %2427 = vmatpush1.msra.mxu0 %v2287
    %2428 = vmatprep.subr.mxu0 0.0
    %2429 = vmatpush1.msra.mxu0 %v2286
    %2430 = vmatprep.subr.mxu0 0.0
    %2431 = vmatpush1.msra.mxu0 %v2285
    %2432 = vmatprep.subr.mxu0 0.0
    %2433 = vmatpush2.msra.mxu0 0.0
    %2434 = vmatprep.subr.mxu0 0.0
    %2435 = vmatpush2.msra.mxu0 0.0
    %2436 = vmatprep.subr.mxu0 0.0
    %2437 = vmatpush2.msra.mxu0 0.0
    %2438 = vmatprep.subr.mxu0 0.0
    %2439 = vmatpush2.msra.mxu0 0.0
    %2440 = vmatprep.subr.mxu0 0.0
    %2441 = vmatpush2.msra.mxu0 0.0
    %2442 = vmatprep.subr.mxu0 0.0
    %2443 = vmatpush2.msra.mxu0 0.0
    %2444 = vmatprep.subr.mxu0 0.0
    %2445 = vmatpush2.msra.mxu0 0.0
    %2446 = vmatprep.subr.mxu0 0.0
    %2447 = vmatpush2.msra.mxu0 0.0
    %2448 = vmatprep.subr.mxu0 0.0
    %2449 = vmatpush2.msra.mxu0 0.0
    %2450 = vmatprep.subr.mxu0 0.0
    %2451 = vmatpush2.msra.mxu0 0.0
    %2452 = vmatprep.subr.mxu0 0.0
    %2453 = vmatpush2.msra.mxu0 0.0
    %2454 = vmatprep.subr.mxu0 0.0
    %2455 = vmatpush2.msra.mxu0 0.0
    %2456 = vmatprep.subr.mxu0 0.0
    %2457 = vmatpush2.msra.mxu0 0.0
    %2458 = vmatprep.subr.mxu0 0.0
    %2459 = vmatpush2.msra.mxu0 0.0
    %2460 = vmatprep.subr.mxu0 0.0
    %2461 = vmatpush2.msra.mxu0 0.0
    %2462 = vmatprep.subr.mxu0 0.0
    %2463 = vmatpush2.msra.mxu0 0.0
    %2464 = vmatprep.mubr.f32.mxu0 0.0
    %2465 = vmatmul.mubr.f32.gmra.mxu0 %v2398
    %v2466 = vpop.f32.mrf.mxu0
    %v2467 = vadd.f32 0.0, %v2466
    %v2468 = vpop.f32.mrf.mxu0
    %2469 = vdwg.mxu0
    %v2471 = vrot.slane %v2467, 6
    %v2473 = vadd.f32 %v2283, %v2471
    %v2474 = vxor.u32 %v2473, 2147483648
    %v2475 = vmul.f32 %v2474, 1.442695
    %v2476 = vpow.pop %v2475
    %v2477 = vadd.f32 %v2476, 1.0
    %v2478 = vrcp.pop %v2477
    %v2479 = vmul.f32 1.0, %v2478
    %v2480 = vtanh.pop %v2473
    %v2482 = vrot.slane %v2386, 6
    %v2484 = vmul.f32 %v2479, %v2482
    %2486 = vrot.lane.b32.xlu0 %v2480, 64
    %v2487 = vpop.permute.xlu0 %2486
    %v2489 = vmul.f32 %v2479, %v2487
    %2491 = vrot.lane.b32.xlu0 %v2489, 32
    %v2492 = vpop.permute.xlu0 %2491
    %v2494 = vadd.f32 %v2484, %v2492
    %v2495 = vtanh.pop %v2494
    %2497 = vrot.lane.b32.xlu0 %v2495, 64
    %v2498 = vpop.permute.xlu0 %2497
    %v2500 = vmul.f32 %v2479, %v2498
    %2502 = vrot.lane.b32.xlu0 %v2500, 32
    %v2503 = vpop.permute.xlu0 %2502
    %2505 = vst.msk [vmem:[#allocation4] sm:$0xc] %vm396, %v2503
    %v2506 = vrot.slane %v2500, 2
    %2507 = vrot.lane.b32.xlu0 %v2506, 32
    %v2508 = vpop.permute.xlu0 %2507
    %v2509 = vsel %vm180, %v2508, 0
    %2511 = vmatprep.subr.mxu0 0.0
    %2512 = vmatpush1.msra.mxu0 0.0
    %2513 = vmatprep.subr.mxu0 0.0
    %2514 = vmatpush1.msra.mxu0 0.0
    %2515 = vmatprep.subr.mxu0 0.0
    %2516 = vmatpush1.msra.mxu0 0.0
    %2517 = vmatprep.subr.mxu0 0.0
    %2518 = vmatpush1.msra.mxu0 0.0
    %2519 = vmatprep.subr.mxu0 0.0
    %2520 = vmatpush1.msra.mxu0 0.0
    %2521 = vmatprep.subr.mxu0 0.0
    %2522 = vmatpush1.msra.mxu0 0.0
    %2523 = vmatprep.subr.mxu0 0.0
    %2524 = vmatpush1.msra.mxu0 0.0
    %2525 = vmatprep.subr.mxu0 0.0
    %2526 = vmatpush1.msra.mxu0 0.0
    %2527 = vmatprep.subr.mxu0 0.0
    %2528 = vmatpush1.msra.mxu0 0.0
    %2529 = vmatprep.subr.mxu0 0.0
    %2530 = vmatpush1.msra.mxu0 0.0
    %2531 = vmatprep.subr.mxu0 0.0
    %2532 = vmatpush1.msra.mxu0 0.0
    %2533 = vmatprep.subr.mxu0 0.0
    %2534 = vmatpush1.msra.mxu0 0.0
    %2535 = vmatprep.subr.mxu0 0.0
    %2536 = vmatpush1.msra.mxu0 %v2288
    %2537 = vmatprep.subr.mxu0 0.0
    %2538 = vmatpush1.msra.mxu0 %v2287
    %2539 = vmatprep.subr.mxu0 0.0
    %2540 = vmatpush1.msra.mxu0 %v2286
    %2541 = vmatprep.subr.mxu0 0.0
    %2542 = vmatpush1.msra.mxu0 %v2285
    %2543 = vmatprep.subr.mxu0 0.0
    %2544 = vmatpush2.msra.mxu0 0.0
    %2545 = vmatprep.subr.mxu0 0.0
    %2546 = vmatpush2.msra.mxu0 0.0
    %2547 = vmatprep.subr.mxu0 0.0
    %2548 = vmatpush2.msra.mxu0 0.0
    %2549 = vmatprep.subr.mxu0 0.0
    %2550 = vmatpush2.msra.mxu0 0.0
    %2551 = vmatprep.subr.mxu0 0.0
    %2552 = vmatpush2.msra.mxu0 0.0
    %2553 = vmatprep.subr.mxu0 0.0
    %2554 = vmatpush2.msra.mxu0 0.0
    %2555 = vmatprep.subr.mxu0 0.0
    %2556 = vmatpush2.msra.mxu0 0.0
    %2557 = vmatprep.subr.mxu0 0.0
    %2558 = vmatpush2.msra.mxu0 0.0
    %2559 = vmatprep.subr.mxu0 0.0
    %2560 = vmatpush2.msra.mxu0 0.0
    %2561 = vmatprep.subr.mxu0 0.0
    %2562 = vmatpush2.msra.mxu0 0.0
    %2563 = vmatprep.subr.mxu0 0.0
    %2564 = vmatpush2.msra.mxu0 0.0
    %2565 = vmatprep.subr.mxu0 0.0
    %2566 = vmatpush2.msra.mxu0 0.0
    %2567 = vmatprep.subr.mxu0 0.0
    %2568 = vmatpush2.msra.mxu0 0.0
    %2569 = vmatprep.subr.mxu0 0.0
    %2570 = vmatpush2.msra.mxu0 0.0
    %2571 = vmatprep.subr.mxu0 0.0
    %2572 = vmatpush2.msra.mxu0 0.0
    %2573 = vmatprep.subr.mxu0 0.0
    %2574 = vmatpush2.msra.mxu0 0.0
    %2575 = vmatprep.mubr.f32.mxu0 0.0
    %2576 = vmatmul.mubr.f32.gmra.mxu0 %v2509
    %v2577 = vpop.f32.mrf.mxu0
    %v2578 = vadd.f32 0.0, %v2577
    %v2579 = vpop.f32.mrf.mxu0
    %2580 = vdwg.mxu0
    %v2582 = vrot.slane %v2578, 4
    %v2584 = vadd.f32 %v2283, %v2582
    %v2585 = vxor.u32 %v2584, 2147483648
    %v2586 = vmul.f32 %v2585, 1.442695
    %v2587 = vpow.pop %v2586
    %v2588 = vadd.f32 %v2587, 1.0
    %v2589 = vrcp.pop %v2588
    %v2590 = vmul.f32 1.0, %v2589
    %v2591 = vtanh.pop %v2584
    %v2593 = vrot.slane %v2494, 6
    %v2595 = vmul.f32 %v2590, %v2593
    %2597 = vrot.lane.b32.xlu0 %v2591, 64
    %v2598 = vpop.permute.xlu0 %2597
    %v2600 = vmul.f32 %v2590, %v2598
    %2602 = vrot.lane.b32.xlu0 %v2600, 32
    %v2603 = vpop.permute.xlu0 %2602
    %v2605 = vadd.f32 %v2595, %v2603
    %v2606 = vtanh.pop %v2605
    %2608 = vrot.lane.b32.xlu0 %v2606, 64
    %v2609 = vpop.permute.xlu0 %2608
    %v2611 = vmul.f32 %v2590, %v2609
    %2613 = vrot.lane.b32.xlu0 %v2611, 32
    %v2614 = vpop.permute.xlu0 %2613
    %2616 = vst.msk [vmem:[#allocation4] sm:$0x30] %vm508, %v2614
    %v2617 = vrot.slane %v2611, 4
    %2618 = vrot.lane.b32.xlu0 %v2617, 32
    %v2619 = vpop.permute.xlu0 %2618
    %v2620 = vsel %vm180, %v2619, 0
    %2622 = vmatprep.subr.mxu0 0.0
    %2623 = vmatpush1.msra.mxu0 0.0
    %2624 = vmatprep.subr.mxu0 0.0
    %2625 = vmatpush1.msra.mxu0 0.0
    %2626 = vmatprep.subr.mxu0 0.0
    %2627 = vmatpush1.msra.mxu0 0.0
    %2628 = vmatprep.subr.mxu0 0.0
    %2629 = vmatpush1.msra.mxu0 0.0
    %2630 = vmatprep.subr.mxu0 0.0
    %2631 = vmatpush1.msra.mxu0 0.0
    %2632 = vmatprep.subr.mxu0 0.0
    %2633 = vmatpush1.msra.mxu0 0.0
    %2634 = vmatprep.subr.mxu0 0.0
    %2635 = vmatpush1.msra.mxu0 0.0
    %2636 = vmatprep.subr.mxu0 0.0
    %2637 = vmatpush1.msra.mxu0 0.0
    %2638 = vmatprep.subr.mxu0 0.0
    %2639 = vmatpush1.msra.mxu0 0.0
    %2640 = vmatprep.subr.mxu0 0.0
    %2641 = vmatpush1.msra.mxu0 0.0
    %2642 = vmatprep.subr.mxu0 0.0
    %2643 = vmatpush1.msra.mxu0 0.0
    %2644 = vmatprep.subr.mxu0 0.0
    %2645 = vmatpush1.msra.mxu0 0.0
    %2646 = vmatprep.subr.mxu0 0.0
    %2647 = vmatpush1.msra.mxu0 %v2288
    %2648 = vmatprep.subr.mxu0 0.0
    %2649 = vmatpush1.msra.mxu0 %v2287
    %2650 = vmatprep.subr.mxu0 0.0
    %2651 = vmatpush1.msra.mxu0 %v2286
    %2652 = vmatprep.subr.mxu0 0.0
    %2653 = vmatpush1.msra.mxu0 %v2285
    %2654 = vmatprep.subr.mxu0 0.0
    %2655 = vmatpush2.msra.mxu0 0.0
    %2656 = vmatprep.subr.mxu0 0.0
    %2657 = vmatpush2.msra.mxu0 0.0
    %2658 = vmatprep.subr.mxu0 0.0
    %2659 = vmatpush2.msra.mxu0 0.0
    %2660 = vmatprep.subr.mxu0 0.0
    %2661 = vmatpush2.msra.mxu0 0.0
    %2662 = vmatprep.subr.mxu0 0.0
    %2663 = vmatpush2.msra.mxu0 0.0
    %2664 = vmatprep.subr.mxu0 0.0
    %2665 = vmatpush2.msra.mxu0 0.0
    %2666 = vmatprep.subr.mxu0 0.0
    %2667 = vmatpush2.msra.mxu0 0.0
    %2668 = vmatprep.subr.mxu0 0.0
    %2669 = vmatpush2.msra.mxu0 0.0
    %2670 = vmatprep.subr.mxu0 0.0
    %2671 = vmatpush2.msra.mxu0 0.0
    %2672 = vmatprep.subr.mxu0 0.0
    %2673 = vmatpush2.msra.mxu0 0.0
    %2674 = vmatprep.subr.mxu0 0.0
    %2675 = vmatpush2.msra.mxu0 0.0
    %2676 = vmatprep.subr.mxu0 0.0
    %2677 = vmatpush2.msra.mxu0 0.0
    %2678 = vmatprep.subr.mxu0 0.0
    %2679 = vmatpush2.msra.mxu0 0.0
    %2680 = vmatprep.subr.mxu0 0.0
    %2681 = vmatpush2.msra.mxu0 0.0
    %2682 = vmatprep.subr.mxu0 0.0
    %2683 = vmatpush2.msra.mxu0 0.0
    %2684 = vmatprep.subr.mxu0 0.0
    %2685 = vmatpush2.msra.mxu0 0.0
    %2686 = vmatprep.mubr.f32.mxu0 0.0
    %2687 = vmatmul.mubr.f32.gmra.mxu0 %v2620
    %v2688 = vpop.f32.mrf.mxu0
    %v2689 = vadd.f32 0.0, %v2688
    %v2690 = vpop.f32.mrf.mxu0
    %2691 = vdwg.mxu0
    %v2693 = vrot.slane %v2689, 2
    %v2695 = vadd.f32 %v2283, %v2693
    %v2696 = vxor.u32 %v2695, 2147483648
    %v2697 = vmul.f32 %v2696, 1.442695
    %v2698 = vpow.pop %v2697
    %v2699 = vadd.f32 %v2698, 1.0
    %v2700 = vrcp.pop %v2699
    %v2701 = vmul.f32 1.0, %v2700
    %v2702 = vtanh.pop %v2695
    %v2704 = vrot.slane %v2605, 6
    %v2706 = vmul.f32 %v2701, %v2704
    %2708 = vrot.lane.b32.xlu0 %v2702, 64
    %v2709 = vpop.permute.xlu0 %2708
    %v2711 = vmul.f32 %v2701, %v2709
    %2713 = vrot.lane.b32.xlu0 %v2711, 32
    %v2714 = vpop.permute.xlu0 %2713
    %v2716 = vadd.f32 %v2706, %v2714
    %v2717 = vtanh.pop %v2716
    %2719 = vrot.lane.b32.xlu0 %v2717, 64
    %v2720 = vpop.permute.xlu0 %2719
    %v2722 = vmul.f32 %v2701, %v2720
    %2724 = vrot.lane.b32.xlu0 %v2722, 32
    %v2725 = vpop.permute.xlu0 %2724
    %2727 = vst.msk [vmem:[#allocation4] sm:$0xc0] %vm620, %v2725
    %v2728 = vrot.slane %v2722, 6
    %2729 = vrot.lane.b32.xlu0 %v2728, 32
    %v2730 = vpop.permute.xlu0 %2729
    %v2731 = vsel %vm180, %v2730, 0
    %2733 = vmatprep.subr.mxu0 0.0
    %2734 = vmatpush1.msra.mxu0 0.0
    %2735 = vmatprep.subr.mxu0 0.0
    %2736 = vmatpush1.msra.mxu0 0.0
    %2737 = vmatprep.subr.mxu0 0.0
    %2738 = vmatpush1.msra.mxu0 0.0
    %2739 = vmatprep.subr.mxu0 0.0
    %2740 = vmatpush1.msra.mxu0 0.0
    %2741 = vmatprep.subr.mxu0 0.0
    %2742 = vmatpush1.msra.mxu0 0.0
    %2743 = vmatprep.subr.mxu0 0.0
    %2744 = vmatpush1.msra.mxu0 0.0
    %2745 = vmatprep.subr.mxu0 0.0
    %2746 = vmatpush1.msra.mxu0 0.0
    %2747 = vmatprep.subr.mxu0 0.0
    %2748 = vmatpush1.msra.mxu0 0.0
    %2749 = vmatprep.subr.mxu0 0.0
    %2750 = vmatpush1.msra.mxu0 0.0
    %2751 = vmatprep.subr.mxu0 0.0
    %2752 = vmatpush1.msra.mxu0 0.0
    %2753 = vmatprep.subr.mxu0 0.0
    %2754 = vmatpush1.msra.mxu0 0.0
    %2755 = vmatprep.subr.mxu0 0.0
    %2756 = vmatpush1.msra.mxu0 0.0
    %2757 = vmatprep.subr.mxu0 0.0
    %2758 = vmatpush1.msra.mxu0 %v2288
    %2759 = vmatprep.subr.mxu0 0.0
    %2760 = vmatpush1.msra.mxu0 %v2287
    %2761 = vmatprep.subr.mxu0 0.0
    %2762 = vmatpush1.msra.mxu0 %v2286
    %2763 = vmatprep.subr.mxu0 0.0
    %2764 = vmatpush1.msra.mxu0 %v2285
    %2765 = vmatprep.subr.mxu0 0.0
    %2766 = vmatpush2.msra.mxu0 0.0
    %2767 = vmatprep.subr.mxu0 0.0
    %2768 = vmatpush2.msra.mxu0 0.0
    %2769 = vmatprep.subr.mxu0 0.0
    %2770 = vmatpush2.msra.mxu0 0.0
    %2771 = vmatprep.subr.mxu0 0.0
    %2772 = vmatpush2.msra.mxu0 0.0
    %2773 = vmatprep.subr.mxu0 0.0
    %2774 = vmatpush2.msra.mxu0 0.0
    %2775 = vmatprep.subr.mxu0 0.0
    %2776 = vmatpush2.msra.mxu0 0.0
    %2777 = vmatprep.subr.mxu0 0.0
    %2778 = vmatpush2.msra.mxu0 0.0
    %2779 = vmatprep.subr.mxu0 0.0
    %2780 = vmatpush2.msra.mxu0 0.0
    %2781 = vmatprep.subr.mxu0 0.0
    %2782 = vmatpush2.msra.mxu0 0.0
    %2783 = vmatprep.subr.mxu0 0.0
    %2784 = vmatpush2.msra.mxu0 0.0
    %2785 = vmatprep.subr.mxu0 0.0
    %2786 = vmatpush2.msra.mxu0 0.0
    %2787 = vmatprep.subr.mxu0 0.0
    %2788 = vmatpush2.msra.mxu0 0.0
    %2789 = vmatprep.subr.mxu0 0.0
    %2790 = vmatpush2.msra.mxu0 0.0
    %2791 = vmatprep.subr.mxu0 0.0
    %2792 = vmatpush2.msra.mxu0 0.0
    %2793 = vmatprep.subr.mxu0 0.0
    %2794 = vmatpush2.msra.mxu0 0.0
    %2795 = vmatprep.subr.mxu0 0.0
    %2796 = vmatpush2.msra.mxu0 0.0
    %2797 = vmatprep.mubr.f32.mxu0 0.0
    %2798 = vmatmul.mubr.f32.gmra.mxu0 %v2731
    %v2799 = vpop.f32.mrf.mxu0
    %v2800 = vadd.f32 0.0, %v2799
    %v2801 = vpop.f32.mrf.mxu0
    %2802 = vdwg.mxu0
    %v2803 = vadd.f32 %v2284, %v2800
    %v2804 = vxor.u32 %v2803, 2147483648
    %v2805 = vmul.f32 %v2804, 1.442695
    %v2806 = vpow.pop %v2805
    %v2807 = vadd.f32 %v2806, 1.0
    %v2808 = vrcp.pop %v2807
    %v2809 = vmul.f32 1.0, %v2808
    %v2810 = vtanh.pop %v2803
    %v2812 = vrot.slane %v2716, 6
    %v2814 = vmul.f32 %v2809, %v2812
    %2816 = vrot.lane.b32.xlu0 %v2810, 64
    %v2817 = vpop.permute.xlu0 %2816
    %v2819 = vmul.f32 %v2809, %v2817
    %2821 = vrot.lane.b32.xlu0 %v2819, 32
    %v2822 = vpop.permute.xlu0 %2821
    %v2824 = vadd.f32 %v2814, %v2822
    %v2825 = vtanh.pop %v2824
    %2827 = vrot.lane.b32.xlu0 %v2825, 64
    %v2828 = vpop.permute.xlu0 %2827
    %v2830 = vmul.f32 %v2809, %v2828
    %2832 = vrot.lane.b32.xlu0 %v2830, 32
    %v2833 = vpop.permute.xlu0 %2832
    %2835 = vst.msk [vmem:[#allocation4 + $0x8] sm:$0x3] %vm287, %v2833
    %v2836 = vsel %vm180, %v2833, 0
    %2838 = vmatprep.subr.mxu0 0.0
    %2839 = vmatpush1.msra.mxu0 0.0
    %2840 = vmatprep.subr.mxu0 0.0
    %2841 = vmatpush1.msra.mxu0 0.0
    %2842 = vmatprep.subr.mxu0 0.0
    %2843 = vmatpush1.msra.mxu0 0.0
    %2844 = vmatprep.subr.mxu0 0.0
    %2845 = vmatpush1.msra.mxu0 0.0
    %2846 = vmatprep.subr.mxu0 0.0
    %2847 = vmatpush1.msra.mxu0 0.0
    %2848 = vmatprep.subr.mxu0 0.0
    %2849 = vmatpush1.msra.mxu0 0.0
    %2850 = vmatprep.subr.mxu0 0.0
    %2851 = vmatpush1.msra.mxu0 0.0
    %2852 = vmatprep.subr.mxu0 0.0
    %2853 = vmatpush1.msra.mxu0 0.0
    %2854 = vmatprep.subr.mxu0 0.0
    %2855 = vmatpush1.msra.mxu0 0.0
    %2856 = vmatprep.subr.mxu0 0.0
    %2857 = vmatpush1.msra.mxu0 0.0
    %2858 = vmatprep.subr.mxu0 0.0
    %2859 = vmatpush1.msra.mxu0 0.0
    %2860 = vmatprep.subr.mxu0 0.0
    %2861 = vmatpush1.msra.mxu0 0.0
    %2862 = vmatprep.subr.mxu0 0.0
    %2863 = vmatpush1.msra.mxu0 %v2288
    %2864 = vmatprep.subr.mxu0 0.0
    %2865 = vmatpush1.msra.mxu0 %v2287
    %2866 = vmatprep.subr.mxu0 0.0
    %2867 = vmatpush1.msra.mxu0 %v2286
    %2868 = vmatprep.subr.mxu0 0.0
    %2869 = vmatpush1.msra.mxu0 %v2285
    %2870 = vmatprep.subr.mxu0 0.0
    %2871 = vmatpush2.msra.mxu0 0.0
    %2872 = vmatprep.subr.mxu0 0.0
    %2873 = vmatpush2.msra.mxu0 0.0
    %2874 = vmatprep.subr.mxu0 0.0
    %2875 = vmatpush2.msra.mxu0 0.0
    %2876 = vmatprep.subr.mxu0 0.0
    %2877 = vmatpush2.msra.mxu0 0.0
    %2878 = vmatprep.subr.mxu0 0.0
    %2879 = vmatpush2.msra.mxu0 0.0
    %2880 = vmatprep.subr.mxu0 0.0
    %2881 = vmatpush2.msra.mxu0 0.0
    %2882 = vmatprep.subr.mxu0 0.0
    %2883 = vmatpush2.msra.mxu0 0.0
    %2884 = vmatprep.subr.mxu0 0.0
    %2885 = vmatpush2.msra.mxu0 0.0
    %2886 = vmatprep.subr.mxu0 0.0
    %2887 = vmatpush2.msra.mxu0 0.0
    %2888 = vmatprep.subr.mxu0 0.0
    %2889 = vmatpush2.msra.mxu0 0.0
    %2890 = vmatprep.subr.mxu0 0.0
    %2891 = vmatpush2.msra.mxu0 0.0
    %2892 = vmatprep.subr.mxu0 0.0
    %2893 = vmatpush2.msra.mxu0 0.0
    %2894 = vmatprep.subr.mxu0 0.0
    %2895 = vmatpush2.msra.mxu0 0.0
    %2896 = vmatprep.subr.mxu0 0.0
    %2897 = vmatpush2.msra.mxu0 0.0
    %2898 = vmatprep.subr.mxu0 0.0
    %2899 = vmatpush2.msra.mxu0 0.0
    %2900 = vmatprep.subr.mxu0 0.0
    %2901 = vmatpush2.msra.mxu0 0.0
    %2902 = vmatprep.mubr.f32.mxu0 0.0
    %2903 = vmatmul.mubr.f32.gmra.mxu0 %v2836
    %v2904 = vpop.f32.mrf.mxu0
    %v2905 = vadd.f32 0.0, %v2904
    %v2906 = vpop.f32.mrf.mxu0
    %2907 = vdwg.mxu0
    %v2909 = vrot.slane %v2905, 6
    %v2911 = vadd.f32 %v2284, %v2909
    %v2912 = vxor.u32 %v2911, 2147483648
    %v2913 = vmul.f32 %v2912, 1.442695
    %v2914 = vpow.pop %v2913
    %v2915 = vadd.f32 %v2914, 1.0
    %v2916 = vrcp.pop %v2915
    %v2917 = vmul.f32 1.0, %v2916
    %v2918 = vtanh.pop %v2911
    %v2920 = vrot.slane %v2824, 6
    %v2922 = vmul.f32 %v2917, %v2920
    %2924 = vrot.lane.b32.xlu0 %v2918, 64
    %v2925 = vpop.permute.xlu0 %2924
    %v2927 = vmul.f32 %v2917, %v2925
    %2929 = vrot.lane.b32.xlu0 %v2927, 32
    %v2930 = vpop.permute.xlu0 %2929
    %v2932 = vadd.f32 %v2922, %v2930
    %v2933 = vtanh.pop %v2932
    %2935 = vrot.lane.b32.xlu0 %v2933, 64
    %v2936 = vpop.permute.xlu0 %2935
    %v2938 = vmul.f32 %v2917, %v2936
    %2940 = vrot.lane.b32.xlu0 %v2938, 32
    %v2941 = vpop.permute.xlu0 %2940
    %2943 = vst.msk [vmem:[#allocation4 + $0x8] sm:$0xc] %vm396, %v2941
    %v2944 = vrot.slane %v2938, 2
    %2945 = vrot.lane.b32.xlu0 %v2944, 32
    %v2946 = vpop.permute.xlu0 %2945
    %v2947 = vsel %vm180, %v2946, 0
    %2949 = vmatprep.subr.mxu0 0.0
    %2950 = vmatpush1.msra.mxu0 0.0
    %2951 = vmatprep.subr.mxu0 0.0
    %2952 = vmatpush1.msra.mxu0 0.0
    %2953 = vmatprep.subr.mxu0 0.0
    %2954 = vmatpush1.msra.mxu0 0.0
    %2955 = vmatprep.subr.mxu0 0.0
    %2956 = vmatpush1.msra.mxu0 0.0
    %2957 = vmatprep.subr.mxu0 0.0
    %2958 = vmatpush1.msra.mxu0 0.0
    %2959 = vmatprep.subr.mxu0 0.0
    %2960 = vmatpush1.msra.mxu0 0.0
    %2961 = vmatprep.subr.mxu0 0.0
    %2962 = vmatpush1.msra.mxu0 0.0
    %2963 = vmatprep.subr.mxu0 0.0
    %2964 = vmatpush1.msra.mxu0 0.0
    %2965 = vmatprep.subr.mxu0 0.0
    %2966 = vmatpush1.msra.mxu0 0.0
    %2967 = vmatprep.subr.mxu0 0.0
    %2968 = vmatpush1.msra.mxu0 0.0
    %2969 = vmatprep.subr.mxu0 0.0
    %2970 = vmatpush1.msra.mxu0 0.0
    %2971 = vmatprep.subr.mxu0 0.0
    %2972 = vmatpush1.msra.mxu0 0.0
    %2973 = vmatprep.subr.mxu0 0.0
    %2974 = vmatpush1.msra.mxu0 %v2288
    %2975 = vmatprep.subr.mxu0 0.0
    %2976 = vmatpush1.msra.mxu0 %v2287
    %2977 = vmatprep.subr.mxu0 0.0
    %2978 = vmatpush1.msra.mxu0 %v2286
    %2979 = vmatprep.subr.mxu0 0.0
    %2980 = vmatpush1.msra.mxu0 %v2285
    %2981 = vmatprep.subr.mxu0 0.0
    %2982 = vmatpush2.msra.mxu0 0.0
    %2983 = vmatprep.subr.mxu0 0.0
    %2984 = vmatpush2.msra.mxu0 0.0
    %2985 = vmatprep.subr.mxu0 0.0
    %2986 = vmatpush2.msra.mxu0 0.0
    %2987 = vmatprep.subr.mxu0 0.0
    %2988 = vmatpush2.msra.mxu0 0.0
    %2989 = vmatprep.subr.mxu0 0.0
    %2990 = vmatpush2.msra.mxu0 0.0
    %2991 = vmatprep.subr.mxu0 0.0
    %2992 = vmatpush2.msra.mxu0 0.0
    %2993 = vmatprep.subr.mxu0 0.0
    %2994 = vmatpush2.msra.mxu0 0.0
    %2995 = vmatprep.subr.mxu0 0.0
    %2996 = vmatpush2.msra.mxu0 0.0
    %2997 = vmatprep.subr.mxu0 0.0
    %2998 = vmatpush2.msra.mxu0 0.0
    %2999 = vmatprep.subr.mxu0 0.0
    %3000 = vmatpush2.msra.mxu0 0.0
    %3001 = vmatprep.subr.mxu0 0.0
    %3002 = vmatpush2.msra.mxu0 0.0
    %3003 = vmatprep.subr.mxu0 0.0
    %3004 = vmatpush2.msra.mxu0 0.0
    %3005 = vmatprep.subr.mxu0 0.0
    %3006 = vmatpush2.msra.mxu0 0.0
    %3007 = vmatprep.subr.mxu0 0.0
    %3008 = vmatpush2.msra.mxu0 0.0
    %3009 = vmatprep.subr.mxu0 0.0
    %3010 = vmatpush2.msra.mxu0 0.0
    %3011 = vmatprep.subr.mxu0 0.0
    %3012 = vmatpush2.msra.mxu0 0.0
    %3013 = vmatprep.mubr.f32.mxu0 0.0
    %3014 = vmatmul.mubr.f32.gmra.mxu0 %v2947
    %v3015 = vpop.f32.mrf.mxu0
    %v3016 = vadd.f32 0.0, %v3015
    %v3017 = vpop.f32.mrf.mxu0
    %3018 = vdwg.mxu0
    %v3020 = vrot.slane %v3016, 4
    %v3022 = vadd.f32 %v2284, %v3020
    %v3023 = vxor.u32 %v3022, 2147483648
    %v3024 = vmul.f32 %v3023, 1.442695
    %v3025 = vpow.pop %v3024
    %v3026 = vadd.f32 %v3025, 1.0
    %v3027 = vrcp.pop %v3026
    %v3028 = vmul.f32 1.0, %v3027
    %v3029 = vtanh.pop %v3022
    %v3031 = vrot.slane %v2932, 6
    %v3033 = vmul.f32 %v3028, %v3031
    %3035 = vrot.lane.b32.xlu0 %v3029, 64
    %v3036 = vpop.permute.xlu0 %3035
    %v3038 = vmul.f32 %v3028, %v3036
    %3040 = vrot.lane.b32.xlu0 %v3038, 32
    %v3041 = vpop.permute.xlu0 %3040
    %v3043 = vadd.f32 %v3033, %v3041
    %v3044 = vtanh.pop %v3043
    %3046 = vrot.lane.b32.xlu0 %v3044, 64
    %v3047 = vpop.permute.xlu0 %3046
    %v3049 = vmul.f32 %v3028, %v3047
    %3051 = vrot.lane.b32.xlu0 %v3049, 32
    %v3052 = vpop.permute.xlu0 %3051
    %3054 = vst.msk [vmem:[#allocation4 + $0x8] sm:$0x30] %vm508, %v3052
    %v3055 = vrot.slane %v3049, 4
    %3056 = vrot.lane.b32.xlu0 %v3055, 32
    %v3057 = vpop.permute.xlu0 %3056
    %v3058 = vsel %vm180, %v3057, 0
    %3060 = vmatprep.subr.mxu0 0.0
    %3061 = vmatpush1.msra.mxu0 0.0
    %3062 = vmatprep.subr.mxu0 0.0
    %3063 = vmatpush1.msra.mxu0 0.0
    %3064 = vmatprep.subr.mxu0 0.0
    %3065 = vmatpush1.msra.mxu0 0.0
    %3066 = vmatprep.subr.mxu0 0.0
    %3067 = vmatpush1.msra.mxu0 0.0
    %3068 = vmatprep.subr.mxu0 0.0
    %3069 = vmatpush1.msra.mxu0 0.0
    %3070 = vmatprep.subr.mxu0 0.0
    %3071 = vmatpush1.msra.mxu0 0.0
    %3072 = vmatprep.subr.mxu0 0.0
    %3073 = vmatpush1.msra.mxu0 0.0
    %3074 = vmatprep.subr.mxu0 0.0
    %3075 = vmatpush1.msra.mxu0 0.0
    %3076 = vmatprep.subr.mxu0 0.0
    %3077 = vmatpush1.msra.mxu0 0.0
    %3078 = vmatprep.subr.mxu0 0.0
    %3079 = vmatpush1.msra.mxu0 0.0
    %3080 = vmatprep.subr.mxu0 0.0
    %3081 = vmatpush1.msra.mxu0 0.0
    %3082 = vmatprep.subr.mxu0 0.0
    %3083 = vmatpush1.msra.mxu0 0.0
    %3084 = vmatprep.subr.mxu0 0.0
    %3085 = vmatpush1.msra.mxu0 %v2288
    %3086 = vmatprep.subr.mxu0 0.0
    %3087 = vmatpush1.msra.mxu0 %v2287
    %3088 = vmatprep.subr.mxu0 0.0
    %3089 = vmatpush1.msra.mxu0 %v2286
    %3090 = vmatprep.subr.mxu0 0.0
    %3091 = vmatpush1.msra.mxu0 %v2285
    %3092 = vmatprep.subr.mxu0 0.0
    %3093 = vmatpush2.msra.mxu0 0.0
    %3094 = vmatprep.subr.mxu0 0.0
    %3095 = vmatpush2.msra.mxu0 0.0
    %3096 = vmatprep.subr.mxu0 0.0
    %3097 = vmatpush2.msra.mxu0 0.0
    %3098 = vmatprep.subr.mxu0 0.0
    %3099 = vmatpush2.msra.mxu0 0.0
    %3100 = vmatprep.subr.mxu0 0.0
    %3101 = vmatpush2.msra.mxu0 0.0
    %3102 = vmatprep.subr.mxu0 0.0
    %3103 = vmatpush2.msra.mxu0 0.0
    %3104 = vmatprep.subr.mxu0 0.0
    %3105 = vmatpush2.msra.mxu0 0.0
    %3106 = vmatprep.subr.mxu0 0.0
    %3107 = vmatpush2.msra.mxu0 0.0
    %3108 = vmatprep.subr.mxu0 0.0
    %3109 = vmatpush2.msra.mxu0 0.0
    %3110 = vmatprep.subr.mxu0 0.0
    %3111 = vmatpush2.msra.mxu0 0.0
    %3112 = vmatprep.subr.mxu0 0.0
    %3113 = vmatpush2.msra.mxu0 0.0
    %3114 = vmatprep.subr.mxu0 0.0
    %3115 = vmatpush2.msra.mxu0 0.0
    %3116 = vmatprep.subr.mxu0 0.0
    %3117 = vmatpush2.msra.mxu0 0.0
    %3118 = vmatprep.subr.mxu0 0.0
    %3119 = vmatpush2.msra.mxu0 0.0
    %3120 = vmatprep.subr.mxu0 0.0
    %3121 = vmatpush2.msra.mxu0 0.0
    %3122 = vmatprep.subr.mxu0 0.0
    %3123 = vmatpush2.msra.mxu0 0.0
    %3124 = vmatprep.mubr.f32.mxu0 0.0
    %3125 = vmatmul.mubr.f32.gmra.mxu0 %v3058
    %v3126 = vpop.f32.mrf.mxu0
    %v3127 = vadd.f32 0.0, %v3126
    %v3128 = vpop.f32.mrf.mxu0
    %3129 = vdwg.mxu0
    %v3131 = vrot.slane %v3127, 2
    %v3133 = vadd.f32 %v2284, %v3131
    %v3134 = vxor.u32 %v3133, 2147483648
    %v3135 = vmul.f32 %v3134, 1.442695
    %v3136 = vpow.pop %v3135
    %v3137 = vadd.f32 %v3136, 1.0
    %v3138 = vrcp.pop %v3137
    %v3139 = vmul.f32 1.0, %v3138
    %v3140 = vtanh.pop %v3133
    %v3142 = vrot.slane %v3043, 6
    %v3144 = vmul.f32 %v3139, %v3142
    %3146 = vrot.lane.b32.xlu0 %v3140, 64
    %v3147 = vpop.permute.xlu0 %3146
    %v3149 = vmul.f32 %v3139, %v3147
    %3151 = vrot.lane.b32.xlu0 %v3149, 32
    %v3152 = vpop.permute.xlu0 %3151
    %v3154 = vadd.f32 %v3144, %v3152
    %v3155 = vtanh.pop %v3154
    %3157 = vrot.lane.b32.xlu0 %v3155, 64
    %v3158 = vpop.permute.xlu0 %3157
    %v3160 = vmul.f32 %v3139, %v3158
    %3162 = vrot.lane.b32.xlu0 %v3160, 32
    %v3163 = vpop.permute.xlu0 %3162
    %3165 = vst.msk [vmem:[#allocation4 + $0x8] sm:$0xc0] %vm620, %v3163
    %v3166 = vld [vmem:[#allocation4] sm:$0xff]
    %v3167 = vld [vmem:[#allocation4 + $0x8] sm:$0xff]
    %v3168 = vld [vmem:[%s12] sm:$0xff]
    %v3169 = vld [vmem:[%s12 + $0x8] sm:$0xff]
    %v3170 = vld [vmem:[%s12 + $0x10] sm:$0xff]
    %v3171 = vld [vmem:[%s12 + $0x18] sm:$0xff]
    %v3172 = vld [vmem:[%s13] sm:$0xff]
    %v3173 = vld [vmem:[%s13 + $0x8] sm:$0xff]
    %v3174 = vld [vmem:[%s13 + $0x10] sm:$0xff]
    %v3175 = vld [vmem:[%s13 + $0x18] sm:$0xff]
    %3176 = vmatprep.subr.mxu0 0.0
    %3177 = vmatpush1.msra.mxu0 0.0
    %3178 = vmatprep.subr.mxu0 0.0
    %3179 = vmatpush1.msra.mxu0 0.0
    %3180 = vmatprep.subr.mxu0 0.0
    %3181 = vmatpush1.msra.mxu0 0.0
    %3182 = vmatprep.subr.mxu0 0.0
    %3183 = vmatpush1.msra.mxu0 0.0
    %3184 = vmatprep.subr.mxu0 0.0
    %3185 = vmatpush1.msra.mxu0 0.0
    %3186 = vmatprep.subr.mxu0 0.0
    %3187 = vmatpush1.msra.mxu0 0.0
    %3188 = vmatprep.subr.mxu0 0.0
    %3189 = vmatpush1.msra.mxu0 0.0
    %3190 = vmatprep.subr.mxu0 0.0
    %3191 = vmatpush1.msra.mxu0 0.0
    %3192 = vmatprep.subr.mxu0 0.0
    %3193 = vmatpush1.msra.mxu0 0.0
    %3194 = vmatprep.subr.mxu0 0.0
    %3195 = vmatpush1.msra.mxu0 0.0
    %3196 = vmatprep.subr.mxu0 0.0
    %3197 = vmatpush1.msra.mxu0 0.0
    %3198 = vmatprep.subr.mxu0 0.0
    %3199 = vmatpush1.msra.mxu0 0.0
    %3200 = vmatprep.subr.mxu0 0.0
    %3201 = vmatpush1.msra.mxu0 %v3175
    %3202 = vmatprep.subr.mxu0 0.0
    %3203 = vmatpush1.msra.mxu0 %v3174
    %3204 = vmatprep.subr.mxu0 0.0
    %3205 = vmatpush1.msra.mxu0 %v3173
    %3206 = vmatprep.subr.mxu0 0.0
    %3207 = vmatpush1.msra.mxu0 %v3172
    %3208 = vmatprep.subr.mxu0 0.0
    %3209 = vmatpush2.msra.mxu0 0.0
    %3210 = vmatprep.subr.mxu0 0.0
    %3211 = vmatpush2.msra.mxu0 0.0
    %3212 = vmatprep.subr.mxu0 0.0
    %3213 = vmatpush2.msra.mxu0 0.0
    %3214 = vmatprep.subr.mxu0 0.0
    %3215 = vmatpush2.msra.mxu0 0.0
    %3216 = vmatprep.subr.mxu0 0.0
    %3217 = vmatpush2.msra.mxu0 0.0
    %3218 = vmatprep.subr.mxu0 0.0
    %3219 = vmatpush2.msra.mxu0 0.0
    %3220 = vmatprep.subr.mxu0 0.0
    %3221 = vmatpush2.msra.mxu0 0.0
    %3222 = vmatprep.subr.mxu0 0.0
    %3223 = vmatpush2.msra.mxu0 0.0
    %3224 = vmatprep.subr.mxu0 0.0
    %3225 = vmatpush2.msra.mxu0 0.0
    %3226 = vmatprep.subr.mxu0 0.0
    %3227 = vmatpush2.msra.mxu0 0.0
    %3228 = vmatprep.subr.mxu0 0.0
    %3229 = vmatpush2.msra.mxu0 0.0
    %3230 = vmatprep.subr.mxu0 0.0
    %3231 = vmatpush2.msra.mxu0 0.0
    %3232 = vmatprep.subr.mxu0 0.0
    %3233 = vmatpush2.msra.mxu0 0.0
    %3234 = vmatprep.subr.mxu0 0.0
    %3235 = vmatpush2.msra.mxu0 0.0
    %3236 = vmatprep.subr.mxu0 0.0
    %3237 = vmatpush2.msra.mxu0 0.0
    %3238 = vmatprep.subr.mxu0 0.0
    %3239 = vmatpush2.msra.mxu0 0.0
    %3240 = vmatprep.mubr.f32.mxu0 0.0
    %3241 = vmatmul.mubr.f32.gmra.mxu0 %v2121
    %v3242 = vpop.f32.mrf.mxu0
    %v3243 = vadd.f32 0.0, %v3242
    %v3244 = vpop.f32.mrf.mxu0
    %3245 = vmatprep.mubr.f32.mxu0 0.0
    %3246 = vmatmul.mubr.f32.gmra.mxu0 %v2124
    %v3247 = vpop.f32.mrf.mxu0
    %v3248 = vadd.f32 0.0, %v3247
    %v3249 = vpop.f32.mrf.mxu0
    %3250 = vdwg.mxu0
    %3251 = vmatprep.subr.mxu0 0.0
    %3252 = vmatpush1.msra.mxu0 0.0
    %3253 = vmatprep.subr.mxu0 0.0
    %3254 = vmatpush1.msra.mxu0 0.0
    %3255 = vmatprep.subr.mxu0 0.0
    %3256 = vmatpush1.msra.mxu0 0.0
    %3257 = vmatprep.subr.mxu0 0.0
    %3258 = vmatpush1.msra.mxu0 0.0
    %3259 = vmatprep.subr.mxu0 0.0
    %3260 = vmatpush1.msra.mxu0 0.0
    %3261 = vmatprep.subr.mxu0 0.0
    %3262 = vmatpush1.msra.mxu0 0.0
    %3263 = vmatprep.subr.mxu0 0.0
    %3264 = vmatpush1.msra.mxu0 0.0
    %3265 = vmatprep.subr.mxu0 0.0
    %3266 = vmatpush1.msra.mxu0 0.0
    %3267 = vmatprep.subr.mxu0 0.0
    %3268 = vmatpush1.msra.mxu0 0.0
    %3269 = vmatprep.subr.mxu0 0.0
    %3270 = vmatpush1.msra.mxu0 0.0
    %3271 = vmatprep.subr.mxu0 0.0
    %3272 = vmatpush1.msra.mxu0 0.0
    %3273 = vmatprep.subr.mxu0 0.0
    %3274 = vmatpush1.msra.mxu0 0.0
    %3275 = vmatprep.subr.mxu0 0.0
    %3276 = vmatpush1.msra.mxu0 %v3171
    %3277 = vmatprep.subr.mxu0 0.0
    %3278 = vmatpush1.msra.mxu0 %v3170
    %3279 = vmatprep.subr.mxu0 0.0
    %3280 = vmatpush1.msra.mxu0 %v3169
    %3281 = vmatprep.subr.mxu0 0.0
    %3282 = vmatpush1.msra.mxu0 %v3168
    %3283 = vmatprep.subr.mxu0 0.0
    %3284 = vmatpush2.msra.mxu0 0.0
    %3285 = vmatprep.subr.mxu0 0.0
    %3286 = vmatpush2.msra.mxu0 0.0
    %3287 = vmatprep.subr.mxu0 0.0
    %3288 = vmatpush2.msra.mxu0 0.0
    %3289 = vmatprep.subr.mxu0 0.0
    %3290 = vmatpush2.msra.mxu0 0.0
    %3291 = vmatprep.subr.mxu0 0.0
    %3292 = vmatpush2.msra.mxu0 0.0
    %3293 = vmatprep.subr.mxu0 0.0
    %3294 = vmatpush2.msra.mxu0 0.0
    %3295 = vmatprep.subr.mxu0 0.0
    %3296 = vmatpush2.msra.mxu0 0.0
    %3297 = vmatprep.subr.mxu0 0.0
    %3298 = vmatpush2.msra.mxu0 0.0
    %3299 = vmatprep.subr.mxu0 0.0
    %3300 = vmatpush2.msra.mxu0 0.0
    %3301 = vmatprep.subr.mxu0 0.0
    %3302 = vmatpush2.msra.mxu0 0.0
    %3303 = vmatprep.subr.mxu0 0.0
    %3304 = vmatpush2.msra.mxu0 0.0
    %3305 = vmatprep.subr.mxu0 0.0
    %3306 = vmatpush2.msra.mxu0 0.0
    %3307 = vmatprep.subr.mxu0 0.0
    %3308 = vmatpush2.msra.mxu0 0.0
    %3309 = vmatprep.subr.mxu0 0.0
    %3310 = vmatpush2.msra.mxu0 0.0
    %3311 = vmatprep.subr.mxu0 0.0
    %3312 = vmatpush2.msra.mxu0 0.0
    %3313 = vmatprep.subr.mxu0 0.0
    %3314 = vmatpush2.msra.mxu0 0.0
    %3315 = vmatprep.mubr.f32.mxu0 0.0
    %3316 = vmatmul.mubr.f32.gmra.mxu0 %v1068
    %v3317 = vpop.f32.mrf.mxu0
    %v3318 = vadd.f32 %v3243, %v3317
    %v3319 = vpop.f32.mrf.mxu0
    %3320 = vmatprep.mubr.f32.mxu0 0.0
    %3321 = vmatmul.mubr.f32.gmra.mxu0 %v1071
    %v3322 = vpop.f32.mrf.mxu0
    %v3323 = vadd.f32 %v3248, %v3322
    %v3324 = vpop.f32.mrf.mxu0
    %3325 = vdwg.mxu0
    %v3326 = vld [vmem:[%s14] sm:$0xff]
    %v3327 = vld [vmem:[%s14 + $0x8] sm:$0xff]
    %v3328 = vld [vmem:[%s14 + $0x10] sm:$0xff]
    %v3329 = vld [vmem:[%s14 + $0x18] sm:$0xff]
    %v3331 = vsel %vm180, %v3166, 0
    %v3334 = vsel %vm180, %v3167, 0
    %3336 = vmatprep.subr.mxu0 0.0
    %3337 = vmatpush1.msra.mxu0 0.0
    %3338 = vmatprep.subr.mxu0 0.0
    %3339 = vmatpush1.msra.mxu0 0.0
    %3340 = vmatprep.subr.mxu0 0.0
    %3341 = vmatpush1.msra.mxu0 0.0
    %3342 = vmatprep.subr.mxu0 0.0
    %3343 = vmatpush1.msra.mxu0 0.0
    %3344 = vmatprep.subr.mxu0 0.0
    %3345 = vmatpush1.msra.mxu0 0.0
    %3346 = vmatprep.subr.mxu0 0.0
    %3347 = vmatpush1.msra.mxu0 0.0
    %3348 = vmatprep.subr.mxu0 0.0
    %3349 = vmatpush1.msra.mxu0 0.0
    %3350 = vmatprep.subr.mxu0 0.0
    %3351 = vmatpush1.msra.mxu0 0.0
    %3352 = vmatprep.subr.mxu0 0.0
    %3353 = vmatpush1.msra.mxu0 0.0
    %3354 = vmatprep.subr.mxu0 0.0
    %3355 = vmatpush1.msra.mxu0 0.0
    %3356 = vmatprep.subr.mxu0 0.0
    %3357 = vmatpush1.msra.mxu0 0.0
    %3358 = vmatprep.subr.mxu0 0.0
    %3359 = vmatpush1.msra.mxu0 0.0
    %3360 = vmatprep.subr.mxu0 0.0
    %3361 = vmatpush1.msra.mxu0 %v3329
    %3362 = vmatprep.subr.mxu0 0.0
    %3363 = vmatpush1.msra.mxu0 %v3328
    %3364 = vmatprep.subr.mxu0 0.0
    %3365 = vmatpush1.msra.mxu0 %v3327
    %3366 = vmatprep.subr.mxu0 0.0
    %3367 = vmatpush1.msra.mxu0 %v3326
    %3368 = vmatprep.subr.mxu0 0.0
    %3369 = vmatpush2.msra.mxu0 0.0
    %3370 = vmatprep.subr.mxu0 0.0
    %3371 = vmatpush2.msra.mxu0 0.0
    %3372 = vmatprep.subr.mxu0 0.0
    %3373 = vmatpush2.msra.mxu0 0.0
    %3374 = vmatprep.subr.mxu0 0.0
    %3375 = vmatpush2.msra.mxu0 0.0
    %3376 = vmatprep.subr.mxu0 0.0
    %3377 = vmatpush2.msra.mxu0 0.0
    %3378 = vmatprep.subr.mxu0 0.0
    %3379 = vmatpush2.msra.mxu0 0.0
    %3380 = vmatprep.subr.mxu0 0.0
    %3381 = vmatpush2.msra.mxu0 0.0
    %3382 = vmatprep.subr.mxu0 0.0
    %3383 = vmatpush2.msra.mxu0 0.0
    %3384 = vmatprep.subr.mxu0 0.0
    %3385 = vmatpush2.msra.mxu0 0.0
    %3386 = vmatprep.subr.mxu0 0.0
    %3387 = vmatpush2.msra.mxu0 0.0
    %3388 = vmatprep.subr.mxu0 0.0
    %3389 = vmatpush2.msra.mxu0 0.0
    %3390 = vmatprep.subr.mxu0 0.0
    %3391 = vmatpush2.msra.mxu0 0.0
    %3392 = vmatprep.subr.mxu0 0.0
    %3393 = vmatpush2.msra.mxu0 0.0
    %3394 = vmatprep.subr.mxu0 0.0
    %3395 = vmatpush2.msra.mxu0 0.0
    %3396 = vmatprep.subr.mxu0 0.0
    %3397 = vmatpush2.msra.mxu0 0.0
    %3398 = vmatprep.subr.mxu0 0.0
    %3399 = vmatpush2.msra.mxu0 0.0
    %3400 = vmatprep.mubr.f32.mxu0 0.0
    %3401 = vmatmul.mubr.f32.gmra.mxu0 %v3331
    %v3402 = vpop.f32.mrf.mxu0
    %v3403 = vadd.f32 0.0, %v3402
    %v3404 = vpop.f32.mrf.mxu0
    %3405 = vmatprep.mubr.f32.mxu0 0.0
    %3406 = vmatmul.mubr.f32.gmra.mxu0 %v3334
    %v3407 = vpop.f32.mrf.mxu0
    %v3408 = vadd.f32 0.0, %v3407
    %v3409 = vpop.f32.mrf.mxu0
    %3410 = vdwg.mxu0
    %v3411 = vadd.f32 %v3318, %v3403
    %v3412 = vadd.f32 %v3323, %v3408
    %v3413 = vld [vmem:[%s15] sm:$0x1]
    %v3415 = vlaneseq
    %v3416 = vshrl.u32 %v3415, 7
    %v3417 = vsub.s32 0, %v3416
    %v3418 = vrot.slane %v3413, %v3417
    %v3420 = vadd.f32 %v3411, %v3418
    %v3421 = vadd.f32 %v3412, %v3418
    %v3422 = vsel %vm92, %v3420, -inf
    %3423 = vmax.xlane.f32.xlu0 %v3422
    %v3424 = vpop.xlane.xlu0 %3423
    %v3425 = vsel %vm92, %v3421, -inf
    %3426 = vmax.xlane.f32.xlu0 %v3425
    %v3427 = vpop.xlane.xlu0 %3426
    %v3428 = vsub.f32 %v3420, %v3424
    %v3429 = vsub.f32 %v3421, %v3427
    %v3430 = vmul.f32 %v3428, 1.442695
    %v3431 = vpow.pop %v3430
    %v3432 = vmul.f32 %v3429, 1.442695
    %v3433 = vpow.pop %v3432
    %v3434 = vsel %vm92, %v3431, 0.0
    %3435 = vadd.xlane.f32.xlu0 %v3434
    %v3436 = vpop.xlane.xlu0 %3435
    %v3437 = vsel %vm92, %v3433, 0.0
    %3438 = vadd.xlane.f32.xlu0 %v3437
    %v3439 = vpop.xlane.xlu0 %3438
    %v3440 = vlog2.pop %v3436
    %v3441 = vmul.f32 %v3440, 0.6931472
    %v3442 = vlog2.pop %v3439
    %v3443 = vmul.f32 %v3442, 0.6931472
    %v3444 = vsub.f32 %v3428, %v3441
    %v3445 = vsub.f32 %v3429, %v3443
    %3446 = vst.msk [vmem:[%s22] sm:$0xff] %vm92, %v3444
    %3447 = vst.msk [vmem:[%s22 + $0x8] sm:$0xff] %vm92, %v3445
    %3448 = vst.msk [vmem:[#allocation5 - $0x6] sm:$0xc0] %vm620, %v1057
    %3450 = vrot.lane.b32.xlu0 %v1048, 96
    %v3451 = vpop.permute.xlu0 %3450
    %3453 = vst.msk [vmem:[#allocation7 - $0x6] sm:$0xc0] %vm620, %v3451
    %3454 = vst.msk [vmem:[#allocation9 - $0x6] sm:$0xc0] %vm620, %v2110
    %3456 = vrot.lane.b32.xlu0 %v2101, 96
    %v3457 = vpop.permute.xlu0 %3456
    %3459 = vst.msk [vmem:[#allocation10 - $0x6] sm:$0xc0] %vm620, %v3457
    %3460 = vst.msk [vmem:[#allocation12 - $0x6] sm:$0xc0] %vm620, %v3163
    %3462 = vrot.lane.b32.xlu0 %v3154, 96
    %v3463 = vpop.permute.xlu0 %3462
    %3465 = vst.msk [vmem:[#allocation13 - $0x6] sm:$0xc0] %vm620, %v3463
    // Predicated region
    $region90: #{dlstm3_forward.1} parent=1 // pred_check
      _
    $region91: #{dlstm3_forward.1} parent=1 // pred_check_branch
      %3467 = sbr.rel (0) target = $region93
    $region92: #{dlstm3_forward.1} parent=1 // pred_region
      _
    $region93: #{dlstm3_forward.1} parent=1 // pred_fallthru
      _
    // Predicated region
    $region94: #{dlstm3_forward.1} parent=1 // pred_check
      _
    $region95: #{dlstm3_forward.1} parent=1 // pred_check_branch
      %3469 = sbr.rel (0) target = $region97
    $region96: #{dlstm3_forward.1} parent=1 // pred_region
      %s3471 = ssub.s32 32, 32
      %3472 = vsyncadd [#allocation6], %s3471
      %s3474 = sshll.u32 [#allocation5], 4
      %s3475 = int_to_ptr.vmem [resolvable:$true] %s3474
      %3477 = dma.vmem_to_hbm [thread:$0]  %s3475, 32, %s23, [#allocation6]
    $region97: #{dlstm3_forward.1} parent=1 // pred_fallthru
      _
    // Predicated region
    $region98: #{dlstm3_forward.1} parent=1 // pred_check
      _
    $region99: #{dlstm3_forward.1} parent=1 // pred_check_branch
      %3479 = sbr.rel (0) target = $region101
    $region100: #{dlstm3_forward.1} parent=1 // pred_region
      %s3481 = ssub.s32 32, 32
      %3482 = vsyncadd [#allocation8], %s3481
      %s3484 = sshll.u32 [#allocation7], 4
      %s3485 = int_to_ptr.vmem [resolvable:$true] %s3484
      %3487 = dma.vmem_to_hbm [thread:$0]  %s3485, 32, %s24, [#allocation8]
    $region101: #{dlstm3_forward.1} parent=1 // pred_fallthru
      _
    // Predicated region
    $region102: #{dlstm3_forward.1} parent=1 // pred_check
      _
    $region103: #{dlstm3_forward.1} parent=1 // pred_check_branch
      %3489 = sbr.rel (0) target = $region105
    $region104: #{dlstm3_forward.1} parent=1 // pred_region
      %s3491 = ssub.s32 32, 32
      %3492 = vsyncadd [#allocation8], %s3491
      %s3494 = sshll.u32 [#allocation9], 4
      %s3495 = int_to_ptr.vmem [resolvable:$true] %s3494
      %3497 = dma.vmem_to_hbm [thread:$0]  %s3495, 32, %s25, [#allocation8]
    $region105: #{dlstm3_forward.1} parent=1 // pred_fallthru
      _
    // Predicated region
    $region106: #{dlstm3_forward.1} parent=1 // pred_check
      _
    $region107: #{dlstm3_forward.1} parent=1 // pred_check_branch
      %3499 = sbr.rel (0) target = $region109
    $region108: #{dlstm3_forward.1} parent=1 // pred_region
      %s3501 = ssub.s32 32, 32
      %3502 = vsyncadd [#allocation11], %s3501
      %s3504 = sshll.u32 [#allocation10], 4
      %s3505 = int_to_ptr.vmem [resolvable:$true] %s3504
      %3507 = dma.vmem_to_hbm [thread:$0]  %s3505, 32, %s26, [#allocation11]
    $region109: #{dlstm3_forward.1} parent=1 // pred_fallthru
      _
    // Predicated region
    $region110: #{dlstm3_forward.1} parent=1 // pred_check
      _
    $region111: #{dlstm3_forward.1} parent=1 // pred_check_branch
      %3509 = sbr.rel (0) target = $region113
    $region112: #{dlstm3_forward.1} parent=1 // pred_region
      %s3511 = ssub.s32 32, 32
      %3512 = vsyncadd [#allocation11], %s3511
      %s3514 = sshll.u32 [#allocation12], 4
      %s3515 = int_to_ptr.vmem [resolvable:$true] %s3514
      %3517 = dma.vmem_to_hbm [thread:$0]  %s3515, 32, %s27, [#allocation11]
    $region113: #{dlstm3_forward.1} parent=1 // pred_fallthru
      _
    // Predicated region
    $region114: #{dlstm3_forward.1} parent=1 // pred_check
      _
    $region115: #{dlstm3_forward.1} parent=1 // pred_check_branch
      %3519 = sbr.rel (0) target = $region117
    $region116: #{dlstm3_forward.1} parent=1 // pred_region
      %s3521 = ssub.s32 32, 32
      %3522 = vsyncadd [#allocation14], %s3521
      %s3524 = sshll.u32 [#allocation13], 4
      %s3525 = int_to_ptr.vmem [resolvable:$true] %s3524
      %3527 = dma.vmem_to_hbm [thread:$0]  %s3525, 32, %s28, [#allocation14]
    $region117: #{dlstm3_forward.1} parent=1 // pred_fallthru
      _
    // Predicated region
    $region118: #{dlstm3_forward.1} parent=1 // pred_check
      _
    $region119: #{dlstm3_forward.1} parent=1 // pred_check_branch
      %3529 = sbr.rel (0) target = $region121
    $region120: #{dlstm3_forward.1} parent=1 // pred_region
      _
    $region121: #{dlstm3_forward.1} parent=1 // pred_fallthru
      _
    // Predicated region
    $region122: #{dlstm3_forward.1} parent=1 // pred_check
      _
    $region123: #{dlstm3_forward.1} parent=1 // pred_check_branch
      %3531 = sbr.rel (0) target = $region125
    $region124: #{dlstm3_forward.1} parent=1 // pred_region
      %3532 = dma.done [#allocation6], 32
    $region125: #{dlstm3_forward.1} parent=1 // pred_fallthru
      _
    // Predicated region
    $region126: #{dlstm3_forward.1} parent=1 // pred_check
      _
    $region127: #{dlstm3_forward.1} parent=1 // pred_check_branch
      %3534 = sbr.rel (0) target = $region129
    $region128: #{dlstm3_forward.1} parent=1 // pred_region
      %3535 = dma.done [#allocation8], 32
    $region129: #{dlstm3_forward.1} parent=1 // pred_fallthru
      _
    // Predicated region
    $region130: #{dlstm3_forward.1} parent=1 // pred_check
      _
    $region131: #{dlstm3_forward.1} parent=1 // pred_check_branch
      %3537 = sbr.rel (0) target = $region133
    $region132: #{dlstm3_forward.1} parent=1 // pred_region
      %3538 = dma.done [#allocation8], 32
    $region133: #{dlstm3_forward.1} parent=1 // pred_fallthru
      _
    // Predicated region
    $region134: #{dlstm3_forward.1} parent=1 // pred_check
      _
    $region135: #{dlstm3_forward.1} parent=1 // pred_check_branch
      %3540 = sbr.rel (0) target = $region137
    $region136: #{dlstm3_forward.1} parent=1 // pred_region
      %3541 = dma.done [#allocation11], 32
    $region137: #{dlstm3_forward.1} parent=1 // pred_fallthru
      _
    // Predicated region
    $region138: #{dlstm3_forward.1} parent=1 // pred_check
      _
    $region139: #{dlstm3_forward.1} parent=1 // pred_check_branch
      %3543 = sbr.rel (0) target = $region141
    $region140: #{dlstm3_forward.1} parent=1 // pred_region
      %3544 = dma.done [#allocation11], 32
    $region141: #{dlstm3_forward.1} parent=1 // pred_fallthru
      _
    // Predicated region
    $region142: #{dlstm3_forward.1} parent=1 // pred_check
      _
    $region143: #{dlstm3_forward.1} parent=1 // pred_check_branch
      %3546 = sbr.rel (0) target = $region145
    $region144: #{dlstm3_forward.1} parent=1 // pred_region
      %3547 = dma.done [#allocation14], 32
    $region145: #{dlstm3_forward.1} parent=1 // pred_fallthru
      _
    %3548 = vsyncpa [#allocation6], 1
    %3549 = vsyncpa [#allocation8], 1
    %3550 = vsyncpa [#allocation11], 1
    %3551 = vsyncpa [#allocation14], 1

</llo_original>
